<compile_context>
chip_gen: v7x
topology: tpu7x:2x2x1
jax: 0.10.0
libtpu: 0.0.40
codegen_flags: <defaults>
</compile_context>

<pallas_src>
import functools

import jax
import jax.numpy as jnp
from jax.experimental import pallas as pl
from jax.experimental.pallas import tpu as pltpu

# Padded-lane fc bias sentinel: exp(-1e30 - m) underflows to exactly 0 in f32.
# (Requires f32 logits; do NOT switch the logits to bf16 without rescaling this.)
NEG_INF = -1e30
MXU_PRECISION = jax.lax.Precision.HIGHEST   # per-dot; see header note.


def tcn_kernel(x_ref, w_ref, out_ref, *, layout, num_levels, kernel_size,
               seq_len, block_batch, has_down, precision):
    """One block of `block_batch` sequences per grid step, stacked time-major.

    x_ref:   (T*Bb, C_in)  row (t*Bb + b) = sample b at time t; channels on lanes.
    w_ref:   (R, 128)      packed weight slab; layout[name] = (row_off, rows, cols).
    out_ref: (Bb, AP)      softmax probabilities (lane-dense, padded past assets_num).
    """
    TB = seq_len * block_batch
    h = x_ref[...].astype(jnp.float32)                       # (TB, C_in)

    def read(name):
        off, rows, cols = layout[name]                       # static Python ints
        return w_ref[off:off + rows, :cols]

    def dot(a, b):
        return jnp.dot(a, b, precision=precision, preferred_element_type=jnp.float32)

    def shift_rows(a, time_shift):
        # Causal shift by `time_shift` steps == time_shift*Bb rows in the time-major
        # stacking; zero-fill the leading rows (== Conv1d left padding + chomp).
        r = time_shift * block_batch
        return jnp.concatenate(
            [jnp.zeros((r, a.shape[1]), jnp.float32), a[:TB - r, :]], axis=0)

    def causal_conv(hin, w_name, b_name, dilation):
        # Dilated causal Conv1d (+chomp) as ONE matmul on the im2col concat:
        # column blocks = [tap 0 (shift (k-1)*d), ..., tap k-2 (shift d), tap k-1 (no shift)]
        # matching the tap-major row order of the packed weight.
        taps = [shift_rows(hin, (kernel_size - 1 - j) * dilation)
                for j in range(kernel_size - 1)] + [hin]
        hcat = jnp.concatenate(taps, axis=1) if len(taps) > 1 else taps[0]
        return dot(hcat, read(w_name)) + read(b_name)

    for lvl in range(num_levels):
        dilation = 2 ** lvl
        z = jnp.maximum(causal_conv(h, f"w1_{lvl}", f"b1_{lvl}", dilation), 0.0)
        z = jnp.maximum(causal_conv(z, f"w2_{lvl}", f"b2_{lvl}", dilation), 0.0)
        if has_down[lvl]:
            res = dot(h, read(f"wd_{lvl}")) + read(f"bd_{lvl}")   # 1x1 residual projection
        else:
            res = h
        h = jnp.maximum(z + res, 0.0)                        # residual add + ReLU

    # Last time step of every sequence = last Bb rows (time-major stacking):
    # a static row slice, no one-hot matmul on the MXU.
    h_last = h[TB - block_batch:, :]                         # (Bb, H)

    # Lane-dense fc + softmax; padded lanes carry a -1e30 bias so exp() maps them to 0.
    logits = dot(h_last, read("fc_w")) + read("fc_b")        # (Bb, AP)
    m = jnp.max(logits, axis=-1, keepdims=True)
    e = jnp.exp(logits - m)
    s = jnp.sum(e, axis=-1, keepdims=True)
    inv = pl.reciprocal(s, approx=True)                      # EUP slot
    inv = inv * (2.0 - s * inv)                              # one Newton step -> ~f32 accuracy
    out_ref[...] = e * inv


def _default_batch_blocks(batch):
    """Grid steps = #TensorCores when the part has more than one (v7x / megacore parts)."""
    kind = ""
    try:
        kind = jax.devices()[0].device_kind.lower()
    except Exception:
        pass
    blocks = 2 if any(tag in kind for tag in ("v7", "v4", "v5p")) else 1
    while blocks > 1 and batch % blocks:
        blocks -= 1
    return max(blocks, 1)


def _pack_weights(params, *, assets, hidden, assets_pad):
    """Pack every weight/bias into ONE (rows, width) f32 slab (single DMA, static offsets)."""
    def wcat(w):   # PyTorch Conv1d weight (Cout, Cin, k) -> (k*Cin, Cout), tap-major rows
        cout, cin, k = w.shape
        return jnp.transpose(w, (2, 1, 0)).reshape(k * cin, cout)

    entries, has_down = [], []
    for lvl, blk in enumerate(params["blocks"]):
        entries.append((f"w1_{lvl}", wcat(blk["conv1_w"])))
        entries.append((f"b1_{lvl}", blk["conv1_b"].reshape(1, -1)))
        entries.append((f"w2_{lvl}", wcat(blk["conv2_w"])))
        entries.append((f"b2_{lvl}", blk["conv2_b"].reshape(1, -1)))
        if "down_w" in blk:
            entries.append((f"wd_{lvl}", blk["down_w"][:, :, 0].T))
            entries.append((f"bd_{lvl}", blk["down_b"].reshape(1, -1)))
            has_down.append(True)
        else:
            has_down.append(False)

    # Linear(hidden -> assets) padded to `assets_pad` lanes; padded bias lanes get -1e30
    # so the in-kernel softmax ignores them and the output store stays lane-dense.
    fc_w = jnp.zeros((hidden, assets_pad), jnp.float32).at[:, :assets].set(
        params["fc_w"].T.astype(jnp.float32))
    fc_b = jnp.full((1, assets_pad), NEG_INF, jnp.float32).at[0, :assets].set(
        params["fc_b"].astype(jnp.float32))
    entries.append(("fc_w", fc_w))
    entries.append(("fc_b", fc_b))

    width = max(128, assets_pad, max(int(m.shape[1]) for _, m in entries))
    width = ((width + 127) // 128) * 128
    blocks, layout, off = [], {}, 0
    for name, mat in entries:
        mat = jnp.asarray(mat, jnp.float32)
        r, c = int(mat.shape[0]), int(mat.shape[1])
        rp = ((r + 7) // 8) * 8                              # 8-sublane aligned row offsets
        blocks.append(jnp.zeros((rp, width), jnp.float32).at[:r, :c].set(mat))
        layout[name] = (off, r, c)
        off += rp
    return jnp.concatenate(blocks, axis=0), layout, tuple(has_down)


def tcn_forward(x, params, *, kernel_size, batch_blocks=None):
    """x: (B, T, A) float32 (batch_first). Returns (B, A) softmax probabilities."""
    B, T, A = x.shape
    H = params["fc_w"].shape[1]
    num_levels = len(params["blocks"])
    AP = max(128, ((A + 127) // 128) * 128)                  # lane-dense output width

    if batch_blocks is None:
        batch_blocks = _default_batch_blocks(B)
    assert B % batch_blocks == 0, (B, batch_blocks)
    Bb = B // batch_blocks

    slab, layout, has_down = _pack_weights(params, assets=A, hidden=H, assets_pad=AP)

    # Time-major stacking per block: row (t*Bb + b) -> the whole block is one grid step.
    xs = (x.astype(jnp.float32)
            .reshape(batch_blocks, Bb, T, A)
            .transpose(0, 2, 1, 3)
            .reshape(batch_blocks, T * Bb, A))

    kernel = functools.partial(
        tcn_kernel, layout=layout, num_levels=num_levels, kernel_size=kernel_size,
        seq_len=T, block_batch=Bb, has_down=has_down, precision=MXU_PRECISION)

    out = pl.pallas_call(
        kernel,
        out_shape=jax.ShapeDtypeStruct((batch_blocks, Bb, AP), jnp.float32),
        grid=(batch_blocks,),
        in_specs=[
            pl.BlockSpec((None, T * Bb, A), lambda i: (i, 0, 0)),
            pl.BlockSpec(slab.shape, lambda i: (0, 0)),      # grid-invariant weight slab
        ],
        out_specs=pl.BlockSpec((None, Bb, AP), lambda i: (i, 0, 0)),
        compiler_params=pltpu.CompilerParams(
            dimension_semantics=("parallel",)),              # v7x: blocks across TensorCores
    )(xs, slab)
    return out.reshape(B, AP)[:, :A]


def tcn_reference(x, params):
    """Pure-JAX reference matching the PyTorch TCN forward semantics (f32 ground truth)."""
    P = jax.lax.Precision.HIGHEST
    h = x.astype(jnp.float32)                      # (B, T, C); conv works along T

    def causal_conv1d(hin, w, b, dilation):
        # hin: (B, T, Cin); w: (Cout, Cin, k) PyTorch layout; b: (Cout,)
        Bb, T, _ = hin.shape
        k = w.shape[2]
        pad = (k - 1) * dilation
        hp = jnp.pad(hin, ((0, 0), (pad, 0), (0, 0)))   # left pad == pad-both-sides + chomp
        out = jnp.zeros((Bb, T, w.shape[0]), jnp.float32)
        for j in range(k):
            out = out + jnp.einsum("btc,oc->bto",
                                   hp[:, j * dilation:j * dilation + T, :], w[:, :, j],
                                   precision=P)
        return out + b

    for lvl, blk in enumerate(params["blocks"]):
        d = 2 ** lvl
        z = jax.nn.relu(causal_conv1d(h, blk["conv1_w"], blk["conv1_b"], d))
        z = jax.nn.relu(causal_conv1d(z, blk["conv2_w"], blk["conv2_b"], d))
        if "down_w" in blk:
            res = jnp.einsum("btc,oc->bto", h, blk["down_w"][:, :, 0], precision=P) + blk["down_b"]
        else:
            res = h
        h = jax.nn.relu(z + res)

    h_last = h[:, -1, :]                           # out[:, -1, :] after transpose back
    logits = jnp.dot(h_last, params["fc_w"].T, precision=P) + params["fc_b"]
    return jax.nn.softmax(logits, axis=-1)         # Softmax(dim=1) on a (B, A) tensor


def init_params(key, assets_num, hidden_size, num_levels, kernel_size):
    """Random params with the PyTorch layer shapes (weight_norm folded, eval mode)."""
    keys = iter(jax.random.split(key, 6 * num_levels + 2))

    def uni(shape, fan_in):
        bound = 1.0 / float(fan_in) ** 0.5
        return jax.random.uniform(next(keys), shape, jnp.float32, -bound, bound)

    blocks = []
    cin = assets_num
    for _ in range(num_levels):
        blk = {
            "conv1_w": uni((hidden_size, cin, kernel_size), cin * kernel_size),
            "conv1_b": uni((hidden_size,), cin * kernel_size),
            "conv2_w": uni((hidden_size, hidden_size, kernel_size), hidden_size * kernel_size),
            "conv2_b": uni((hidden_size,), hidden_size * kernel_size),
        }
        if cin != hidden_size:                     # 1x1 residual downsample (level 0 only)
            blk["down_w"] = uni((hidden_size, cin, 1), cin)
            blk["down_b"] = uni((hidden_size,), cin)
        blocks.append(blk)
        cin = hidden_size
    return {
        "blocks": blocks,
        "fc_w": uni((assets_num, hidden_size), hidden_size),   # nn.Linear(hidden, assets)
        "fc_b": uni((assets_num,), hidden_size),
    }


if __name__ == "__main__":
    # Small shapes implied by the module: batch=2, seq=16, assets_num=4, hidden_size=32.
    B, T, A, H = 2, 16, 4, 32
    LEVELS, KSIZE = 2, 2          # TemporalConvNet: 2 blocks, dilations (1, 2), kernel size 2

    key = jax.random.PRNGKey(0)
    k_x, k_p = jax.random.split(key)
    x = jax.random.normal(k_x, (B, T, A), dtype=jnp.float32)
    params = init_params(k_p, A, H, LEVELS, KSIZE)

    out = tcn_forward(x, params, kernel_size=KSIZE)
    out = jax.block_until_ready(out)

    ref = tcn_reference(x, params)
    assert out.shape == (B, A), out.shape
    max_err = float(jnp.max(jnp.abs(out - ref)))
    assert jnp.allclose(out, ref, atol=1e-4, rtol=1e-4), f"mismatch vs reference: {max_err}"

    # TODO(synk): dropout (identity in eval) and weight_norm (folded weights) are not modelled
    # as separate ops; the exact TemporalConvNet config is not given in the spec (assumed
    # [hidden_size]*levels channels, kernel_size=2).
    print("KERNEL_OK")
</pallas_src>

<mosaic_0001>
module attributes {stable_mosaic.version = 11 : i64} {
  func.func @tcn_kernel(%arg0: i32, %arg1: memref<1x32x4xf32, #tpu.memory_space<vmem>>, %arg2: memref<288x128xf32, #tpu.memory_space<vmem>>, %arg3: memref<1x2x128xf32, #tpu.memory_space<vmem>>) attributes {dimension_semantics = [#tpu.dimension_semantics<parallel>], iteration_bounds = array<i64: 1>, scalar_prefetch = 0 : i64, scratch_operands = 0 : i64, tpu.core_type = #tpu.core_type<tc>, window_params = [{transform_indices = @transform_0, window_bounds = array<i64: 1, 32, 4>}, {pipeline_mode = #tpu.pipeline_mode<synchronous>, transform_indices = @transform_1, window_bounds = array<i64: 288, 128>}, {transform_indices = @transform_2, window_bounds = array<i64: 1, 2, 128>}]} {
    %c0 = arith.constant 0 : index
    %c0_0 = arith.constant 0 : index
    %c0_1 = arith.constant 0 : index
    %0 = vector.load %arg1[%c0, %c0_0, %c0_1] : memref<1x32x4xf32, #tpu.memory_space<vmem>>, vector<1x32x4xf32>
    %1 = vector.shape_cast %0 : vector<1x32x4xf32> to vector<32x4xf32>
    %cst = arith.constant 0.000000e+00 : f32
    %2 = vector.broadcast %cst : f32 to vector<2x4xf32>
    %3 = vector.extract_strided_slice %1 {offsets = [0, 0], sizes = [30, 4], strides = [1, 1]} : vector<32x4xf32> to vector<30x4xf32>
    %4 = tpu.concatenate %2, %3 in 0 : vector<2x4xf32>, vector<30x4xf32> -> vector<32x4xf32>
    %5 = tpu.concatenate %4, %1 in 1 : vector<32x4xf32>, vector<32x4xf32> -> vector<32x8xf32>
    %c0_2 = arith.constant 0 : index
    %c0_3 = arith.constant 0 : index
    %6 = vector.load %arg2[%c0_2, %c0_3] : memref<288x128xf32, #tpu.memory_space<vmem>>, vector<8x32xf32>
    %cst_4 = arith.constant dense<0.000000e+00> : vector<32x32xf32>
    %7 = tpu.matmul %5, %6, %cst_4 {dimension_numbers = #tpu.dot_dimension_numbers<[1], [0], [0], [1], [0, 0, 1, 1], [], []>, precision = #tpu.contract_precision<fp32>} : vector<32x8xf32>, vector<8x32xf32>, vector<32x32xf32> -> vector<32x32xf32>
    %c8 = arith.constant 8 : index
    %c0_5 = arith.constant 0 : index
    %8 = vector.load %arg2[%c8, %c0_5] : memref<288x128xf32, #tpu.memory_space<vmem>>, vector<1x32xf32>
    %9 = vector.broadcast %8 : vector<1x32xf32> to vector<32x32xf32>
    %10 = arith.addf %7, %9 : vector<32x32xf32>
    %cst_6 = arith.constant 0.000000e+00 : f32
    %11 = vector.broadcast %cst_6 : f32 to vector<32x32xf32>
    %12 = arith.maximumf %10, %11 : vector<32x32xf32>
    %cst_7 = arith.constant 0.000000e+00 : f32
    %13 = vector.broadcast %cst_7 : f32 to vector<2x32xf32>
    %14 = vector.extract_strided_slice %12 {offsets = [0, 0], sizes = [30, 32], strides = [1, 1]} : vector<32x32xf32> to vector<30x32xf32>
    %15 = tpu.concatenate %13, %14 in 0 : vector<2x32xf32>, vector<30x32xf32> -> vector<32x32xf32>
    %16 = tpu.concatenate %15, %12 in 1 : vector<32x32xf32>, vector<32x32xf32> -> vector<32x64xf32>
    %c16 = arith.constant 16 : index
    %c0_8 = arith.constant 0 : index
    %17 = vector.load %arg2[%c16, %c0_8] : memref<288x128xf32, #tpu.memory_space<vmem>>, vector<64x32xf32>
    %cst_9 = arith.constant dense<0.000000e+00> : vector<32x32xf32>
    %18 = tpu.matmul %16, %17, %cst_9 {dimension_numbers = #tpu.dot_dimension_numbers<[1], [0], [0], [1], [0, 0, 1, 1], [], []>, precision = #tpu.contract_precision<fp32>} : vector<32x64xf32>, vector<64x32xf32>, vector<32x32xf32> -> vector<32x32xf32>
    %c80 = arith.constant 80 : index
    %c0_10 = arith.constant 0 : index
    %19 = vector.load %arg2[%c80, %c0_10] : memref<288x128xf32, #tpu.memory_space<vmem>>, vector<1x32xf32>
    %20 = vector.broadcast %19 : vector<1x32xf32> to vector<32x32xf32>
    %21 = arith.addf %18, %20 : vector<32x32xf32>
    %cst_11 = arith.constant 0.000000e+00 : f32
    %22 = vector.broadcast %cst_11 : f32 to vector<32x32xf32>
    %23 = arith.maximumf %21, %22 : vector<32x32xf32>
    %c88 = arith.constant 88 : index
    %c0_12 = arith.constant 0 : index
    %24 = vector.load %arg2[%c88, %c0_12] : memref<288x128xf32, #tpu.memory_space<vmem>>, vector<4x32xf32>
    %cst_13 = arith.constant dense<0.000000e+00> : vector<32x32xf32>
    %25 = tpu.matmul %1, %24, %cst_13 {dimension_numbers = #tpu.dot_dimension_numbers<[1], [0], [0], [1], [0, 0, 1, 1], [], []>, precision = #tpu.contract_precision<fp32>} : vector<32x4xf32>, vector<4x32xf32>, vector<32x32xf32> -> vector<32x32xf32>
    %c96 = arith.constant 96 : index
    %c0_14 = arith.constant 0 : index
    %26 = vector.load %arg2[%c96, %c0_14] : memref<288x128xf32, #tpu.memory_space<vmem>>, vector<1x32xf32>
    %27 = vector.broadcast %26 : vector<1x32xf32> to vector<32x32xf32>
    %28 = arith.addf %25, %27 : vector<32x32xf32>
    %29 = arith.addf %23, %28 : vector<32x32xf32>
    %cst_15 = arith.constant 0.000000e+00 : f32
    %30 = vector.broadcast %cst_15 : f32 to vector<32x32xf32>
    %31 = arith.maximumf %29, %30 : vector<32x32xf32>
    %cst_16 = arith.constant 0.000000e+00 : f32
    %32 = vector.broadcast %cst_16 : f32 to vector<4x32xf32>
    %33 = vector.extract_strided_slice %31 {offsets = [0, 0], sizes = [28, 32], strides = [1, 1]} : vector<32x32xf32> to vector<28x32xf32>
    %34 = tpu.concatenate %32, %33 in 0 : vector<4x32xf32>, vector<28x32xf32> -> vector<32x32xf32>
    %35 = tpu.concatenate %34, %31 in 1 : vector<32x32xf32>, vector<32x32xf32> -> vector<32x64xf32>
    %c104 = arith.constant 104 : index
    %c0_17 = arith.constant 0 : index
    %36 = vector.load %arg2[%c104, %c0_17] : memref<288x128xf32, #tpu.memory_space<vmem>>, vector<64x32xf32>
    %cst_18 = arith.constant dense<0.000000e+00> : vector<32x32xf32>
    %37 = tpu.matmul %35, %36, %cst_18 {dimension_numbers = #tpu.dot_dimension_numbers<[1], [0], [0], [1], [0, 0, 1, 1], [], []>, precision = #tpu.contract_precision<fp32>} : vector<32x64xf32>, vector<64x32xf32>, vector<32x32xf32> -> vector<32x32xf32>
    %c168 = arith.constant 168 : index
    %c0_19 = arith.constant 0 : index
    %38 = vector.load %arg2[%c168, %c0_19] : memref<288x128xf32, #tpu.memory_space<vmem>>, vector<1x32xf32>
    %39 = vector.broadcast %38 : vector<1x32xf32> to vector<32x32xf32>
    %40 = arith.addf %37, %39 : vector<32x32xf32>
    %cst_20 = arith.constant 0.000000e+00 : f32
    %41 = vector.broadcast %cst_20 : f32 to vector<32x32xf32>
    %42 = arith.maximumf %40, %41 : vector<32x32xf32>
    %cst_21 = arith.constant 0.000000e+00 : f32
    %43 = vector.broadcast %cst_21 : f32 to vector<4x32xf32>
    %44 = vector.extract_strided_slice %42 {offsets = [0, 0], sizes = [28, 32], strides = [1, 1]} : vector<32x32xf32> to vector<28x32xf32>
    %45 = tpu.concatenate %43, %44 in 0 : vector<4x32xf32>, vector<28x32xf32> -> vector<32x32xf32>
    %46 = tpu.concatenate %45, %42 in 1 : vector<32x32xf32>, vector<32x32xf32> -> vector<32x64xf32>
    %c176 = arith.constant 176 : index
    %c0_22 = arith.constant 0 : index
    %47 = vector.load %arg2[%c176, %c0_22] : memref<288x128xf32, #tpu.memory_space<vmem>>, vector<64x32xf32>
    %cst_23 = arith.constant dense<0.000000e+00> : vector<32x32xf32>
    %48 = tpu.matmul %46, %47, %cst_23 {dimension_numbers = #tpu.dot_dimension_numbers<[1], [0], [0], [1], [0, 0, 1, 1], [], []>, precision = #tpu.contract_precision<fp32>} : vector<32x64xf32>, vector<64x32xf32>, vector<32x32xf32> -> vector<32x32xf32>
    %c240 = arith.constant 240 : index
    %c0_24 = arith.constant 0 : index
    %49 = vector.load %arg2[%c240, %c0_24] : memref<288x128xf32, #tpu.memory_space<vmem>>, vector<1x32xf32>
    %50 = vector.broadcast %49 : vector<1x32xf32> to vector<32x32xf32>
    %51 = arith.addf %48, %50 : vector<32x32xf32>
    %cst_25 = arith.constant 0.000000e+00 : f32
    %52 = vector.broadcast %cst_25 : f32 to vector<32x32xf32>
    %53 = arith.maximumf %51, %52 : vector<32x32xf32>
    %54 = arith.addf %53, %31 : vector<32x32xf32>
    %cst_26 = arith.constant 0.000000e+00 : f32
    %55 = vector.broadcast %cst_26 : f32 to vector<32x32xf32>
    %56 = arith.maximumf %54, %55 : vector<32x32xf32>
    %57 = vector.extract_strided_slice %56 {offsets = [30, 0], sizes = [2, 32], strides = [1, 1]} : vector<32x32xf32> to vector<2x32xf32>
    %c248 = arith.constant 248 : index
    %c0_27 = arith.constant 0 : index
    %58 = vector.load %arg2[%c248, %c0_27] : memref<288x128xf32, #tpu.memory_space<vmem>>, vector<32x128xf32>
    %cst_28 = arith.constant dense<0.000000e+00> : vector<2x128xf32>
    %59 = tpu.matmul %57, %58, %cst_28 {dimension_numbers = #tpu.dot_dimension_numbers<[1], [0], [0], [1], [0, 0, 1, 1], [], []>, precision = #tpu.contract_precision<fp32>} : vector<2x32xf32>, vector<32x128xf32>, vector<2x128xf32> -> vector<2x128xf32>
    %c280 = arith.constant 280 : index
    %c0_29 = arith.constant 0 : index
    %60 = vector.load %arg2[%c280, %c0_29] : memref<288x128xf32, #tpu.memory_space<vmem>>, vector<1x128xf32>
    %61 = vector.broadcast %60 : vector<1x128xf32> to vector<2x128xf32>
    %62 = arith.addf %59, %61 : vector<2x128xf32>
    %cst_30 = arith.constant dense<0xFF800000> : vector<2xf32>
    %63 = vector.multi_reduction <maximumf>, %62, %cst_30 [1] : vector<2x128xf32> to vector<2xf32>
    %64 = vector.shape_cast %63 : vector<2xf32> to vector<2x1xf32>
    %65 = vector.broadcast %64 : vector<2x1xf32> to vector<2x128xf32>
    %66 = arith.subf %62, %65 : vector<2x128xf32>
    %67 = math.exp %66 : vector<2x128xf32>
    %cst_31 = arith.constant dense<0.000000e+00> : vector<2xf32>
    %68 = vector.multi_reduction <add>, %67, %cst_31 [1] : vector<2x128xf32> to vector<2xf32>
    %69 = vector.shape_cast %68 : vector<2xf32> to vector<2x1xf32>
    %70 = tpu.reciprocal %69 {approx = true} : vector<2x1xf32> -> vector<2x1xf32>
    %71 = arith.mulf %69, %70 : vector<2x1xf32>
    %cst_32 = arith.constant 2.000000e+00 : f32
    %72 = vector.broadcast %cst_32 : f32 to vector<2x1xf32>
    %73 = arith.subf %72, %71 : vector<2x1xf32>
    %74 = arith.mulf %70, %73 : vector<2x1xf32>
    %75 = vector.broadcast %74 : vector<2x1xf32> to vector<2x128xf32>
    %76 = arith.mulf %67, %75 : vector<2x128xf32>
    %c0_33 = arith.constant 0 : index
    %c0_34 = arith.constant 0 : index
    %c0_35 = arith.constant 0 : index
    %77 = vector.load %arg3[%c0_33, %c0_34, %c0_35] : memref<1x2x128xf32, #tpu.memory_space<vmem>>, vector<1x2x128xf32>
    %78 = vector.shape_cast %77 : vector<1x2x128xf32> to vector<2x128xf32>
    %79 = vector.shape_cast %76 : vector<2x128xf32> to vector<1x2x128xf32>
    tpu.vector_store %arg3[%c0_33, %c0_34, %c0_35], %79 {strides = array<i32>} : memref<1x2x128xf32, #tpu.memory_space<vmem>>, vector<1x2x128xf32>,
    return
  }
  func.func @transform_0(%arg0: i32) -> (i32, i32, i32) {
    %c0_i32 = arith.constant 0 : i32
    %c0_i32_0 = arith.constant 0 : i32
    %c0_i32_1 = arith.constant 0 : i32
    return %arg0, %c0_i32, %c0_i32_0 : i32, i32, i32
  }
  func.func @transform_1(%arg0: i32) -> (i32, i32) {
    %c0_i32 = arith.constant 0 : i32
    %c0_i32_0 = arith.constant 0 : i32
    %c0_i32_1 = arith.constant 0 : i32
    return %c0_i32, %c0_i32_0 : i32, i32
  }
  func.func @transform_2(%arg0: i32) -> (i32, i32, i32) {
    %c0_i32 = arith.constant 0 : i32
    %c0_i32_0 = arith.constant 0 : i32
    %c0_i32_1 = arith.constant 0 : i32
    return %arg0, %c0_i32, %c0_i32_0 : i32, i32, i32
  }
}

</mosaic_0001>

<llo_original>
// kernel: tpu_custom_call.1
$region0: #{tpu_custom_call.1}
  #allocation0 [shape = 'u32[]', space=smem, size = 0x4, offset = 0x4, fixed_abs, tag = 'smem constant byte address 0x4 - core index']
  #allocation1 [shape = 'u32[144,128]{1,0:T(1,128)}', space=vmem, size = 0x12000, scoped, tag = 'internal scratch']
  %s0 = inlined_call_operand.vmem [shape: f32[1,32,4], index: 0, kind: input, shape index: {}]
  %s1 = inlined_call_operand.hbm [shape: f32[288,128], index: 1, kind: input, shape index: {}]
  %s2 = inlined_call_operand.hbm [shape: f32[1,2,128], index: 2, kind: output, shape index: {}]
  %s3 = sld [smem:[#allocation0]]
  $region22: #{tpu_custom_call.1} parent=0
    _
  %s5 = ssub.s32 1, %s3
  %s6 = scalar_select 0, %s5, %s3
  $region1: #{tpu_custom_call.1} parent=0
    #allocation2 [shape = 'u8[147456]{0}', space=vmem, size = 0x24000, scoped, tag = 'input window, operand 1, single buffered']
    #allocation3 [shape = 's32[1]{0}', space=sflag, size = 0x4, scoped, tag = 'scoped memory for tpu_custom_call.1']
    #allocation4 [shape = 's32[1]{0}', space=sflag, size = 0x4, scoped, tag = 'scoped memory for tpu_custom_call.1']
    #allocation5 [shape = 'u8[1024]{0}', space=vmem, size = 0x400, scoped, tag = 'output window, operand 0, single buffered']
    %7 = vsyncpa [#allocation3], 0
    %8 = vsyncpa [#allocation4], 0
    // Predicated region
    $region2: #{tpu_custom_call.1} parent=1 // pred_check
      _
    $region3: #{tpu_custom_call.1} parent=1 // pred_check_branch
      %10 = sbr.rel (0) target = $region5
    $region4: #{tpu_custom_call.1} parent=1 // pred_region
      _
    $region5: #{tpu_custom_call.1} parent=1 // pred_fallthru
      _
    // Predicated region
    $region6: #{tpu_custom_call.1} parent=1 // pred_check
      _
    $region7: #{tpu_custom_call.1} parent=1 // pred_check_branch
      %12 = sbr.rel (0) target = $region9
    $region8: #{tpu_custom_call.1} parent=1 // pred_region
      %s14 = ssub.s32 4608, 4608
      %15 = vsyncadd [#allocation3], %s14
      %s16 = sshll.u32 [#allocation2], 4
      %s17 = int_to_ptr.vmem [resolvable:$true] %s16
      %22 = dma.hbm_to_vmem [thread:$0]  %s1, 4608, %s17, [#allocation3], 128, 128, 8
    $region9: #{tpu_custom_call.1} parent=1 // pred_fallthru
      _
    // Predicated region
    $region10: #{tpu_custom_call.1} parent=1 // pred_check
      _
    $region11: #{tpu_custom_call.1} parent=1 // pred_check_branch
      %24 = sbr.rel (0) target = $region13
    $region12: #{tpu_custom_call.1} parent=1 // pred_region
      %25 = dma.done [#allocation3], 4608
    $region13: #{tpu_custom_call.1} parent=1 // pred_fallthru
      _
    %v26 = vld [vmem:[%s0] sm:$0xff]
    %v27 = vld [vmem:[%s0 + $0x8] sm:$0xff]
    %v28 = vld [vmem:[%s0 + $0x10] sm:$0xff]
    %v29 = vld [vmem:[%s0 + $0x18] sm:$0xff]
    %vm34 = vcmask 1041408
    %v35 = vrot.slane %v26, 6
    %v36 = vrot.slane %v27, 6
    %v37 = vsel %vm34, %v35, %v36
    %v38 = vrot.slane %v28, 6
    %v39 = vsel %vm34, %v36, %v38
    %v40 = vrot.slane %v29, 6
    %v41 = vsel %vm34, %v38, %v40
    %v46 = vsel %vm34, 0.0, %v35
    %47 = vrot.lane.b32.xlu0 %v26, 4
    %v48 = vpop.permute.xlu0 %47
    %49 = vrot.lane.b32.xlu0 %v27, 4
    %v50 = vpop.permute.xlu0 %49
    %51 = vrot.lane.b32.xlu0 %v28, 4
    %v52 = vpop.permute.xlu0 %51
    %53 = vrot.lane.b32.xlu0 %v29, 4
    %v54 = vpop.permute.xlu0 %53
    %vm59 = vcmask 31744
    %v60 = vsel %vm59, %v46, %v48
    %v61 = vsel %vm59, %v37, %v50
    %v62 = vsel %vm59, %v39, %v52
    %v63 = vsel %vm59, %v41, %v54
    %v64 = vld [vmem:[#allocation2] sm:$0xff]
    %v65 = vld [vmem:[#allocation2 + $0x8] sm:$0x1]
    %v66 = vlaneseq
    %v67 = vshrl.u32 %v66, 7
    %v68 = vsub.s32 0, %v67
    %v69 = vrot.slane %v65, %v68
    %vm70 = vcmask 64512
    %v72 = vsel %vm70, %v60, 0
    %v75 = vsel %vm70, %v61, 0
    %v78 = vsel %vm70, %v62, 0
    %v81 = vsel %vm70, %v63, 0
    %83 = vmatprep.subr.mxu0 0.0
    %v84 = vand.u32 %v64, 4294901760
    %85 = vmatpush1.msra.mxu0 %v84
    %86 = vmatprep.subr.mxu0 0.0
    %87 = vmatpush1.msra.mxu0 0.0
    %88 = vmatprep.subr.mxu0 0.0
    %89 = vmatpush1.msra.mxu0 0.0
    %90 = vmatprep.subr.mxu0 0.0
    %91 = vmatpush1.msra.mxu0 0.0
    %92 = vmatprep.subr.mxu0 0.0
    %93 = vmatpush1.msra.mxu0 0.0
    %94 = vmatprep.subr.mxu0 0.0
    %95 = vmatpush1.msra.mxu0 0.0
    %96 = vmatprep.subr.mxu0 0.0
    %97 = vmatpush1.msra.mxu0 0.0
    %98 = vmatprep.subr.mxu0 0.0
    %99 = vmatpush1.msra.mxu0 0.0
    %100 = vmatprep.subr.mxu0 0.0
    %101 = vmatpush1.msra.mxu0 0.0
    %102 = vmatprep.subr.mxu0 0.0
    %103 = vmatpush1.msra.mxu0 0.0
    %104 = vmatprep.subr.mxu0 0.0
    %105 = vmatpush1.msra.mxu0 0.0
    %106 = vmatprep.subr.mxu0 0.0
    %107 = vmatpush1.msra.mxu0 0.0
    %108 = vmatprep.subr.mxu0 0.0
    %109 = vmatpush1.msra.mxu0 0.0
    %110 = vmatprep.subr.mxu0 0.0
    %111 = vmatpush1.msra.mxu0 0.0
    %112 = vmatprep.subr.mxu0 0.0
    %113 = vmatpush1.msra.mxu0 0.0
    %114 = vmatprep.subr.mxu0 0.0
    %115 = vmatpush1.msra.mxu0 0.0
    %116 = vmatprep.subr.mxu0 0.0
    %117 = vmatpush1.msra.mxu0 0.0
    %118 = vmatprep.subr.mxu0 0.0
    %119 = vmatpush1.msra.mxu0 0.0
    %120 = vmatprep.subr.mxu0 0.0
    %121 = vmatpush1.msra.mxu0 0.0
    %122 = vmatprep.subr.mxu0 0.0
    %123 = vmatpush1.msra.mxu0 0.0
    %124 = vmatprep.subr.mxu0 0.0
    %125 = vmatpush1.msra.mxu0 0.0
    %126 = vmatprep.subr.mxu0 0.0
    %127 = vmatpush1.msra.mxu0 0.0
    %128 = vmatprep.subr.mxu0 0.0
    %129 = vmatpush1.msra.mxu0 0.0
    %130 = vmatprep.subr.mxu0 0.0
    %131 = vmatpush1.msra.mxu0 0.0
    %132 = vmatprep.subr.mxu0 0.0
    %133 = vmatpush1.msra.mxu0 0.0
    %134 = vmatprep.subr.mxu0 0.0
    %135 = vmatpush1.msra.mxu0 0.0
    %136 = vmatprep.subr.mxu0 0.0
    %137 = vmatpush1.msra.mxu0 0.0
    %138 = vmatprep.subr.mxu0 0.0
    %139 = vmatpush1.msra.mxu0 0.0
    %140 = vmatprep.subr.mxu0 0.0
    %141 = vmatpush1.msra.mxu0 0.0
    %142 = vmatprep.subr.mxu0 0.0
    %143 = vmatpush1.msra.mxu0 0.0
    %144 = vmatprep.subr.mxu0 0.0
    %145 = vmatpush1.msra.mxu0 0.0
    %146 = vmatprep.subr.mxu0 0.0
    %147 = vmatpush1.msra.mxu0 0.0
    %148 = vmatprep.mubr.f32.mxu0 0.0
    %v149 = vand.u32 %v72, 4294901760
    %v150 = vsub.f32 %v72, %v149
    %v151 = vand.u32 %v150, 4294901760
    %v152 = vsub.f32 %v150, %v151
    %v153 = vand.u32 %v152, 4294901760
    %154 = vmatmul.mubr.f32.gmra.mrb[0].mxu0 %v153
    %v155 = vpop.f32.mrb[0].mxu0
    %v156 = vadd.f32 %v69, %v155
    %v157 = vpop.f32.mrb[0].mxu0
    %158 = vmatprep.mubr.f32.mxu0 0.0
    %v159 = vand.u32 %v75, 4294901760
    %v160 = vsub.f32 %v75, %v159
    %v161 = vand.u32 %v160, 4294901760
    %v162 = vsub.f32 %v160, %v161
    %v163 = vand.u32 %v162, 4294901760
    %164 = vmatmul.mubr.f32.gmra.mrb[0].mxu0 %v163
    %v165 = vpop.f32.mrb[0].mxu0
    %v166 = vadd.f32 %v69, %v165
    %v167 = vpop.f32.mrb[0].mxu0
    %168 = vmatprep.mubr.f32.mxu0 0.0
    %v169 = vand.u32 %v78, 4294901760
    %v170 = vsub.f32 %v78, %v169
    %v171 = vand.u32 %v170, 4294901760
    %v172 = vsub.f32 %v170, %v171
    %v173 = vand.u32 %v172, 4294901760
    %174 = vmatmul.mubr.f32.gmra.mrb[0].mxu0 %v173
    %v175 = vpop.f32.mrb[0].mxu0
    %v176 = vadd.f32 %v69, %v175
    %v177 = vpop.f32.mrb[0].mxu0
    %178 = vmatprep.mubr.f32.mxu0 0.0
    %v179 = vand.u32 %v81, 4294901760
    %v180 = vsub.f32 %v81, %v179
    %v181 = vand.u32 %v180, 4294901760
    %v182 = vsub.f32 %v180, %v181
    %v183 = vand.u32 %v182, 4294901760
    %184 = vmatmul.mubr.f32.gmra.mrb[0].mxu0 %v183
    %v185 = vpop.f32.mrb[0].mxu0
    %v186 = vadd.f32 %v69, %v185
    %v187 = vpop.f32.mrb[0].mxu0
    %188 = vdwg.mxu0
    %189 = vmatprep.subr.mxu0 0.0
    %v190 = vand.u32 %v64, 4294901760
    %v191 = vsub.f32 %v64, %v190
    %v192 = vand.u32 %v191, 4294901760
    %v193 = vsub.f32 %v191, %v192
    %v194 = vand.u32 %v193, 4294901760
    %195 = vmatpush1.msra.mxu0 %v194
    %196 = vmatprep.subr.mxu0 0.0
    %197 = vmatpush1.msra.mxu0 0.0
    %198 = vmatprep.subr.mxu0 0.0
    %199 = vmatpush1.msra.mxu0 0.0
    %200 = vmatprep.subr.mxu0 0.0
    %201 = vmatpush1.msra.mxu0 0.0
    %202 = vmatprep.subr.mxu0 0.0
    %203 = vmatpush1.msra.mxu0 0.0
    %204 = vmatprep.subr.mxu0 0.0
    %205 = vmatpush1.msra.mxu0 0.0
    %206 = vmatprep.subr.mxu0 0.0
    %207 = vmatpush1.msra.mxu0 0.0
    %208 = vmatprep.subr.mxu0 0.0
    %209 = vmatpush1.msra.mxu0 0.0
    %210 = vmatprep.subr.mxu0 0.0
    %211 = vmatpush1.msra.mxu0 0.0
    %212 = vmatprep.subr.mxu0 0.0
    %213 = vmatpush1.msra.mxu0 0.0
    %214 = vmatprep.subr.mxu0 0.0
    %215 = vmatpush1.msra.mxu0 0.0
    %216 = vmatprep.subr.mxu0 0.0
    %217 = vmatpush1.msra.mxu0 0.0
    %218 = vmatprep.subr.mxu0 0.0
    %219 = vmatpush1.msra.mxu0 0.0
    %220 = vmatprep.subr.mxu0 0.0
    %221 = vmatpush1.msra.mxu0 0.0
    %222 = vmatprep.subr.mxu0 0.0
    %223 = vmatpush1.msra.mxu0 0.0
    %224 = vmatprep.subr.mxu0 0.0
    %225 = vmatpush1.msra.mxu0 0.0
    %226 = vmatprep.subr.mxu0 0.0
    %227 = vmatpush1.msra.mxu0 0.0
    %228 = vmatprep.subr.mxu0 0.0
    %229 = vmatpush1.msra.mxu0 0.0
    %230 = vmatprep.subr.mxu0 0.0
    %231 = vmatpush1.msra.mxu0 0.0
    %232 = vmatprep.subr.mxu0 0.0
    %233 = vmatpush1.msra.mxu0 0.0
    %234 = vmatprep.subr.mxu0 0.0
    %235 = vmatpush1.msra.mxu0 0.0
    %236 = vmatprep.subr.mxu0 0.0
    %237 = vmatpush1.msra.mxu0 0.0
    %238 = vmatprep.subr.mxu0 0.0
    %239 = vmatpush1.msra.mxu0 0.0
    %240 = vmatprep.subr.mxu0 0.0
    %241 = vmatpush1.msra.mxu0 0.0
    %242 = vmatprep.subr.mxu0 0.0
    %243 = vmatpush1.msra.mxu0 0.0
    %244 = vmatprep.subr.mxu0 0.0
    %245 = vmatpush1.msra.mxu0 0.0
    %246 = vmatprep.subr.mxu0 0.0
    %247 = vmatpush1.msra.mxu0 0.0
    %248 = vmatprep.subr.mxu0 0.0
    %249 = vmatpush1.msra.mxu0 0.0
    %250 = vmatprep.subr.mxu0 0.0
    %251 = vmatpush1.msra.mxu0 0.0
    %252 = vmatprep.subr.mxu0 0.0
    %253 = vmatpush1.msra.mxu0 0.0
    %254 = vmatprep.subr.mxu0 0.0
    %255 = vmatpush1.msra.mxu0 0.0
    %256 = vmatprep.subr.mxu0 0.0
    %257 = vmatpush1.msra.mxu0 0.0
    %258 = vmatprep.mubr.f32.mxu0 0.0
    %v259 = vand.u32 %v72, 4294901760
    %260 = vmatmul.mubr.f32.gmra.mrb[0].mxu0 %v259
    %v261 = vpop.f32.mrb[0].mxu0
    %v262 = vadd.f32 %v156, %v261
    %v263 = vpop.f32.mrb[0].mxu0
    %264 = vmatprep.mubr.f32.mxu0 0.0
    %v265 = vand.u32 %v75, 4294901760
    %266 = vmatmul.mubr.f32.gmra.mrb[0].mxu0 %v265
    %v267 = vpop.f32.mrb[0].mxu0
    %v268 = vadd.f32 %v166, %v267
    %v269 = vpop.f32.mrb[0].mxu0
    %270 = vmatprep.mubr.f32.mxu0 0.0
    %v271 = vand.u32 %v78, 4294901760
    %272 = vmatmul.mubr.f32.gmra.mrb[0].mxu0 %v271
    %v273 = vpop.f32.mrb[0].mxu0
    %v274 = vadd.f32 %v176, %v273
    %v275 = vpop.f32.mrb[0].mxu0
    %276 = vmatprep.mubr.f32.mxu0 0.0
    %v277 = vand.u32 %v81, 4294901760
    %278 = vmatmul.mubr.f32.gmra.mrb[0].mxu0 %v277
    %v279 = vpop.f32.mrb[0].mxu0
    %v280 = vadd.f32 %v186, %v279
    %v281 = vpop.f32.mrb[0].mxu0
    %282 = vdwg.mxu0
    %283 = vmatprep.subr.mxu0 0.0
    %v284 = vand.u32 %v64, 4294901760
    %v285 = vsub.f32 %v64, %v284
    %286 = vmatpush1.msra.mxu0 %v285
    %287 = vmatprep.subr.mxu0 0.0
    %288 = vmatpush1.msra.mxu0 0.0
    %289 = vmatprep.subr.mxu0 0.0
    %290 = vmatpush1.msra.mxu0 0.0
    %291 = vmatprep.subr.mxu0 0.0
    %292 = vmatpush1.msra.mxu0 0.0
    %293 = vmatprep.subr.mxu0 0.0
    %294 = vmatpush1.msra.mxu0 0.0
    %295 = vmatprep.subr.mxu0 0.0
    %296 = vmatpush1.msra.mxu0 0.0
    %297 = vmatprep.subr.mxu0 0.0
    %298 = vmatpush1.msra.mxu0 0.0
    %299 = vmatprep.subr.mxu0 0.0
    %300 = vmatpush1.msra.mxu0 0.0
    %301 = vmatprep.subr.mxu0 0.0
    %302 = vmatpush1.msra.mxu0 0.0
    %303 = vmatprep.subr.mxu0 0.0
    %304 = vmatpush1.msra.mxu0 0.0
    %305 = vmatprep.subr.mxu0 0.0
    %306 = vmatpush1.msra.mxu0 0.0
    %307 = vmatprep.subr.mxu0 0.0
    %308 = vmatpush1.msra.mxu0 0.0
    %309 = vmatprep.subr.mxu0 0.0
    %310 = vmatpush1.msra.mxu0 0.0
    %311 = vmatprep.subr.mxu0 0.0
    %312 = vmatpush1.msra.mxu0 0.0
    %313 = vmatprep.subr.mxu0 0.0
    %314 = vmatpush1.msra.mxu0 0.0
    %315 = vmatprep.subr.mxu0 0.0
    %316 = vmatpush1.msra.mxu0 0.0
    %317 = vmatprep.subr.mxu0 0.0
    %318 = vmatpush1.msra.mxu0 0.0
    %319 = vmatprep.subr.mxu0 0.0
    %320 = vmatpush1.msra.mxu0 0.0
    %321 = vmatprep.subr.mxu0 0.0
    %322 = vmatpush1.msra.mxu0 0.0
    %323 = vmatprep.subr.mxu0 0.0
    %324 = vmatpush1.msra.mxu0 0.0
    %325 = vmatprep.subr.mxu0 0.0
    %326 = vmatpush1.msra.mxu0 0.0
    %327 = vmatprep.subr.mxu0 0.0
    %328 = vmatpush1.msra.mxu0 0.0
    %329 = vmatprep.subr.mxu0 0.0
    %330 = vmatpush1.msra.mxu0 0.0
    %331 = vmatprep.subr.mxu0 0.0
    %332 = vmatpush1.msra.mxu0 0.0
    %333 = vmatprep.subr.mxu0 0.0
    %334 = vmatpush1.msra.mxu0 0.0
    %335 = vmatprep.subr.mxu0 0.0
    %336 = vmatpush1.msra.mxu0 0.0
    %337 = vmatprep.subr.mxu0 0.0
    %338 = vmatpush1.msra.mxu0 0.0
    %339 = vmatprep.subr.mxu0 0.0
    %340 = vmatpush1.msra.mxu0 0.0
    %341 = vmatprep.subr.mxu0 0.0
    %342 = vmatpush1.msra.mxu0 0.0
    %343 = vmatprep.subr.mxu0 0.0
    %344 = vmatpush1.msra.mxu0 0.0
    %345 = vmatprep.subr.mxu0 0.0
    %346 = vmatpush1.msra.mxu0 0.0
    %347 = vmatprep.subr.mxu0 0.0
    %348 = vmatpush1.msra.mxu0 0.0
    %349 = vmatprep.mubr.f32.mxu0 0.0
    %v350 = vand.u32 %v72, 4294901760
    %v351 = vsub.f32 %v72, %v350
    %352 = vmatmul.mubr.f32.gmra.mrb[0].mxu0 %v351
    %v353 = vpop.f32.mrb[0].mxu0
    %v354 = vadd.f32 %v262, %v353
    %v355 = vpop.f32.mrb[0].mxu0
    %356 = vmatprep.mubr.f32.mxu0 0.0
    %v357 = vand.u32 %v75, 4294901760
    %v358 = vsub.f32 %v75, %v357
    %359 = vmatmul.mubr.f32.gmra.mrb[0].mxu0 %v358
    %v360 = vpop.f32.mrb[0].mxu0
    %v361 = vadd.f32 %v268, %v360
    %v362 = vpop.f32.mrb[0].mxu0
    %363 = vmatprep.mubr.f32.mxu0 0.0
    %v364 = vand.u32 %v78, 4294901760
    %v365 = vsub.f32 %v78, %v364
    %366 = vmatmul.mubr.f32.gmra.mrb[0].mxu0 %v365
    %v367 = vpop.f32.mrb[0].mxu0
    %v368 = vadd.f32 %v274, %v367
    %v369 = vpop.f32.mrb[0].mxu0
    %370 = vmatprep.mubr.f32.mxu0 0.0
    %v371 = vand.u32 %v81, 4294901760
    %v372 = vsub.f32 %v81, %v371
    %373 = vmatmul.mubr.f32.gmra.mrb[0].mxu0 %v372
    %v374 = vpop.f32.mrb[0].mxu0
    %v375 = vadd.f32 %v280, %v374
    %v376 = vpop.f32.mrb[0].mxu0
    %377 = vdwg.mxu0
    %378 = vmatprep.subr.mxu0 0.0
    %v379 = vand.u32 %v64, 4294901760
    %380 = vmatpush1.msra.mxu0 %v379
    %381 = vmatprep.subr.mxu0 0.0
    %382 = vmatpush1.msra.mxu0 0.0
    %383 = vmatprep.subr.mxu0 0.0
    %384 = vmatpush1.msra.mxu0 0.0
    %385 = vmatprep.subr.mxu0 0.0
    %386 = vmatpush1.msra.mxu0 0.0
    %387 = vmatprep.subr.mxu0 0.0
    %388 = vmatpush1.msra.mxu0 0.0
    %389 = vmatprep.subr.mxu0 0.0
    %390 = vmatpush1.msra.mxu0 0.0
    %391 = vmatprep.subr.mxu0 0.0
    %392 = vmatpush1.msra.mxu0 0.0
    %393 = vmatprep.subr.mxu0 0.0
    %394 = vmatpush1.msra.mxu0 0.0
    %395 = vmatprep.subr.mxu0 0.0
    %396 = vmatpush1.msra.mxu0 0.0
    %397 = vmatprep.subr.mxu0 0.0
    %398 = vmatpush1.msra.mxu0 0.0
    %399 = vmatprep.subr.mxu0 0.0
    %400 = vmatpush1.msra.mxu0 0.0
    %401 = vmatprep.subr.mxu0 0.0
    %402 = vmatpush1.msra.mxu0 0.0
    %403 = vmatprep.subr.mxu0 0.0
    %404 = vmatpush1.msra.mxu0 0.0
    %405 = vmatprep.subr.mxu0 0.0
    %406 = vmatpush1.msra.mxu0 0.0
    %407 = vmatprep.subr.mxu0 0.0
    %408 = vmatpush1.msra.mxu0 0.0
    %409 = vmatprep.subr.mxu0 0.0
    %410 = vmatpush1.msra.mxu0 0.0
    %411 = vmatprep.subr.mxu0 0.0
    %412 = vmatpush1.msra.mxu0 0.0
    %413 = vmatprep.subr.mxu0 0.0
    %414 = vmatpush1.msra.mxu0 0.0
    %415 = vmatprep.subr.mxu0 0.0
    %416 = vmatpush1.msra.mxu0 0.0
    %417 = vmatprep.subr.mxu0 0.0
    %418 = vmatpush1.msra.mxu0 0.0
    %419 = vmatprep.subr.mxu0 0.0
    %420 = vmatpush1.msra.mxu0 0.0
    %421 = vmatprep.subr.mxu0 0.0
    %422 = vmatpush1.msra.mxu0 0.0
    %423 = vmatprep.subr.mxu0 0.0
    %424 = vmatpush1.msra.mxu0 0.0
    %425 = vmatprep.subr.mxu0 0.0
    %426 = vmatpush1.msra.mxu0 0.0
    %427 = vmatprep.subr.mxu0 0.0
    %428 = vmatpush1.msra.mxu0 0.0
    %429 = vmatprep.subr.mxu0 0.0
    %430 = vmatpush1.msra.mxu0 0.0
    %431 = vmatprep.subr.mxu0 0.0
    %432 = vmatpush1.msra.mxu0 0.0
    %433 = vmatprep.subr.mxu0 0.0
    %434 = vmatpush1.msra.mxu0 0.0
    %435 = vmatprep.subr.mxu0 0.0
    %436 = vmatpush1.msra.mxu0 0.0
    %437 = vmatprep.subr.mxu0 0.0
    %438 = vmatpush1.msra.mxu0 0.0
    %439 = vmatprep.subr.mxu0 0.0
    %440 = vmatpush1.msra.mxu0 0.0
    %441 = vmatprep.subr.mxu0 0.0
    %442 = vmatpush1.msra.mxu0 0.0
    %443 = vmatprep.mubr.f32.mxu0 0.0
    %v444 = vand.u32 %v72, 4294901760
    %v445 = vsub.f32 %v72, %v444
    %v446 = vand.u32 %v445, 4294901760
    %447 = vmatmul.mubr.f32.gmra.mrb[0].mxu0 %v446
    %v448 = vpop.f32.mrb[0].mxu0
    %v449 = vadd.f32 %v354, %v448
    %v450 = vpop.f32.mrb[0].mxu0
    %451 = vmatprep.mubr.f32.mxu0 0.0
    %v452 = vand.u32 %v75, 4294901760
    %v453 = vsub.f32 %v75, %v452
    %v454 = vand.u32 %v453, 4294901760
    %455 = vmatmul.mubr.f32.gmra.mrb[0].mxu0 %v454
    %v456 = vpop.f32.mrb[0].mxu0
    %v457 = vadd.f32 %v361, %v456
    %v458 = vpop.f32.mrb[0].mxu0
    %459 = vmatprep.mubr.f32.mxu0 0.0
    %v460 = vand.u32 %v78, 4294901760
    %v461 = vsub.f32 %v78, %v460
    %v462 = vand.u32 %v461, 4294901760
    %463 = vmatmul.mubr.f32.gmra.mrb[0].mxu0 %v462
    %v464 = vpop.f32.mrb[0].mxu0
    %v465 = vadd.f32 %v368, %v464
    %v466 = vpop.f32.mrb[0].mxu0
    %467 = vmatprep.mubr.f32.mxu0 0.0
    %v468 = vand.u32 %v81, 4294901760
    %v469 = vsub.f32 %v81, %v468
    %v470 = vand.u32 %v469, 4294901760
    %471 = vmatmul.mubr.f32.gmra.mrb[0].mxu0 %v470
    %v472 = vpop.f32.mrb[0].mxu0
    %v473 = vadd.f32 %v375, %v472
    %v474 = vpop.f32.mrb[0].mxu0
    %475 = vdwg.mxu0
    %476 = vmatprep.subr.mxu0 0.0
    %v477 = vand.u32 %v64, 4294901760
    %v478 = vsub.f32 %v64, %v477
    %v479 = vand.u32 %v478, 4294901760
    %480 = vmatpush1.msra.mxu0 %v479
    %481 = vmatprep.subr.mxu0 0.0
    %482 = vmatpush1.msra.mxu0 0.0
    %483 = vmatprep.subr.mxu0 0.0
    %484 = vmatpush1.msra.mxu0 0.0
    %485 = vmatprep.subr.mxu0 0.0
    %486 = vmatpush1.msra.mxu0 0.0
    %487 = vmatprep.subr.mxu0 0.0
    %488 = vmatpush1.msra.mxu0 0.0
    %489 = vmatprep.subr.mxu0 0.0
    %490 = vmatpush1.msra.mxu0 0.0
    %491 = vmatprep.subr.mxu0 0.0
    %492 = vmatpush1.msra.mxu0 0.0
    %493 = vmatprep.subr.mxu0 0.0
    %494 = vmatpush1.msra.mxu0 0.0
    %495 = vmatprep.subr.mxu0 0.0
    %496 = vmatpush1.msra.mxu0 0.0
    %497 = vmatprep.subr.mxu0 0.0
    %498 = vmatpush1.msra.mxu0 0.0
    %499 = vmatprep.subr.mxu0 0.0
    %500 = vmatpush1.msra.mxu0 0.0
    %501 = vmatprep.subr.mxu0 0.0
    %502 = vmatpush1.msra.mxu0 0.0
    %503 = vmatprep.subr.mxu0 0.0
    %504 = vmatpush1.msra.mxu0 0.0
    %505 = vmatprep.subr.mxu0 0.0
    %506 = vmatpush1.msra.mxu0 0.0
    %507 = vmatprep.subr.mxu0 0.0
    %508 = vmatpush1.msra.mxu0 0.0
    %509 = vmatprep.subr.mxu0 0.0
    %510 = vmatpush1.msra.mxu0 0.0
    %511 = vmatprep.subr.mxu0 0.0
    %512 = vmatpush1.msra.mxu0 0.0
    %513 = vmatprep.subr.mxu0 0.0
    %514 = vmatpush1.msra.mxu0 0.0
    %515 = vmatprep.subr.mxu0 0.0
    %516 = vmatpush1.msra.mxu0 0.0
    %517 = vmatprep.subr.mxu0 0.0
    %518 = vmatpush1.msra.mxu0 0.0
    %519 = vmatprep.subr.mxu0 0.0
    %520 = vmatpush1.msra.mxu0 0.0
    %521 = vmatprep.subr.mxu0 0.0
    %522 = vmatpush1.msra.mxu0 0.0
    %523 = vmatprep.subr.mxu0 0.0
    %524 = vmatpush1.msra.mxu0 0.0
    %525 = vmatprep.subr.mxu0 0.0
    %526 = vmatpush1.msra.mxu0 0.0
    %527 = vmatprep.subr.mxu0 0.0
    %528 = vmatpush1.msra.mxu0 0.0
    %529 = vmatprep.subr.mxu0 0.0
    %530 = vmatpush1.msra.mxu0 0.0
    %531 = vmatprep.subr.mxu0 0.0
    %532 = vmatpush1.msra.mxu0 0.0
    %533 = vmatprep.subr.mxu0 0.0
    %534 = vmatpush1.msra.mxu0 0.0
    %535 = vmatprep.subr.mxu0 0.0
    %536 = vmatpush1.msra.mxu0 0.0
    %537 = vmatprep.subr.mxu0 0.0
    %538 = vmatpush1.msra.mxu0 0.0
    %539 = vmatprep.subr.mxu0 0.0
    %540 = vmatpush1.msra.mxu0 0.0
    %541 = vmatprep.subr.mxu0 0.0
    %542 = vmatpush1.msra.mxu0 0.0
    %543 = vmatprep.mubr.f32.mxu0 0.0
    %v544 = vand.u32 %v72, 4294901760
    %545 = vmatmul.mubr.f32.gmra.mrb[0].mxu0 %v544
    %v546 = vpop.f32.mrb[0].mxu0
    %v547 = vadd.f32 %v449, %v546
    %v548 = vpop.f32.mrb[0].mxu0
    %549 = vmatprep.mubr.f32.mxu0 0.0
    %v550 = vand.u32 %v75, 4294901760
    %551 = vmatmul.mubr.f32.gmra.mrb[0].mxu0 %v550
    %v552 = vpop.f32.mrb[0].mxu0
    %v553 = vadd.f32 %v457, %v552
    %v554 = vpop.f32.mrb[0].mxu0
    %555 = vmatprep.mubr.f32.mxu0 0.0
    %v556 = vand.u32 %v78, 4294901760
    %557 = vmatmul.mubr.f32.gmra.mrb[0].mxu0 %v556
    %v558 = vpop.f32.mrb[0].mxu0
    %v559 = vadd.f32 %v465, %v558
    %v560 = vpop.f32.mrb[0].mxu0
    %561 = vmatprep.mubr.f32.mxu0 0.0
    %v562 = vand.u32 %v81, 4294901760
    %563 = vmatmul.mubr.f32.gmra.mrb[0].mxu0 %v562
    %v564 = vpop.f32.mrb[0].mxu0
    %v565 = vadd.f32 %v473, %v564
    %v566 = vpop.f32.mrb[0].mxu0
    %567 = vdwg.mxu0
    %568 = vmatprep.subr.mxu0 0.0
    %v569 = vand.u32 %v64, 4294901760
    %570 = vmatpush1.msra.mxu0 %v569
    %571 = vmatprep.subr.mxu0 0.0
    %572 = vmatpush1.msra.mxu0 0.0
    %573 = vmatprep.subr.mxu0 0.0
    %574 = vmatpush1.msra.mxu0 0.0
    %575 = vmatprep.subr.mxu0 0.0
    %576 = vmatpush1.msra.mxu0 0.0
    %577 = vmatprep.subr.mxu0 0.0
    %578 = vmatpush1.msra.mxu0 0.0
    %579 = vmatprep.subr.mxu0 0.0
    %580 = vmatpush1.msra.mxu0 0.0
    %581 = vmatprep.subr.mxu0 0.0
    %582 = vmatpush1.msra.mxu0 0.0
    %583 = vmatprep.subr.mxu0 0.0
    %584 = vmatpush1.msra.mxu0 0.0
    %585 = vmatprep.subr.mxu0 0.0
    %586 = vmatpush1.msra.mxu0 0.0
    %587 = vmatprep.subr.mxu0 0.0
    %588 = vmatpush1.msra.mxu0 0.0
    %589 = vmatprep.subr.mxu0 0.0
    %590 = vmatpush1.msra.mxu0 0.0
    %591 = vmatprep.subr.mxu0 0.0
    %592 = vmatpush1.msra.mxu0 0.0
    %593 = vmatprep.subr.mxu0 0.0
    %594 = vmatpush1.msra.mxu0 0.0
    %595 = vmatprep.subr.mxu0 0.0
    %596 = vmatpush1.msra.mxu0 0.0
    %597 = vmatprep.subr.mxu0 0.0
    %598 = vmatpush1.msra.mxu0 0.0
    %599 = vmatprep.subr.mxu0 0.0
    %600 = vmatpush1.msra.mxu0 0.0
    %601 = vmatprep.subr.mxu0 0.0
    %602 = vmatpush1.msra.mxu0 0.0
    %603 = vmatprep.subr.mxu0 0.0
    %604 = vmatpush1.msra.mxu0 0.0
    %605 = vmatprep.subr.mxu0 0.0
    %606 = vmatpush1.msra.mxu0 0.0
    %607 = vmatprep.subr.mxu0 0.0
    %608 = vmatpush1.msra.mxu0 0.0
    %609 = vmatprep.subr.mxu0 0.0
    %610 = vmatpush1.msra.mxu0 0.0
    %611 = vmatprep.subr.mxu0 0.0
    %612 = vmatpush1.msra.mxu0 0.0
    %613 = vmatprep.subr.mxu0 0.0
    %614 = vmatpush1.msra.mxu0 0.0
    %615 = vmatprep.subr.mxu0 0.0
    %616 = vmatpush1.msra.mxu0 0.0
    %617 = vmatprep.subr.mxu0 0.0
    %618 = vmatpush1.msra.mxu0 0.0
    %619 = vmatprep.subr.mxu0 0.0
    %620 = vmatpush1.msra.mxu0 0.0
    %621 = vmatprep.subr.mxu0 0.0
    %622 = vmatpush1.msra.mxu0 0.0
    %623 = vmatprep.subr.mxu0 0.0
    %624 = vmatpush1.msra.mxu0 0.0
    %625 = vmatprep.subr.mxu0 0.0
    %626 = vmatpush1.msra.mxu0 0.0
    %627 = vmatprep.subr.mxu0 0.0
    %628 = vmatpush1.msra.mxu0 0.0
    %629 = vmatprep.subr.mxu0 0.0
    %630 = vmatpush1.msra.mxu0 0.0
    %631 = vmatprep.subr.mxu0 0.0
    %632 = vmatpush1.msra.mxu0 0.0
    %633 = vmatprep.mubr.f32.mxu0 0.0
    %v634 = vand.u32 %v72, 4294901760
    %635 = vmatmul.mubr.f32.gmra.mrb[0].mxu0 %v634
    %v636 = vpop.f32.mrb[0].mxu0
    %v637 = vadd.f32 %v547, %v636
    %v638 = vpop.f32.mrb[0].mxu0
    %639 = vmatprep.mubr.f32.mxu0 0.0
    %v640 = vand.u32 %v75, 4294901760
    %641 = vmatmul.mubr.f32.gmra.mrb[0].mxu0 %v640
    %v642 = vpop.f32.mrb[0].mxu0
    %v643 = vadd.f32 %v553, %v642
    %v644 = vpop.f32.mrb[0].mxu0
    %645 = vmatprep.mubr.f32.mxu0 0.0
    %v646 = vand.u32 %v78, 4294901760
    %647 = vmatmul.mubr.f32.gmra.mrb[0].mxu0 %v646
    %v648 = vpop.f32.mrb[0].mxu0
    %v649 = vadd.f32 %v559, %v648
    %v650 = vpop.f32.mrb[0].mxu0
    %651 = vmatprep.mubr.f32.mxu0 0.0
    %v652 = vand.u32 %v81, 4294901760
    %653 = vmatmul.mubr.f32.gmra.mrb[0].mxu0 %v652
    %v654 = vpop.f32.mrb[0].mxu0
    %v655 = vadd.f32 %v565, %v654
    %v656 = vpop.f32.mrb[0].mxu0
    %657 = vdwg.mxu0
    %v658 = vmax.f32 %v637, 0.0
    %v659 = vmax.f32 %v643, 0.0
    %v660 = vmax.f32 %v649, 0.0
    %v661 = vmax.f32 %v655, 0.0
    %v666 = vrot.slane %v658, 6
    %v667 = vrot.slane %v659, 6
    %v668 = vsel %vm34, %v666, %v667
    %v669 = vrot.slane %v660, 6
    %v670 = vsel %vm34, %v667, %v669
    %v671 = vrot.slane %v661, 6
    %v672 = vsel %vm34, %v669, %v671
    %v677 = vsel %vm34, 0.0, %v666
    %678 = vrot.lane.b32.xlu0 %v658, 32
    %v679 = vpop.permute.xlu0 %678
    %680 = vrot.lane.b32.xlu0 %v659, 32
    %v681 = vpop.permute.xlu0 %680
    %682 = vrot.lane.b32.xlu0 %v660, 32
    %v683 = vpop.permute.xlu0 %682
    %684 = vrot.lane.b32.xlu0 %v661, 32
    %v685 = vpop.permute.xlu0 %684
    %vm690 = vcmask 261120
    %v691 = vsel %vm690, %v677, %v679
    %v692 = vsel %vm690, %v668, %v681
    %v693 = vsel %vm690, %v670, %v683
    %v694 = vsel %vm690, %v672, %v685
    %v695 = vld [vmem:[#allocation2 + $0x10] sm:$0xff]
    %v696 = vld [vmem:[#allocation2 + $0x18] sm:$0xff]
    %v697 = vld [vmem:[#allocation2 + $0x20] sm:$0xff]
    %v698 = vld [vmem:[#allocation2 + $0x28] sm:$0xff]
    %v699 = vld [vmem:[#allocation2 + $0x30] sm:$0xff]
    %v700 = vld [vmem:[#allocation2 + $0x38] sm:$0xff]
    %v701 = vld [vmem:[#allocation2 + $0x40] sm:$0xff]
    %v702 = vld [vmem:[#allocation2 + $0x48] sm:$0xff]
    %v703 = vld [vmem:[#allocation2 + $0x50] sm:$0x1]
    %v704 = vlaneseq
    %v705 = vshrl.u32 %v704, 7
    %v706 = vsub.s32 0, %v705
    %v707 = vrot.slane %v703, %v706
    %vm708 = vcmask 523264
    %v710 = vsel %vm708, %v691, 0
    %v713 = vsel %vm708, %v692, 0
    %v716 = vsel %vm708, %v693, 0
    %v719 = vsel %vm708, %v694, 0
    %721 = vmatprep.subr.mxu0 0.0
    %v722 = vand.u32 %v695, 4294901760
    %723 = vmatpush1.msra.mxu0 %v722
    %724 = vmatprep.subr.mxu0 0.0
    %v725 = vand.u32 %v696, 4294901760
    %726 = vmatpush1.msra.mxu0 %v725
    %727 = vmatprep.subr.mxu0 0.0
    %v728 = vand.u32 %v697, 4294901760
    %729 = vmatpush1.msra.mxu0 %v728
    %730 = vmatprep.subr.mxu0 0.0
    %v731 = vand.u32 %v698, 4294901760
    %732 = vmatpush1.msra.mxu0 %v731
    %733 = vmatprep.subr.mxu0 0.0
    %v734 = vand.u32 %v699, 4294901760
    %735 = vmatpush1.msra.mxu0 %v734
    %736 = vmatprep.subr.mxu0 0.0
    %v737 = vand.u32 %v700, 4294901760
    %738 = vmatpush1.msra.mxu0 %v737
    %739 = vmatprep.subr.mxu0 0.0
    %v740 = vand.u32 %v701, 4294901760
    %741 = vmatpush1.msra.mxu0 %v740
    %742 = vmatprep.subr.mxu0 0.0
    %v743 = vand.u32 %v702, 4294901760
    %744 = vmatpush1.msra.mxu0 %v743
    %745 = vmatprep.subr.mxu0 0.0
    %746 = vmatpush1.msra.mxu0 0.0
    %747 = vmatprep.subr.mxu0 0.0
    %748 = vmatpush1.msra.mxu0 0.0
    %749 = vmatprep.subr.mxu0 0.0
    %750 = vmatpush1.msra.mxu0 0.0
    %751 = vmatprep.subr.mxu0 0.0
    %752 = vmatpush1.msra.mxu0 0.0
    %753 = vmatprep.subr.mxu0 0.0
    %754 = vmatpush1.msra.mxu0 0.0
    %755 = vmatprep.subr.mxu0 0.0
    %756 = vmatpush1.msra.mxu0 0.0
    %757 = vmatprep.subr.mxu0 0.0
    %758 = vmatpush1.msra.mxu0 0.0
    %759 = vmatprep.subr.mxu0 0.0
    %760 = vmatpush1.msra.mxu0 0.0
    %761 = vmatprep.subr.mxu0 0.0
    %762 = vmatpush1.msra.mxu0 0.0
    %763 = vmatprep.subr.mxu0 0.0
    %764 = vmatpush1.msra.mxu0 0.0
    %765 = vmatprep.subr.mxu0 0.0
    %766 = vmatpush1.msra.mxu0 0.0
    %767 = vmatprep.subr.mxu0 0.0
    %768 = vmatpush1.msra.mxu0 0.0
    %769 = vmatprep.subr.mxu0 0.0
    %770 = vmatpush1.msra.mxu0 0.0
    %771 = vmatprep.subr.mxu0 0.0
    %772 = vmatpush1.msra.mxu0 0.0
    %773 = vmatprep.subr.mxu0 0.0
    %774 = vmatpush1.msra.mxu0 0.0
    %775 = vmatprep.subr.mxu0 0.0
    %776 = vmatpush1.msra.mxu0 0.0
    %777 = vmatprep.subr.mxu0 0.0
    %778 = vmatpush1.msra.mxu0 0.0
    %779 = vmatprep.subr.mxu0 0.0
    %780 = vmatpush1.msra.mxu0 0.0
    %781 = vmatprep.subr.mxu0 0.0
    %782 = vmatpush1.msra.mxu0 0.0
    %783 = vmatprep.subr.mxu0 0.0
    %784 = vmatpush1.msra.mxu0 0.0
    %785 = vmatprep.subr.mxu0 0.0
    %786 = vmatpush1.msra.mxu0 0.0
    %787 = vmatprep.subr.mxu0 0.0
    %788 = vmatpush1.msra.mxu0 0.0
    %789 = vmatprep.subr.mxu0 0.0
    %790 = vmatpush1.msra.mxu0 0.0
    %791 = vmatprep.subr.mxu0 0.0
    %792 = vmatpush1.msra.mxu0 0.0
    %793 = vmatprep.mubr.f32.mxu0 0.0
    %v794 = vand.u32 %v710, 4294901760
    %v795 = vsub.f32 %v710, %v794
    %v796 = vand.u32 %v795, 4294901760
    %v797 = vsub.f32 %v795, %v796
    %v798 = vand.u32 %v797, 4294901760
    %799 = vmatmul.mubr.f32.gmra.mrb[0].mxu0 %v798
    %v800 = vpop.f32.mrb[0].mxu0
    %v801 = vadd.f32 %v707, %v800
    %v802 = vpop.f32.mrb[0].mxu0
    %803 = vmatprep.mubr.f32.mxu0 0.0
    %v804 = vand.u32 %v713, 4294901760
    %v805 = vsub.f32 %v713, %v804
    %v806 = vand.u32 %v805, 4294901760
    %v807 = vsub.f32 %v805, %v806
    %v808 = vand.u32 %v807, 4294901760
    %809 = vmatmul.mubr.f32.gmra.mrb[0].mxu0 %v808
    %v810 = vpop.f32.mrb[0].mxu0
    %v811 = vadd.f32 %v707, %v810
    %v812 = vpop.f32.mrb[0].mxu0
    %813 = vmatprep.mubr.f32.mxu0 0.0
    %v814 = vand.u32 %v716, 4294901760
    %v815 = vsub.f32 %v716, %v814
    %v816 = vand.u32 %v815, 4294901760
    %v817 = vsub.f32 %v815, %v816
    %v818 = vand.u32 %v817, 4294901760
    %819 = vmatmul.mubr.f32.gmra.mrb[0].mxu0 %v818
    %v820 = vpop.f32.mrb[0].mxu0
    %v821 = vadd.f32 %v707, %v820
    %v822 = vpop.f32.mrb[0].mxu0
    %823 = vmatprep.mubr.f32.mxu0 0.0
    %v824 = vand.u32 %v719, 4294901760
    %v825 = vsub.f32 %v719, %v824
    %v826 = vand.u32 %v825, 4294901760
    %v827 = vsub.f32 %v825, %v826
    %v828 = vand.u32 %v827, 4294901760
    %829 = vmatmul.mubr.f32.gmra.mrb[0].mxu0 %v828
    %v830 = vpop.f32.mrb[0].mxu0
    %v831 = vadd.f32 %v707, %v830
    %v832 = vpop.f32.mrb[0].mxu0
    %833 = vdwg.mxu0
    %834 = vmatprep.subr.mxu0 0.0
    %v835 = vand.u32 %v695, 4294901760
    %v836 = vsub.f32 %v695, %v835
    %v837 = vand.u32 %v836, 4294901760
    %v838 = vsub.f32 %v836, %v837
    %v839 = vand.u32 %v838, 4294901760
    %840 = vmatpush1.msra.mxu0 %v839
    %841 = vmatprep.subr.mxu0 0.0
    %v842 = vand.u32 %v696, 4294901760
    %v843 = vsub.f32 %v696, %v842
    %v844 = vand.u32 %v843, 4294901760
    %v845 = vsub.f32 %v843, %v844
    %v846 = vand.u32 %v845, 4294901760
    %847 = vmatpush1.msra.mxu0 %v846
    %848 = vmatprep.subr.mxu0 0.0
    %v849 = vand.u32 %v697, 4294901760
    %v850 = vsub.f32 %v697, %v849
    %v851 = vand.u32 %v850, 4294901760
    %v852 = vsub.f32 %v850, %v851
    %v853 = vand.u32 %v852, 4294901760
    %854 = vmatpush1.msra.mxu0 %v853
    %855 = vmatprep.subr.mxu0 0.0
    %v856 = vand.u32 %v698, 4294901760
    %v857 = vsub.f32 %v698, %v856
    %v858 = vand.u32 %v857, 4294901760
    %v859 = vsub.f32 %v857, %v858
    %v860 = vand.u32 %v859, 4294901760
    %861 = vmatpush1.msra.mxu0 %v860
    %862 = vmatprep.subr.mxu0 0.0
    %v863 = vand.u32 %v699, 4294901760
    %v864 = vsub.f32 %v699, %v863
    %v865 = vand.u32 %v864, 4294901760
    %v866 = vsub.f32 %v864, %v865
    %v867 = vand.u32 %v866, 4294901760
    %868 = vmatpush1.msra.mxu0 %v867
    %869 = vmatprep.subr.mxu0 0.0
    %v870 = vand.u32 %v700, 4294901760
    %v871 = vsub.f32 %v700, %v870
    %v872 = vand.u32 %v871, 4294901760
    %v873 = vsub.f32 %v871, %v872
    %v874 = vand.u32 %v873, 4294901760
    %875 = vmatpush1.msra.mxu0 %v874
    %876 = vmatprep.subr.mxu0 0.0
    %v877 = vand.u32 %v701, 4294901760
    %v878 = vsub.f32 %v701, %v877
    %v879 = vand.u32 %v878, 4294901760
    %v880 = vsub.f32 %v878, %v879
    %v881 = vand.u32 %v880, 4294901760
    %882 = vmatpush1.msra.mxu0 %v881
    %883 = vmatprep.subr.mxu0 0.0
    %v884 = vand.u32 %v702, 4294901760
    %v885 = vsub.f32 %v702, %v884
    %v886 = vand.u32 %v885, 4294901760
    %v887 = vsub.f32 %v885, %v886
    %v888 = vand.u32 %v887, 4294901760
    %889 = vmatpush1.msra.mxu0 %v888
    %890 = vmatprep.subr.mxu0 0.0
    %891 = vmatpush1.msra.mxu0 0.0
    %892 = vmatprep.subr.mxu0 0.0
    %893 = vmatpush1.msra.mxu0 0.0
    %894 = vmatprep.subr.mxu0 0.0
    %895 = vmatpush1.msra.mxu0 0.0
    %896 = vmatprep.subr.mxu0 0.0
    %897 = vmatpush1.msra.mxu0 0.0
    %898 = vmatprep.subr.mxu0 0.0
    %899 = vmatpush1.msra.mxu0 0.0
    %900 = vmatprep.subr.mxu0 0.0
    %901 = vmatpush1.msra.mxu0 0.0
    %902 = vmatprep.subr.mxu0 0.0
    %903 = vmatpush1.msra.mxu0 0.0
    %904 = vmatprep.subr.mxu0 0.0
    %905 = vmatpush1.msra.mxu0 0.0
    %906 = vmatprep.subr.mxu0 0.0
    %907 = vmatpush1.msra.mxu0 0.0
    %908 = vmatprep.subr.mxu0 0.0
    %909 = vmatpush1.msra.mxu0 0.0
    %910 = vmatprep.subr.mxu0 0.0
    %911 = vmatpush1.msra.mxu0 0.0
    %912 = vmatprep.subr.mxu0 0.0
    %913 = vmatpush1.msra.mxu0 0.0
    %914 = vmatprep.subr.mxu0 0.0
    %915 = vmatpush1.msra.mxu0 0.0
    %916 = vmatprep.subr.mxu0 0.0
    %917 = vmatpush1.msra.mxu0 0.0
    %918 = vmatprep.subr.mxu0 0.0
    %919 = vmatpush1.msra.mxu0 0.0
    %920 = vmatprep.subr.mxu0 0.0
    %921 = vmatpush1.msra.mxu0 0.0
    %922 = vmatprep.subr.mxu0 0.0
    %923 = vmatpush1.msra.mxu0 0.0
    %924 = vmatprep.subr.mxu0 0.0
    %925 = vmatpush1.msra.mxu0 0.0
    %926 = vmatprep.subr.mxu0 0.0
    %927 = vmatpush1.msra.mxu0 0.0
    %928 = vmatprep.subr.mxu0 0.0
    %929 = vmatpush1.msra.mxu0 0.0
    %930 = vmatprep.subr.mxu0 0.0
    %931 = vmatpush1.msra.mxu0 0.0
    %932 = vmatprep.subr.mxu0 0.0
    %933 = vmatpush1.msra.mxu0 0.0
    %934 = vmatprep.subr.mxu0 0.0
    %935 = vmatpush1.msra.mxu0 0.0
    %936 = vmatprep.subr.mxu0 0.0
    %937 = vmatpush1.msra.mxu0 0.0
    %938 = vmatprep.mubr.f32.mxu0 0.0
    %v939 = vand.u32 %v710, 4294901760
    %940 = vmatmul.mubr.f32.gmra.mrb[0].mxu0 %v939
    %v941 = vpop.f32.mrb[0].mxu0
    %v942 = vadd.f32 %v801, %v941
    %v943 = vpop.f32.mrb[0].mxu0
    %944 = vmatprep.mubr.f32.mxu0 0.0
    %v945 = vand.u32 %v713, 4294901760
    %946 = vmatmul.mubr.f32.gmra.mrb[0].mxu0 %v945
    %v947 = vpop.f32.mrb[0].mxu0
    %v948 = vadd.f32 %v811, %v947
    %v949 = vpop.f32.mrb[0].mxu0
    %950 = vmatprep.mubr.f32.mxu0 0.0
    %v951 = vand.u32 %v716, 4294901760
    %952 = vmatmul.mubr.f32.gmra.mrb[0].mxu0 %v951
    %v953 = vpop.f32.mrb[0].mxu0
    %v954 = vadd.f32 %v821, %v953
    %v955 = vpop.f32.mrb[0].mxu0
    %956 = vmatprep.mubr.f32.mxu0 0.0
    %v957 = vand.u32 %v719, 4294901760
    %958 = vmatmul.mubr.f32.gmra.mrb[0].mxu0 %v957
    %v959 = vpop.f32.mrb[0].mxu0
    %v960 = vadd.f32 %v831, %v959
    %v961 = vpop.f32.mrb[0].mxu0
    %962 = vdwg.mxu0
    %963 = vmatprep.subr.mxu0 0.0
    %v964 = vand.u32 %v695, 4294901760
    %v965 = vsub.f32 %v695, %v964
    %966 = vmatpush1.msra.mxu0 %v965
    %967 = vmatprep.subr.mxu0 0.0
    %v968 = vand.u32 %v696, 4294901760
    %v969 = vsub.f32 %v696, %v968
    %970 = vmatpush1.msra.mxu0 %v969
    %971 = vmatprep.subr.mxu0 0.0
    %v972 = vand.u32 %v697, 4294901760
    %v973 = vsub.f32 %v697, %v972
    %974 = vmatpush1.msra.mxu0 %v973
    %975 = vmatprep.subr.mxu0 0.0
    %v976 = vand.u32 %v698, 4294901760
    %v977 = vsub.f32 %v698, %v976
    %978 = vmatpush1.msra.mxu0 %v977
    %979 = vmatprep.subr.mxu0 0.0
    %v980 = vand.u32 %v699, 4294901760
    %v981 = vsub.f32 %v699, %v980
    %982 = vmatpush1.msra.mxu0 %v981
    %983 = vmatprep.subr.mxu0 0.0
    %v984 = vand.u32 %v700, 4294901760
    %v985 = vsub.f32 %v700, %v984
    %986 = vmatpush1.msra.mxu0 %v985
    %987 = vmatprep.subr.mxu0 0.0
    %v988 = vand.u32 %v701, 4294901760
    %v989 = vsub.f32 %v701, %v988
    %990 = vmatpush1.msra.mxu0 %v989
    %991 = vmatprep.subr.mxu0 0.0
    %v992 = vand.u32 %v702, 4294901760
    %v993 = vsub.f32 %v702, %v992
    %994 = vmatpush1.msra.mxu0 %v993
    %995 = vmatprep.subr.mxu0 0.0
    %996 = vmatpush1.msra.mxu0 0.0
    %997 = vmatprep.subr.mxu0 0.0
    %998 = vmatpush1.msra.mxu0 0.0
    %999 = vmatprep.subr.mxu0 0.0
    %1000 = vmatpush1.msra.mxu0 0.0
    %1001 = vmatprep.subr.mxu0 0.0
    %1002 = vmatpush1.msra.mxu0 0.0
    %1003 = vmatprep.subr.mxu0 0.0
    %1004 = vmatpush1.msra.mxu0 0.0
    %1005 = vmatprep.subr.mxu0 0.0
    %1006 = vmatpush1.msra.mxu0 0.0
    %1007 = vmatprep.subr.mxu0 0.0
    %1008 = vmatpush1.msra.mxu0 0.0
    %1009 = vmatprep.subr.mxu0 0.0
    %1010 = vmatpush1.msra.mxu0 0.0
    %1011 = vmatprep.subr.mxu0 0.0
    %1012 = vmatpush1.msra.mxu0 0.0
    %1013 = vmatprep.subr.mxu0 0.0
    %1014 = vmatpush1.msra.mxu0 0.0
    %1015 = vmatprep.subr.mxu0 0.0
    %1016 = vmatpush1.msra.mxu0 0.0
    %1017 = vmatprep.subr.mxu0 0.0
    %1018 = vmatpush1.msra.mxu0 0.0
    %1019 = vmatprep.subr.mxu0 0.0
    %1020 = vmatpush1.msra.mxu0 0.0
    %1021 = vmatprep.subr.mxu0 0.0
    %1022 = vmatpush1.msra.mxu0 0.0
    %1023 = vmatprep.subr.mxu0 0.0
    %1024 = vmatpush1.msra.mxu0 0.0
    %1025 = vmatprep.subr.mxu0 0.0
    %1026 = vmatpush1.msra.mxu0 0.0
    %1027 = vmatprep.subr.mxu0 0.0
    %1028 = vmatpush1.msra.mxu0 0.0
    %1029 = vmatprep.subr.mxu0 0.0
    %1030 = vmatpush1.msra.mxu0 0.0
    %1031 = vmatprep.subr.mxu0 0.0
    %1032 = vmatpush1.msra.mxu0 0.0
    %1033 = vmatprep.subr.mxu0 0.0
    %1034 = vmatpush1.msra.mxu0 0.0
    %1035 = vmatprep.subr.mxu0 0.0
    %1036 = vmatpush1.msra.mxu0 0.0
    %1037 = vmatprep.subr.mxu0 0.0
    %1038 = vmatpush1.msra.mxu0 0.0
    %1039 = vmatprep.subr.mxu0 0.0
    %1040 = vmatpush1.msra.mxu0 0.0
    %1041 = vmatprep.subr.mxu0 0.0
    %1042 = vmatpush1.msra.mxu0 0.0
    %1043 = vmatprep.mubr.f32.mxu0 0.0
    %v1044 = vand.u32 %v710, 4294901760
    %v1045 = vsub.f32 %v710, %v1044
    %1046 = vmatmul.mubr.f32.gmra.mrb[0].mxu0 %v1045
    %v1047 = vpop.f32.mrb[0].mxu0
    %v1048 = vadd.f32 %v942, %v1047
    %v1049 = vpop.f32.mrb[0].mxu0
    %1050 = vmatprep.mubr.f32.mxu0 0.0
    %v1051 = vand.u32 %v713, 4294901760
    %v1052 = vsub.f32 %v713, %v1051
    %1053 = vmatmul.mubr.f32.gmra.mrb[0].mxu0 %v1052
    %v1054 = vpop.f32.mrb[0].mxu0
    %v1055 = vadd.f32 %v948, %v1054
    %v1056 = vpop.f32.mrb[0].mxu0
    %1057 = vmatprep.mubr.f32.mxu0 0.0
    %v1058 = vand.u32 %v716, 4294901760
    %v1059 = vsub.f32 %v716, %v1058
    %1060 = vmatmul.mubr.f32.gmra.mrb[0].mxu0 %v1059
    %v1061 = vpop.f32.mrb[0].mxu0
    %v1062 = vadd.f32 %v954, %v1061
    %v1063 = vpop.f32.mrb[0].mxu0
    %1064 = vmatprep.mubr.f32.mxu0 0.0
    %v1065 = vand.u32 %v719, 4294901760
    %v1066 = vsub.f32 %v719, %v1065
    %1067 = vmatmul.mubr.f32.gmra.mrb[0].mxu0 %v1066
    %v1068 = vpop.f32.mrb[0].mxu0
    %v1069 = vadd.f32 %v960, %v1068
    %v1070 = vpop.f32.mrb[0].mxu0
    %1071 = vdwg.mxu0
    %1072 = vmatprep.subr.mxu0 0.0
    %v1073 = vand.u32 %v695, 4294901760
    %1074 = vmatpush1.msra.mxu0 %v1073
    %1075 = vmatprep.subr.mxu0 0.0
    %v1076 = vand.u32 %v696, 4294901760
    %1077 = vmatpush1.msra.mxu0 %v1076
    %1078 = vmatprep.subr.mxu0 0.0
    %v1079 = vand.u32 %v697, 4294901760
    %1080 = vmatpush1.msra.mxu0 %v1079
    %1081 = vmatprep.subr.mxu0 0.0
    %v1082 = vand.u32 %v698, 4294901760
    %1083 = vmatpush1.msra.mxu0 %v1082
    %1084 = vmatprep.subr.mxu0 0.0
    %v1085 = vand.u32 %v699, 4294901760
    %1086 = vmatpush1.msra.mxu0 %v1085
    %1087 = vmatprep.subr.mxu0 0.0
    %v1088 = vand.u32 %v700, 4294901760
    %1089 = vmatpush1.msra.mxu0 %v1088
    %1090 = vmatprep.subr.mxu0 0.0
    %v1091 = vand.u32 %v701, 4294901760
    %1092 = vmatpush1.msra.mxu0 %v1091
    %1093 = vmatprep.subr.mxu0 0.0
    %v1094 = vand.u32 %v702, 4294901760
    %1095 = vmatpush1.msra.mxu0 %v1094
    %1096 = vmatprep.subr.mxu0 0.0
    %1097 = vmatpush1.msra.mxu0 0.0
    %1098 = vmatprep.subr.mxu0 0.0
    %1099 = vmatpush1.msra.mxu0 0.0
    %1100 = vmatprep.subr.mxu0 0.0
    %1101 = vmatpush1.msra.mxu0 0.0
    %1102 = vmatprep.subr.mxu0 0.0
    %1103 = vmatpush1.msra.mxu0 0.0
    %1104 = vmatprep.subr.mxu0 0.0
    %1105 = vmatpush1.msra.mxu0 0.0
    %1106 = vmatprep.subr.mxu0 0.0
    %1107 = vmatpush1.msra.mxu0 0.0
    %1108 = vmatprep.subr.mxu0 0.0
    %1109 = vmatpush1.msra.mxu0 0.0
    %1110 = vmatprep.subr.mxu0 0.0
    %1111 = vmatpush1.msra.mxu0 0.0
    %1112 = vmatprep.subr.mxu0 0.0
    %1113 = vmatpush1.msra.mxu0 0.0
    %1114 = vmatprep.subr.mxu0 0.0
    %1115 = vmatpush1.msra.mxu0 0.0
    %1116 = vmatprep.subr.mxu0 0.0
    %1117 = vmatpush1.msra.mxu0 0.0
    %1118 = vmatprep.subr.mxu0 0.0
    %1119 = vmatpush1.msra.mxu0 0.0
    %1120 = vmatprep.subr.mxu0 0.0
    %1121 = vmatpush1.msra.mxu0 0.0
    %1122 = vmatprep.subr.mxu0 0.0
    %1123 = vmatpush1.msra.mxu0 0.0
    %1124 = vmatprep.subr.mxu0 0.0
    %1125 = vmatpush1.msra.mxu0 0.0
    %1126 = vmatprep.subr.mxu0 0.0
    %1127 = vmatpush1.msra.mxu0 0.0
    %1128 = vmatprep.subr.mxu0 0.0
    %1129 = vmatpush1.msra.mxu0 0.0
    %1130 = vmatprep.subr.mxu0 0.0
    %1131 = vmatpush1.msra.mxu0 0.0
    %1132 = vmatprep.subr.mxu0 0.0
    %1133 = vmatpush1.msra.mxu0 0.0
    %1134 = vmatprep.subr.mxu0 0.0
    %1135 = vmatpush1.msra.mxu0 0.0
    %1136 = vmatprep.subr.mxu0 0.0
    %1137 = vmatpush1.msra.mxu0 0.0
    %1138 = vmatprep.subr.mxu0 0.0
    %1139 = vmatpush1.msra.mxu0 0.0
    %1140 = vmatprep.subr.mxu0 0.0
    %1141 = vmatpush1.msra.mxu0 0.0
    %1142 = vmatprep.subr.mxu0 0.0
    %1143 = vmatpush1.msra.mxu0 0.0
    %1144 = vmatprep.mubr.f32.mxu0 0.0
    %v1145 = vand.u32 %v710, 4294901760
    %v1146 = vsub.f32 %v710, %v1145
    %v1147 = vand.u32 %v1146, 4294901760
    %1148 = vmatmul.mubr.f32.gmra.mrb[0].mxu0 %v1147
    %v1149 = vpop.f32.mrb[0].mxu0
    %v1150 = vadd.f32 %v1048, %v1149
    %v1151 = vpop.f32.mrb[0].mxu0
    %1152 = vmatprep.mubr.f32.mxu0 0.0
    %v1153 = vand.u32 %v713, 4294901760
    %v1154 = vsub.f32 %v713, %v1153
    %v1155 = vand.u32 %v1154, 4294901760
    %1156 = vmatmul.mubr.f32.gmra.mrb[0].mxu0 %v1155
    %v1157 = vpop.f32.mrb[0].mxu0
    %v1158 = vadd.f32 %v1055, %v1157
    %v1159 = vpop.f32.mrb[0].mxu0
    %1160 = vmatprep.mubr.f32.mxu0 0.0
    %v1161 = vand.u32 %v716, 4294901760
    %v1162 = vsub.f32 %v716, %v1161
    %v1163 = vand.u32 %v1162, 4294901760
    %1164 = vmatmul.mubr.f32.gmra.mrb[0].mxu0 %v1163
    %v1165 = vpop.f32.mrb[0].mxu0
    %v1166 = vadd.f32 %v1062, %v1165
    %v1167 = vpop.f32.mrb[0].mxu0
    %1168 = vmatprep.mubr.f32.mxu0 0.0
    %v1169 = vand.u32 %v719, 4294901760
    %v1170 = vsub.f32 %v719, %v1169
    %v1171 = vand.u32 %v1170, 4294901760
    %1172 = vmatmul.mubr.f32.gmra.mrb[0].mxu0 %v1171
    %v1173 = vpop.f32.mrb[0].mxu0
    %v1174 = vadd.f32 %v1069, %v1173
    %v1175 = vpop.f32.mrb[0].mxu0
    %1176 = vdwg.mxu0
    %1177 = vmatprep.subr.mxu0 0.0
    %v1178 = vand.u32 %v695, 4294901760
    %v1179 = vsub.f32 %v695, %v1178
    %v1180 = vand.u32 %v1179, 4294901760
    %1181 = vmatpush1.msra.mxu0 %v1180
    %1182 = vmatprep.subr.mxu0 0.0
    %v1183 = vand.u32 %v696, 4294901760
    %v1184 = vsub.f32 %v696, %v1183
    %v1185 = vand.u32 %v1184, 4294901760
    %1186 = vmatpush1.msra.mxu0 %v1185
    %1187 = vmatprep.subr.mxu0 0.0
    %v1188 = vand.u32 %v697, 4294901760
    %v1189 = vsub.f32 %v697, %v1188
    %v1190 = vand.u32 %v1189, 4294901760
    %1191 = vmatpush1.msra.mxu0 %v1190
    %1192 = vmatprep.subr.mxu0 0.0
    %v1193 = vand.u32 %v698, 4294901760
    %v1194 = vsub.f32 %v698, %v1193
    %v1195 = vand.u32 %v1194, 4294901760
    %1196 = vmatpush1.msra.mxu0 %v1195
    %1197 = vmatprep.subr.mxu0 0.0
    %v1198 = vand.u32 %v699, 4294901760
    %v1199 = vsub.f32 %v699, %v1198
    %v1200 = vand.u32 %v1199, 4294901760
    %1201 = vmatpush1.msra.mxu0 %v1200
    %1202 = vmatprep.subr.mxu0 0.0
    %v1203 = vand.u32 %v700, 4294901760
    %v1204 = vsub.f32 %v700, %v1203
    %v1205 = vand.u32 %v1204, 4294901760
    %1206 = vmatpush1.msra.mxu0 %v1205
    %1207 = vmatprep.subr.mxu0 0.0
    %v1208 = vand.u32 %v701, 4294901760
    %v1209 = vsub.f32 %v701, %v1208
    %v1210 = vand.u32 %v1209, 4294901760
    %1211 = vmatpush1.msra.mxu0 %v1210
    %1212 = vmatprep.subr.mxu0 0.0
    %v1213 = vand.u32 %v702, 4294901760
    %v1214 = vsub.f32 %v702, %v1213
    %v1215 = vand.u32 %v1214, 4294901760
    %1216 = vmatpush1.msra.mxu0 %v1215
    %1217 = vmatprep.subr.mxu0 0.0
    %1218 = vmatpush1.msra.mxu0 0.0
    %1219 = vmatprep.subr.mxu0 0.0
    %1220 = vmatpush1.msra.mxu0 0.0
    %1221 = vmatprep.subr.mxu0 0.0
    %1222 = vmatpush1.msra.mxu0 0.0
    %1223 = vmatprep.subr.mxu0 0.0
    %1224 = vmatpush1.msra.mxu0 0.0
    %1225 = vmatprep.subr.mxu0 0.0
    %1226 = vmatpush1.msra.mxu0 0.0
    %1227 = vmatprep.subr.mxu0 0.0
    %1228 = vmatpush1.msra.mxu0 0.0
    %1229 = vmatprep.subr.mxu0 0.0
    %1230 = vmatpush1.msra.mxu0 0.0
    %1231 = vmatprep.subr.mxu0 0.0
    %1232 = vmatpush1.msra.mxu0 0.0
    %1233 = vmatprep.subr.mxu0 0.0
    %1234 = vmatpush1.msra.mxu0 0.0
    %1235 = vmatprep.subr.mxu0 0.0
    %1236 = vmatpush1.msra.mxu0 0.0
    %1237 = vmatprep.subr.mxu0 0.0
    %1238 = vmatpush1.msra.mxu0 0.0
    %1239 = vmatprep.subr.mxu0 0.0
    %1240 = vmatpush1.msra.mxu0 0.0
    %1241 = vmatprep.subr.mxu0 0.0
    %1242 = vmatpush1.msra.mxu0 0.0
    %1243 = vmatprep.subr.mxu0 0.0
    %1244 = vmatpush1.msra.mxu0 0.0
    %1245 = vmatprep.subr.mxu0 0.0
    %1246 = vmatpush1.msra.mxu0 0.0
    %1247 = vmatprep.subr.mxu0 0.0
    %1248 = vmatpush1.msra.mxu0 0.0
    %1249 = vmatprep.subr.mxu0 0.0
    %1250 = vmatpush1.msra.mxu0 0.0
    %1251 = vmatprep.subr.mxu0 0.0
    %1252 = vmatpush1.msra.mxu0 0.0
    %1253 = vmatprep.subr.mxu0 0.0
    %1254 = vmatpush1.msra.mxu0 0.0
    %1255 = vmatprep.subr.mxu0 0.0
    %1256 = vmatpush1.msra.mxu0 0.0
    %1257 = vmatprep.subr.mxu0 0.0
    %1258 = vmatpush1.msra.mxu0 0.0
    %1259 = vmatprep.subr.mxu0 0.0
    %1260 = vmatpush1.msra.mxu0 0.0
    %1261 = vmatprep.subr.mxu0 0.0
    %1262 = vmatpush1.msra.mxu0 0.0
    %1263 = vmatprep.subr.mxu0 0.0
    %1264 = vmatpush1.msra.mxu0 0.0
    %1265 = vmatprep.mubr.f32.mxu0 0.0
    %v1266 = vand.u32 %v710, 4294901760
    %1267 = vmatmul.mubr.f32.gmra.mrb[0].mxu0 %v1266
    %v1268 = vpop.f32.mrb[0].mxu0
    %v1269 = vadd.f32 %v1150, %v1268
    %v1270 = vpop.f32.mrb[0].mxu0
    %1271 = vmatprep.mubr.f32.mxu0 0.0
    %v1272 = vand.u32 %v713, 4294901760
    %1273 = vmatmul.mubr.f32.gmra.mrb[0].mxu0 %v1272
    %v1274 = vpop.f32.mrb[0].mxu0
    %v1275 = vadd.f32 %v1158, %v1274
    %v1276 = vpop.f32.mrb[0].mxu0
    %1277 = vmatprep.mubr.f32.mxu0 0.0
    %v1278 = vand.u32 %v716, 4294901760
    %1279 = vmatmul.mubr.f32.gmra.mrb[0].mxu0 %v1278
    %v1280 = vpop.f32.mrb[0].mxu0
    %v1281 = vadd.f32 %v1166, %v1280
    %v1282 = vpop.f32.mrb[0].mxu0
    %1283 = vmatprep.mubr.f32.mxu0 0.0
    %v1284 = vand.u32 %v719, 4294901760
    %1285 = vmatmul.mubr.f32.gmra.mrb[0].mxu0 %v1284
    %v1286 = vpop.f32.mrb[0].mxu0
    %v1287 = vadd.f32 %v1174, %v1286
    %v1288 = vpop.f32.mrb[0].mxu0
    %1289 = vdwg.mxu0
    %1290 = vmatprep.subr.mxu0 0.0
    %v1291 = vand.u32 %v695, 4294901760
    %1292 = vmatpush1.msra.mxu0 %v1291
    %1293 = vmatprep.subr.mxu0 0.0
    %v1294 = vand.u32 %v696, 4294901760
    %1295 = vmatpush1.msra.mxu0 %v1294
    %1296 = vmatprep.subr.mxu0 0.0
    %v1297 = vand.u32 %v697, 4294901760
    %1298 = vmatpush1.msra.mxu0 %v1297
    %1299 = vmatprep.subr.mxu0 0.0
    %v1300 = vand.u32 %v698, 4294901760
    %1301 = vmatpush1.msra.mxu0 %v1300
    %1302 = vmatprep.subr.mxu0 0.0
    %v1303 = vand.u32 %v699, 4294901760
    %1304 = vmatpush1.msra.mxu0 %v1303
    %1305 = vmatprep.subr.mxu0 0.0
    %v1306 = vand.u32 %v700, 4294901760
    %1307 = vmatpush1.msra.mxu0 %v1306
    %1308 = vmatprep.subr.mxu0 0.0
    %v1309 = vand.u32 %v701, 4294901760
    %1310 = vmatpush1.msra.mxu0 %v1309
    %1311 = vmatprep.subr.mxu0 0.0
    %v1312 = vand.u32 %v702, 4294901760
    %1313 = vmatpush1.msra.mxu0 %v1312
    %1314 = vmatprep.subr.mxu0 0.0
    %1315 = vmatpush1.msra.mxu0 0.0
    %1316 = vmatprep.subr.mxu0 0.0
    %1317 = vmatpush1.msra.mxu0 0.0
    %1318 = vmatprep.subr.mxu0 0.0
    %1319 = vmatpush1.msra.mxu0 0.0
    %1320 = vmatprep.subr.mxu0 0.0
    %1321 = vmatpush1.msra.mxu0 0.0
    %1322 = vmatprep.subr.mxu0 0.0
    %1323 = vmatpush1.msra.mxu0 0.0
    %1324 = vmatprep.subr.mxu0 0.0
    %1325 = vmatpush1.msra.mxu0 0.0
    %1326 = vmatprep.subr.mxu0 0.0
    %1327 = vmatpush1.msra.mxu0 0.0
    %1328 = vmatprep.subr.mxu0 0.0
    %1329 = vmatpush1.msra.mxu0 0.0
    %1330 = vmatprep.subr.mxu0 0.0
    %1331 = vmatpush1.msra.mxu0 0.0
    %1332 = vmatprep.subr.mxu0 0.0
    %1333 = vmatpush1.msra.mxu0 0.0
    %1334 = vmatprep.subr.mxu0 0.0
    %1335 = vmatpush1.msra.mxu0 0.0
    %1336 = vmatprep.subr.mxu0 0.0
    %1337 = vmatpush1.msra.mxu0 0.0
    %1338 = vmatprep.subr.mxu0 0.0
    %1339 = vmatpush1.msra.mxu0 0.0
    %1340 = vmatprep.subr.mxu0 0.0
    %1341 = vmatpush1.msra.mxu0 0.0
    %1342 = vmatprep.subr.mxu0 0.0
    %1343 = vmatpush1.msra.mxu0 0.0
    %1344 = vmatprep.subr.mxu0 0.0
    %1345 = vmatpush1.msra.mxu0 0.0
    %1346 = vmatprep.subr.mxu0 0.0
    %1347 = vmatpush1.msra.mxu0 0.0
    %1348 = vmatprep.subr.mxu0 0.0
    %1349 = vmatpush1.msra.mxu0 0.0
    %1350 = vmatprep.subr.mxu0 0.0
    %1351 = vmatpush1.msra.mxu0 0.0
    %1352 = vmatprep.subr.mxu0 0.0
    %1353 = vmatpush1.msra.mxu0 0.0
    %1354 = vmatprep.subr.mxu0 0.0
    %1355 = vmatpush1.msra.mxu0 0.0
    %1356 = vmatprep.subr.mxu0 0.0
    %1357 = vmatpush1.msra.mxu0 0.0
    %1358 = vmatprep.subr.mxu0 0.0
    %1359 = vmatpush1.msra.mxu0 0.0
    %1360 = vmatprep.subr.mxu0 0.0
    %1361 = vmatpush1.msra.mxu0 0.0
    %1362 = vmatprep.mubr.f32.mxu0 0.0
    %v1363 = vand.u32 %v710, 4294901760
    %1364 = vmatmul.mubr.f32.gmra.mrb[0].mxu0 %v1363
    %v1365 = vpop.f32.mrb[0].mxu0
    %v1366 = vadd.f32 %v1269, %v1365
    %v1367 = vpop.f32.mrb[0].mxu0
    %1368 = vmatprep.mubr.f32.mxu0 0.0
    %v1369 = vand.u32 %v713, 4294901760
    %1370 = vmatmul.mubr.f32.gmra.mrb[0].mxu0 %v1369
    %v1371 = vpop.f32.mrb[0].mxu0
    %v1372 = vadd.f32 %v1275, %v1371
    %v1373 = vpop.f32.mrb[0].mxu0
    %1374 = vmatprep.mubr.f32.mxu0 0.0
    %v1375 = vand.u32 %v716, 4294901760
    %1376 = vmatmul.mubr.f32.gmra.mrb[0].mxu0 %v1375
    %v1377 = vpop.f32.mrb[0].mxu0
    %v1378 = vadd.f32 %v1281, %v1377
    %v1379 = vpop.f32.mrb[0].mxu0
    %1380 = vmatprep.mubr.f32.mxu0 0.0
    %v1381 = vand.u32 %v719, 4294901760
    %1382 = vmatmul.mubr.f32.gmra.mrb[0].mxu0 %v1381
    %v1383 = vpop.f32.mrb[0].mxu0
    %v1384 = vadd.f32 %v1287, %v1383
    %v1385 = vpop.f32.mrb[0].mxu0
    %1386 = vdwg.mxu0
    %v1387 = vmax.f32 %v1366, 0.0
    %v1388 = vmax.f32 %v1372, 0.0
    %v1389 = vmax.f32 %v1378, 0.0
    %v1390 = vmax.f32 %v1384, 0.0
    %v1391 = vld [vmem:[#allocation2 + $0x58] sm:$0xf]
    %v1392 = vld [vmem:[#allocation2 + $0x60] sm:$0x1]
    %v1393 = vlaneseq
    %v1394 = vshrl.u32 %v1393, 7
    %v1395 = vsub.s32 0, %v1394
    %v1396 = vrot.slane %v1392, %v1395
    %v1397 = vsel %vm59, %v26, 0
    %v1399 = vsel %vm59, %v27, 0
    %v1401 = vsel %vm59, %v28, 0
    %v1403 = vsel %vm59, %v29, 0
    %vm1405 = vcmask 1043456
    %v1407 = vsel %vm1405, %v1391, 0
    %1409 = vmatprep.subr.mxu0 0.0
    %v1410 = vand.u32 %v1407, 4294901760
    %1411 = vmatpush1.msra.mxu0 %v1410
    %1412 = vmatprep.subr.mxu0 0.0
    %1413 = vmatpush1.msra.mxu0 0.0
    %1414 = vmatprep.subr.mxu0 0.0
    %1415 = vmatpush1.msra.mxu0 0.0
    %1416 = vmatprep.subr.mxu0 0.0
    %1417 = vmatpush1.msra.mxu0 0.0
    %1418 = vmatprep.subr.mxu0 0.0
    %1419 = vmatpush1.msra.mxu0 0.0
    %1420 = vmatprep.subr.mxu0 0.0
    %1421 = vmatpush1.msra.mxu0 0.0
    %1422 = vmatprep.subr.mxu0 0.0
    %1423 = vmatpush1.msra.mxu0 0.0
    %1424 = vmatprep.subr.mxu0 0.0
    %1425 = vmatpush1.msra.mxu0 0.0
    %1426 = vmatprep.subr.mxu0 0.0
    %1427 = vmatpush1.msra.mxu0 0.0
    %1428 = vmatprep.subr.mxu0 0.0
    %1429 = vmatpush1.msra.mxu0 0.0
    %1430 = vmatprep.subr.mxu0 0.0
    %1431 = vmatpush1.msra.mxu0 0.0
    %1432 = vmatprep.subr.mxu0 0.0
    %1433 = vmatpush1.msra.mxu0 0.0
    %1434 = vmatprep.subr.mxu0 0.0
    %1435 = vmatpush1.msra.mxu0 0.0
    %1436 = vmatprep.subr.mxu0 0.0
    %1437 = vmatpush1.msra.mxu0 0.0
    %1438 = vmatprep.subr.mxu0 0.0
    %1439 = vmatpush1.msra.mxu0 0.0
    %1440 = vmatprep.subr.mxu0 0.0
    %1441 = vmatpush1.msra.mxu0 0.0
    %1442 = vmatprep.subr.mxu0 0.0
    %1443 = vmatpush1.msra.mxu0 0.0
    %1444 = vmatprep.subr.mxu0 0.0
    %1445 = vmatpush1.msra.mxu0 0.0
    %1446 = vmatprep.subr.mxu0 0.0
    %1447 = vmatpush1.msra.mxu0 0.0
    %1448 = vmatprep.subr.mxu0 0.0
    %1449 = vmatpush1.msra.mxu0 0.0
    %1450 = vmatprep.subr.mxu0 0.0
    %1451 = vmatpush1.msra.mxu0 0.0
    %1452 = vmatprep.subr.mxu0 0.0
    %1453 = vmatpush1.msra.mxu0 0.0
    %1454 = vmatprep.subr.mxu0 0.0
    %1455 = vmatpush1.msra.mxu0 0.0
    %1456 = vmatprep.subr.mxu0 0.0
    %1457 = vmatpush1.msra.mxu0 0.0
    %1458 = vmatprep.subr.mxu0 0.0
    %1459 = vmatpush1.msra.mxu0 0.0
    %1460 = vmatprep.subr.mxu0 0.0
    %1461 = vmatpush1.msra.mxu0 0.0
    %1462 = vmatprep.subr.mxu0 0.0
    %1463 = vmatpush1.msra.mxu0 0.0
    %1464 = vmatprep.subr.mxu0 0.0
    %1465 = vmatpush1.msra.mxu0 0.0
    %1466 = vmatprep.subr.mxu0 0.0
    %1467 = vmatpush1.msra.mxu0 0.0
    %1468 = vmatprep.subr.mxu0 0.0
    %1469 = vmatpush1.msra.mxu0 0.0
    %1470 = vmatprep.subr.mxu0 0.0
    %1471 = vmatpush1.msra.mxu0 0.0
    %1472 = vmatprep.subr.mxu0 0.0
    %1473 = vmatpush1.msra.mxu0 0.0
    %1474 = vmatprep.mubr.f32.mxu0 0.0
    %v1475 = vand.u32 %v1397, 4294901760
    %v1476 = vsub.f32 %v1397, %v1475
    %v1477 = vand.u32 %v1476, 4294901760
    %v1478 = vsub.f32 %v1476, %v1477
    %v1479 = vand.u32 %v1478, 4294901760
    %1480 = vmatmul.mubr.f32.gmra.mrb[0].mxu0 %v1479
    %v1481 = vpop.f32.mrb[0].mxu0
    %v1482 = vadd.f32 %v1396, %v1481
    %v1483 = vpop.f32.mrb[0].mxu0
    %1484 = vmatprep.mubr.f32.mxu0 0.0
    %v1485 = vand.u32 %v1399, 4294901760
    %v1486 = vsub.f32 %v1399, %v1485
    %v1487 = vand.u32 %v1486, 4294901760
    %v1488 = vsub.f32 %v1486, %v1487
    %v1489 = vand.u32 %v1488, 4294901760
    %1490 = vmatmul.mubr.f32.gmra.mrb[0].mxu0 %v1489
    %v1491 = vpop.f32.mrb[0].mxu0
    %v1492 = vadd.f32 %v1396, %v1491
    %v1493 = vpop.f32.mrb[0].mxu0
    %1494 = vmatprep.mubr.f32.mxu0 0.0
    %v1495 = vand.u32 %v1401, 4294901760
    %v1496 = vsub.f32 %v1401, %v1495
    %v1497 = vand.u32 %v1496, 4294901760
    %v1498 = vsub.f32 %v1496, %v1497
    %v1499 = vand.u32 %v1498, 4294901760
    %1500 = vmatmul.mubr.f32.gmra.mrb[0].mxu0 %v1499
    %v1501 = vpop.f32.mrb[0].mxu0
    %v1502 = vadd.f32 %v1396, %v1501
    %v1503 = vpop.f32.mrb[0].mxu0
    %1504 = vmatprep.mubr.f32.mxu0 0.0
    %v1505 = vand.u32 %v1403, 4294901760
    %v1506 = vsub.f32 %v1403, %v1505
    %v1507 = vand.u32 %v1506, 4294901760
    %v1508 = vsub.f32 %v1506, %v1507
    %v1509 = vand.u32 %v1508, 4294901760
    %1510 = vmatmul.mubr.f32.gmra.mrb[0].mxu0 %v1509
    %v1511 = vpop.f32.mrb[0].mxu0
    %v1512 = vadd.f32 %v1396, %v1511
    %v1513 = vpop.f32.mrb[0].mxu0
    %1514 = vdwg.mxu0
    %1515 = vmatprep.subr.mxu0 0.0
    %v1516 = vand.u32 %v1407, 4294901760
    %v1517 = vsub.f32 %v1407, %v1516
    %v1518 = vand.u32 %v1517, 4294901760
    %v1519 = vsub.f32 %v1517, %v1518
    %v1520 = vand.u32 %v1519, 4294901760
    %1521 = vmatpush1.msra.mxu0 %v1520
    %1522 = vmatprep.subr.mxu0 0.0
    %1523 = vmatpush1.msra.mxu0 0.0
    %1524 = vmatprep.subr.mxu0 0.0
    %1525 = vmatpush1.msra.mxu0 0.0
    %1526 = vmatprep.subr.mxu0 0.0
    %1527 = vmatpush1.msra.mxu0 0.0
    %1528 = vmatprep.subr.mxu0 0.0
    %1529 = vmatpush1.msra.mxu0 0.0
    %1530 = vmatprep.subr.mxu0 0.0
    %1531 = vmatpush1.msra.mxu0 0.0
    %1532 = vmatprep.subr.mxu0 0.0
    %1533 = vmatpush1.msra.mxu0 0.0
    %1534 = vmatprep.subr.mxu0 0.0
    %1535 = vmatpush1.msra.mxu0 0.0
    %1536 = vmatprep.subr.mxu0 0.0
    %1537 = vmatpush1.msra.mxu0 0.0
    %1538 = vmatprep.subr.mxu0 0.0
    %1539 = vmatpush1.msra.mxu0 0.0
    %1540 = vmatprep.subr.mxu0 0.0
    %1541 = vmatpush1.msra.mxu0 0.0
    %1542 = vmatprep.subr.mxu0 0.0
    %1543 = vmatpush1.msra.mxu0 0.0
    %1544 = vmatprep.subr.mxu0 0.0
    %1545 = vmatpush1.msra.mxu0 0.0
    %1546 = vmatprep.subr.mxu0 0.0
    %1547 = vmatpush1.msra.mxu0 0.0
    %1548 = vmatprep.subr.mxu0 0.0
    %1549 = vmatpush1.msra.mxu0 0.0
    %1550 = vmatprep.subr.mxu0 0.0
    %1551 = vmatpush1.msra.mxu0 0.0
    %1552 = vmatprep.subr.mxu0 0.0
    %1553 = vmatpush1.msra.mxu0 0.0
    %1554 = vmatprep.subr.mxu0 0.0
    %1555 = vmatpush1.msra.mxu0 0.0
    %1556 = vmatprep.subr.mxu0 0.0
    %1557 = vmatpush1.msra.mxu0 0.0
    %1558 = vmatprep.subr.mxu0 0.0
    %1559 = vmatpush1.msra.mxu0 0.0
    %1560 = vmatprep.subr.mxu0 0.0
    %1561 = vmatpush1.msra.mxu0 0.0
    %1562 = vmatprep.subr.mxu0 0.0
    %1563 = vmatpush1.msra.mxu0 0.0
    %1564 = vmatprep.subr.mxu0 0.0
    %1565 = vmatpush1.msra.mxu0 0.0
    %1566 = vmatprep.subr.mxu0 0.0
    %1567 = vmatpush1.msra.mxu0 0.0
    %1568 = vmatprep.subr.mxu0 0.0
    %1569 = vmatpush1.msra.mxu0 0.0
    %1570 = vmatprep.subr.mxu0 0.0
    %1571 = vmatpush1.msra.mxu0 0.0
    %1572 = vmatprep.subr.mxu0 0.0
    %1573 = vmatpush1.msra.mxu0 0.0
    %1574 = vmatprep.subr.mxu0 0.0
    %1575 = vmatpush1.msra.mxu0 0.0
    %1576 = vmatprep.subr.mxu0 0.0
    %1577 = vmatpush1.msra.mxu0 0.0
    %1578 = vmatprep.subr.mxu0 0.0
    %1579 = vmatpush1.msra.mxu0 0.0
    %1580 = vmatprep.subr.mxu0 0.0
    %1581 = vmatpush1.msra.mxu0 0.0
    %1582 = vmatprep.subr.mxu0 0.0
    %1583 = vmatpush1.msra.mxu0 0.0
    %1584 = vmatprep.mubr.f32.mxu0 0.0
    %v1585 = vand.u32 %v1397, 4294901760
    %1586 = vmatmul.mubr.f32.gmra.mrb[0].mxu0 %v1585
    %v1587 = vpop.f32.mrb[0].mxu0
    %v1588 = vadd.f32 %v1482, %v1587
    %v1589 = vpop.f32.mrb[0].mxu0
    %1590 = vmatprep.mubr.f32.mxu0 0.0
    %v1591 = vand.u32 %v1399, 4294901760
    %1592 = vmatmul.mubr.f32.gmra.mrb[0].mxu0 %v1591
    %v1593 = vpop.f32.mrb[0].mxu0
    %v1594 = vadd.f32 %v1492, %v1593
    %v1595 = vpop.f32.mrb[0].mxu0
    %1596 = vmatprep.mubr.f32.mxu0 0.0
    %v1597 = vand.u32 %v1401, 4294901760
    %1598 = vmatmul.mubr.f32.gmra.mrb[0].mxu0 %v1597
    %v1599 = vpop.f32.mrb[0].mxu0
    %v1600 = vadd.f32 %v1502, %v1599
    %v1601 = vpop.f32.mrb[0].mxu0
    %1602 = vmatprep.mubr.f32.mxu0 0.0
    %v1603 = vand.u32 %v1403, 4294901760
    %1604 = vmatmul.mubr.f32.gmra.mrb[0].mxu0 %v1603
    %v1605 = vpop.f32.mrb[0].mxu0
    %v1606 = vadd.f32 %v1512, %v1605
    %v1607 = vpop.f32.mrb[0].mxu0
    %1608 = vdwg.mxu0
    %1609 = vmatprep.subr.mxu0 0.0
    %v1610 = vand.u32 %v1407, 4294901760
    %v1611 = vsub.f32 %v1407, %v1610
    %1612 = vmatpush1.msra.mxu0 %v1611
    %1613 = vmatprep.subr.mxu0 0.0
    %1614 = vmatpush1.msra.mxu0 0.0
    %1615 = vmatprep.subr.mxu0 0.0
    %1616 = vmatpush1.msra.mxu0 0.0
    %1617 = vmatprep.subr.mxu0 0.0
    %1618 = vmatpush1.msra.mxu0 0.0
    %1619 = vmatprep.subr.mxu0 0.0
    %1620 = vmatpush1.msra.mxu0 0.0
    %1621 = vmatprep.subr.mxu0 0.0
    %1622 = vmatpush1.msra.mxu0 0.0
    %1623 = vmatprep.subr.mxu0 0.0
    %1624 = vmatpush1.msra.mxu0 0.0
    %1625 = vmatprep.subr.mxu0 0.0
    %1626 = vmatpush1.msra.mxu0 0.0
    %1627 = vmatprep.subr.mxu0 0.0
    %1628 = vmatpush1.msra.mxu0 0.0
    %1629 = vmatprep.subr.mxu0 0.0
    %1630 = vmatpush1.msra.mxu0 0.0
    %1631 = vmatprep.subr.mxu0 0.0
    %1632 = vmatpush1.msra.mxu0 0.0
    %1633 = vmatprep.subr.mxu0 0.0
    %1634 = vmatpush1.msra.mxu0 0.0
    %1635 = vmatprep.subr.mxu0 0.0
    %1636 = vmatpush1.msra.mxu0 0.0
    %1637 = vmatprep.subr.mxu0 0.0
    %1638 = vmatpush1.msra.mxu0 0.0
    %1639 = vmatprep.subr.mxu0 0.0
    %1640 = vmatpush1.msra.mxu0 0.0
    %1641 = vmatprep.subr.mxu0 0.0
    %1642 = vmatpush1.msra.mxu0 0.0
    %1643 = vmatprep.subr.mxu0 0.0
    %1644 = vmatpush1.msra.mxu0 0.0
    %1645 = vmatprep.subr.mxu0 0.0
    %1646 = vmatpush1.msra.mxu0 0.0
    %1647 = vmatprep.subr.mxu0 0.0
    %1648 = vmatpush1.msra.mxu0 0.0
    %1649 = vmatprep.subr.mxu0 0.0
    %1650 = vmatpush1.msra.mxu0 0.0
    %1651 = vmatprep.subr.mxu0 0.0
    %1652 = vmatpush1.msra.mxu0 0.0
    %1653 = vmatprep.subr.mxu0 0.0
    %1654 = vmatpush1.msra.mxu0 0.0
    %1655 = vmatprep.subr.mxu0 0.0
    %1656 = vmatpush1.msra.mxu0 0.0
    %1657 = vmatprep.subr.mxu0 0.0
    %1658 = vmatpush1.msra.mxu0 0.0
    %1659 = vmatprep.subr.mxu0 0.0
    %1660 = vmatpush1.msra.mxu0 0.0
    %1661 = vmatprep.subr.mxu0 0.0
    %1662 = vmatpush1.msra.mxu0 0.0
    %1663 = vmatprep.subr.mxu0 0.0
    %1664 = vmatpush1.msra.mxu0 0.0
    %1665 = vmatprep.subr.mxu0 0.0
    %1666 = vmatpush1.msra.mxu0 0.0
    %1667 = vmatprep.subr.mxu0 0.0
    %1668 = vmatpush1.msra.mxu0 0.0
    %1669 = vmatprep.subr.mxu0 0.0
    %1670 = vmatpush1.msra.mxu0 0.0
    %1671 = vmatprep.subr.mxu0 0.0
    %1672 = vmatpush1.msra.mxu0 0.0
    %1673 = vmatprep.subr.mxu0 0.0
    %1674 = vmatpush1.msra.mxu0 0.0
    %1675 = vmatprep.mubr.f32.mxu0 0.0
    %v1676 = vand.u32 %v1397, 4294901760
    %v1677 = vsub.f32 %v1397, %v1676
    %1678 = vmatmul.mubr.f32.gmra.mrb[0].mxu0 %v1677
    %v1679 = vpop.f32.mrb[0].mxu0
    %v1680 = vadd.f32 %v1588, %v1679
    %v1681 = vpop.f32.mrb[0].mxu0
    %1682 = vmatprep.mubr.f32.mxu0 0.0
    %v1683 = vand.u32 %v1399, 4294901760
    %v1684 = vsub.f32 %v1399, %v1683
    %1685 = vmatmul.mubr.f32.gmra.mrb[0].mxu0 %v1684
    %v1686 = vpop.f32.mrb[0].mxu0
    %v1687 = vadd.f32 %v1594, %v1686
    %v1688 = vpop.f32.mrb[0].mxu0
    %1689 = vmatprep.mubr.f32.mxu0 0.0
    %v1690 = vand.u32 %v1401, 4294901760
    %v1691 = vsub.f32 %v1401, %v1690
    %1692 = vmatmul.mubr.f32.gmra.mrb[0].mxu0 %v1691
    %v1693 = vpop.f32.mrb[0].mxu0
    %v1694 = vadd.f32 %v1600, %v1693
    %v1695 = vpop.f32.mrb[0].mxu0
    %1696 = vmatprep.mubr.f32.mxu0 0.0
    %v1697 = vand.u32 %v1403, 4294901760
    %v1698 = vsub.f32 %v1403, %v1697
    %1699 = vmatmul.mubr.f32.gmra.mrb[0].mxu0 %v1698
    %v1700 = vpop.f32.mrb[0].mxu0
    %v1701 = vadd.f32 %v1606, %v1700
    %v1702 = vpop.f32.mrb[0].mxu0
    %1703 = vdwg.mxu0
    %1704 = vmatprep.subr.mxu0 0.0
    %v1705 = vand.u32 %v1407, 4294901760
    %1706 = vmatpush1.msra.mxu0 %v1705
    %1707 = vmatprep.subr.mxu0 0.0
    %1708 = vmatpush1.msra.mxu0 0.0
    %1709 = vmatprep.subr.mxu0 0.0
    %1710 = vmatpush1.msra.mxu0 0.0
    %1711 = vmatprep.subr.mxu0 0.0
    %1712 = vmatpush1.msra.mxu0 0.0
    %1713 = vmatprep.subr.mxu0 0.0
    %1714 = vmatpush1.msra.mxu0 0.0
    %1715 = vmatprep.subr.mxu0 0.0
    %1716 = vmatpush1.msra.mxu0 0.0
    %1717 = vmatprep.subr.mxu0 0.0
    %1718 = vmatpush1.msra.mxu0 0.0
    %1719 = vmatprep.subr.mxu0 0.0
    %1720 = vmatpush1.msra.mxu0 0.0
    %1721 = vmatprep.subr.mxu0 0.0
    %1722 = vmatpush1.msra.mxu0 0.0
    %1723 = vmatprep.subr.mxu0 0.0
    %1724 = vmatpush1.msra.mxu0 0.0
    %1725 = vmatprep.subr.mxu0 0.0
    %1726 = vmatpush1.msra.mxu0 0.0
    %1727 = vmatprep.subr.mxu0 0.0
    %1728 = vmatpush1.msra.mxu0 0.0
    %1729 = vmatprep.subr.mxu0 0.0
    %1730 = vmatpush1.msra.mxu0 0.0
    %1731 = vmatprep.subr.mxu0 0.0
    %1732 = vmatpush1.msra.mxu0 0.0
    %1733 = vmatprep.subr.mxu0 0.0
    %1734 = vmatpush1.msra.mxu0 0.0
    %1735 = vmatprep.subr.mxu0 0.0
    %1736 = vmatpush1.msra.mxu0 0.0
    %1737 = vmatprep.subr.mxu0 0.0
    %1738 = vmatpush1.msra.mxu0 0.0
    %1739 = vmatprep.subr.mxu0 0.0
    %1740 = vmatpush1.msra.mxu0 0.0
    %1741 = vmatprep.subr.mxu0 0.0
    %1742 = vmatpush1.msra.mxu0 0.0
    %1743 = vmatprep.subr.mxu0 0.0
    %1744 = vmatpush1.msra.mxu0 0.0
    %1745 = vmatprep.subr.mxu0 0.0
    %1746 = vmatpush1.msra.mxu0 0.0
    %1747 = vmatprep.subr.mxu0 0.0
    %1748 = vmatpush1.msra.mxu0 0.0
    %1749 = vmatprep.subr.mxu0 0.0
    %1750 = vmatpush1.msra.mxu0 0.0
    %1751 = vmatprep.subr.mxu0 0.0
    %1752 = vmatpush1.msra.mxu0 0.0
    %1753 = vmatprep.subr.mxu0 0.0
    %1754 = vmatpush1.msra.mxu0 0.0
    %1755 = vmatprep.subr.mxu0 0.0
    %1756 = vmatpush1.msra.mxu0 0.0
    %1757 = vmatprep.subr.mxu0 0.0
    %1758 = vmatpush1.msra.mxu0 0.0
    %1759 = vmatprep.subr.mxu0 0.0
    %1760 = vmatpush1.msra.mxu0 0.0
    %1761 = vmatprep.subr.mxu0 0.0
    %1762 = vmatpush1.msra.mxu0 0.0
    %1763 = vmatprep.subr.mxu0 0.0
    %1764 = vmatpush1.msra.mxu0 0.0
    %1765 = vmatprep.subr.mxu0 0.0
    %1766 = vmatpush1.msra.mxu0 0.0
    %1767 = vmatprep.subr.mxu0 0.0
    %1768 = vmatpush1.msra.mxu0 0.0
    %1769 = vmatprep.mubr.f32.mxu0 0.0
    %v1770 = vand.u32 %v1397, 4294901760
    %v1771 = vsub.f32 %v1397, %v1770
    %v1772 = vand.u32 %v1771, 4294901760
    %1773 = vmatmul.mubr.f32.gmra.mrb[0].mxu0 %v1772
    %v1774 = vpop.f32.mrb[0].mxu0
    %v1775 = vadd.f32 %v1680, %v1774
    %v1776 = vpop.f32.mrb[0].mxu0
    %1777 = vmatprep.mubr.f32.mxu0 0.0
    %v1778 = vand.u32 %v1399, 4294901760
    %v1779 = vsub.f32 %v1399, %v1778
    %v1780 = vand.u32 %v1779, 4294901760
    %1781 = vmatmul.mubr.f32.gmra.mrb[0].mxu0 %v1780
    %v1782 = vpop.f32.mrb[0].mxu0
    %v1783 = vadd.f32 %v1687, %v1782
    %v1784 = vpop.f32.mrb[0].mxu0
    %1785 = vmatprep.mubr.f32.mxu0 0.0
    %v1786 = vand.u32 %v1401, 4294901760
    %v1787 = vsub.f32 %v1401, %v1786
    %v1788 = vand.u32 %v1787, 4294901760
    %1789 = vmatmul.mubr.f32.gmra.mrb[0].mxu0 %v1788
    %v1790 = vpop.f32.mrb[0].mxu0
    %v1791 = vadd.f32 %v1694, %v1790
    %v1792 = vpop.f32.mrb[0].mxu0
    %1793 = vmatprep.mubr.f32.mxu0 0.0
    %v1794 = vand.u32 %v1403, 4294901760
    %v1795 = vsub.f32 %v1403, %v1794
    %v1796 = vand.u32 %v1795, 4294901760
    %1797 = vmatmul.mubr.f32.gmra.mrb[0].mxu0 %v1796
    %v1798 = vpop.f32.mrb[0].mxu0
    %v1799 = vadd.f32 %v1701, %v1798
    %v1800 = vpop.f32.mrb[0].mxu0
    %1801 = vdwg.mxu0
    %1802 = vmatprep.subr.mxu0 0.0
    %v1803 = vand.u32 %v1407, 4294901760
    %v1804 = vsub.f32 %v1407, %v1803
    %v1805 = vand.u32 %v1804, 4294901760
    %1806 = vmatpush1.msra.mxu0 %v1805
    %1807 = vmatprep.subr.mxu0 0.0
    %1808 = vmatpush1.msra.mxu0 0.0
    %1809 = vmatprep.subr.mxu0 0.0
    %1810 = vmatpush1.msra.mxu0 0.0
    %1811 = vmatprep.subr.mxu0 0.0
    %1812 = vmatpush1.msra.mxu0 0.0
    %1813 = vmatprep.subr.mxu0 0.0
    %1814 = vmatpush1.msra.mxu0 0.0
    %1815 = vmatprep.subr.mxu0 0.0
    %1816 = vmatpush1.msra.mxu0 0.0
    %1817 = vmatprep.subr.mxu0 0.0
    %1818 = vmatpush1.msra.mxu0 0.0
    %1819 = vmatprep.subr.mxu0 0.0
    %1820 = vmatpush1.msra.mxu0 0.0
    %1821 = vmatprep.subr.mxu0 0.0
    %1822 = vmatpush1.msra.mxu0 0.0
    %1823 = vmatprep.subr.mxu0 0.0
    %1824 = vmatpush1.msra.mxu0 0.0
    %1825 = vmatprep.subr.mxu0 0.0
    %1826 = vmatpush1.msra.mxu0 0.0
    %1827 = vmatprep.subr.mxu0 0.0
    %1828 = vmatpush1.msra.mxu0 0.0
    %1829 = vmatprep.subr.mxu0 0.0
    %1830 = vmatpush1.msra.mxu0 0.0
    %1831 = vmatprep.subr.mxu0 0.0
    %1832 = vmatpush1.msra.mxu0 0.0
    %1833 = vmatprep.subr.mxu0 0.0
    %1834 = vmatpush1.msra.mxu0 0.0
    %1835 = vmatprep.subr.mxu0 0.0
    %1836 = vmatpush1.msra.mxu0 0.0
    %1837 = vmatprep.subr.mxu0 0.0
    %1838 = vmatpush1.msra.mxu0 0.0
    %1839 = vmatprep.subr.mxu0 0.0
    %1840 = vmatpush1.msra.mxu0 0.0
    %1841 = vmatprep.subr.mxu0 0.0
    %1842 = vmatpush1.msra.mxu0 0.0
    %1843 = vmatprep.subr.mxu0 0.0
    %1844 = vmatpush1.msra.mxu0 0.0
    %1845 = vmatprep.subr.mxu0 0.0
    %1846 = vmatpush1.msra.mxu0 0.0
    %1847 = vmatprep.subr.mxu0 0.0
    %1848 = vmatpush1.msra.mxu0 0.0
    %1849 = vmatprep.subr.mxu0 0.0
    %1850 = vmatpush1.msra.mxu0 0.0
    %1851 = vmatprep.subr.mxu0 0.0
    %1852 = vmatpush1.msra.mxu0 0.0
    %1853 = vmatprep.subr.mxu0 0.0
    %1854 = vmatpush1.msra.mxu0 0.0
    %1855 = vmatprep.subr.mxu0 0.0
    %1856 = vmatpush1.msra.mxu0 0.0
    %1857 = vmatprep.subr.mxu0 0.0
    %1858 = vmatpush1.msra.mxu0 0.0
    %1859 = vmatprep.subr.mxu0 0.0
    %1860 = vmatpush1.msra.mxu0 0.0
    %1861 = vmatprep.subr.mxu0 0.0
    %1862 = vmatpush1.msra.mxu0 0.0
    %1863 = vmatprep.subr.mxu0 0.0
    %1864 = vmatpush1.msra.mxu0 0.0
    %1865 = vmatprep.subr.mxu0 0.0
    %1866 = vmatpush1.msra.mxu0 0.0
    %1867 = vmatprep.subr.mxu0 0.0
    %1868 = vmatpush1.msra.mxu0 0.0
    %1869 = vmatprep.mubr.f32.mxu0 0.0
    %v1870 = vand.u32 %v1397, 4294901760
    %1871 = vmatmul.mubr.f32.gmra.mrb[0].mxu0 %v1870
    %v1872 = vpop.f32.mrb[0].mxu0
    %v1873 = vadd.f32 %v1775, %v1872
    %v1874 = vpop.f32.mrb[0].mxu0
    %1875 = vmatprep.mubr.f32.mxu0 0.0
    %v1876 = vand.u32 %v1399, 4294901760
    %1877 = vmatmul.mubr.f32.gmra.mrb[0].mxu0 %v1876
    %v1878 = vpop.f32.mrb[0].mxu0
    %v1879 = vadd.f32 %v1783, %v1878
    %v1880 = vpop.f32.mrb[0].mxu0
    %1881 = vmatprep.mubr.f32.mxu0 0.0
    %v1882 = vand.u32 %v1401, 4294901760
    %1883 = vmatmul.mubr.f32.gmra.mrb[0].mxu0 %v1882
    %v1884 = vpop.f32.mrb[0].mxu0
    %v1885 = vadd.f32 %v1791, %v1884
    %v1886 = vpop.f32.mrb[0].mxu0
    %1887 = vmatprep.mubr.f32.mxu0 0.0
    %v1888 = vand.u32 %v1403, 4294901760
    %1889 = vmatmul.mubr.f32.gmra.mrb[0].mxu0 %v1888
    %v1890 = vpop.f32.mrb[0].mxu0
    %v1891 = vadd.f32 %v1799, %v1890
    %v1892 = vpop.f32.mrb[0].mxu0
    %1893 = vdwg.mxu0
    %1894 = vmatprep.subr.mxu0 0.0
    %v1895 = vand.u32 %v1407, 4294901760
    %1896 = vmatpush1.msra.mxu0 %v1895
    %1897 = vmatprep.subr.mxu0 0.0
    %1898 = vmatpush1.msra.mxu0 0.0
    %1899 = vmatprep.subr.mxu0 0.0
    %1900 = vmatpush1.msra.mxu0 0.0
    %1901 = vmatprep.subr.mxu0 0.0
    %1902 = vmatpush1.msra.mxu0 0.0
    %1903 = vmatprep.subr.mxu0 0.0
    %1904 = vmatpush1.msra.mxu0 0.0
    %1905 = vmatprep.subr.mxu0 0.0
    %1906 = vmatpush1.msra.mxu0 0.0
    %1907 = vmatprep.subr.mxu0 0.0
    %1908 = vmatpush1.msra.mxu0 0.0
    %1909 = vmatprep.subr.mxu0 0.0
    %1910 = vmatpush1.msra.mxu0 0.0
    %1911 = vmatprep.subr.mxu0 0.0
    %1912 = vmatpush1.msra.mxu0 0.0
    %1913 = vmatprep.subr.mxu0 0.0
    %1914 = vmatpush1.msra.mxu0 0.0
    %1915 = vmatprep.subr.mxu0 0.0
    %1916 = vmatpush1.msra.mxu0 0.0
    %1917 = vmatprep.subr.mxu0 0.0
    %1918 = vmatpush1.msra.mxu0 0.0
    %1919 = vmatprep.subr.mxu0 0.0
    %1920 = vmatpush1.msra.mxu0 0.0
    %1921 = vmatprep.subr.mxu0 0.0
    %1922 = vmatpush1.msra.mxu0 0.0
    %1923 = vmatprep.subr.mxu0 0.0
    %1924 = vmatpush1.msra.mxu0 0.0
    %1925 = vmatprep.subr.mxu0 0.0
    %1926 = vmatpush1.msra.mxu0 0.0
    %1927 = vmatprep.subr.mxu0 0.0
    %1928 = vmatpush1.msra.mxu0 0.0
    %1929 = vmatprep.subr.mxu0 0.0
    %1930 = vmatpush1.msra.mxu0 0.0
    %1931 = vmatprep.subr.mxu0 0.0
    %1932 = vmatpush1.msra.mxu0 0.0
    %1933 = vmatprep.subr.mxu0 0.0
    %1934 = vmatpush1.msra.mxu0 0.0
    %1935 = vmatprep.subr.mxu0 0.0
    %1936 = vmatpush1.msra.mxu0 0.0
    %1937 = vmatprep.subr.mxu0 0.0
    %1938 = vmatpush1.msra.mxu0 0.0
    %1939 = vmatprep.subr.mxu0 0.0
    %1940 = vmatpush1.msra.mxu0 0.0
    %1941 = vmatprep.subr.mxu0 0.0
    %1942 = vmatpush1.msra.mxu0 0.0
    %1943 = vmatprep.subr.mxu0 0.0
    %1944 = vmatpush1.msra.mxu0 0.0
    %1945 = vmatprep.subr.mxu0 0.0
    %1946 = vmatpush1.msra.mxu0 0.0
    %1947 = vmatprep.subr.mxu0 0.0
    %1948 = vmatpush1.msra.mxu0 0.0
    %1949 = vmatprep.subr.mxu0 0.0
    %1950 = vmatpush1.msra.mxu0 0.0
    %1951 = vmatprep.subr.mxu0 0.0
    %1952 = vmatpush1.msra.mxu0 0.0
    %1953 = vmatprep.subr.mxu0 0.0
    %1954 = vmatpush1.msra.mxu0 0.0
    %1955 = vmatprep.subr.mxu0 0.0
    %1956 = vmatpush1.msra.mxu0 0.0
    %1957 = vmatprep.subr.mxu0 0.0
    %1958 = vmatpush1.msra.mxu0 0.0
    %1959 = vmatprep.mubr.f32.mxu0 0.0
    %v1960 = vand.u32 %v1397, 4294901760
    %1961 = vmatmul.mubr.f32.gmra.mrb[0].mxu0 %v1960
    %v1962 = vpop.f32.mrb[0].mxu0
    %v1963 = vadd.f32 %v1873, %v1962
    %v1964 = vpop.f32.mrb[0].mxu0
    %1965 = vmatprep.mubr.f32.mxu0 0.0
    %v1966 = vand.u32 %v1399, 4294901760
    %1967 = vmatmul.mubr.f32.gmra.mrb[0].mxu0 %v1966
    %v1968 = vpop.f32.mrb[0].mxu0
    %v1969 = vadd.f32 %v1879, %v1968
    %v1970 = vpop.f32.mrb[0].mxu0
    %1971 = vmatprep.mubr.f32.mxu0 0.0
    %v1972 = vand.u32 %v1401, 4294901760
    %1973 = vmatmul.mubr.f32.gmra.mrb[0].mxu0 %v1972
    %v1974 = vpop.f32.mrb[0].mxu0
    %v1975 = vadd.f32 %v1885, %v1974
    %v1976 = vpop.f32.mrb[0].mxu0
    %1977 = vmatprep.mubr.f32.mxu0 0.0
    %v1978 = vand.u32 %v1403, 4294901760
    %1979 = vmatmul.mubr.f32.gmra.mrb[0].mxu0 %v1978
    %v1980 = vpop.f32.mrb[0].mxu0
    %v1981 = vadd.f32 %v1891, %v1980
    %v1982 = vpop.f32.mrb[0].mxu0
    %1983 = vdwg.mxu0
    %v1984 = vadd.f32 %v1387, %v1963
    %v1985 = vadd.f32 %v1388, %v1969
    %v1986 = vadd.f32 %v1389, %v1975
    %v1987 = vadd.f32 %v1390, %v1981
    %v1988 = vmax.f32 %v1984, 0.0
    %v1989 = vmax.f32 %v1985, 0.0
    %v1990 = vmax.f32 %v1986, 0.0
    %v1991 = vmax.f32 %v1987, 0.0
    %v1996 = vrot.slane %v1988, 4
    %v1997 = vrot.slane %v1989, 4
    %v1998 = vsel %vm1405, %v1996, %v1997
    %v1999 = vrot.slane %v1990, 4
    %v2000 = vsel %vm1405, %v1997, %v1999
    %v2001 = vrot.slane %v1991, 4
    %v2002 = vsel %vm1405, %v1999, %v2001
    %v2007 = vsel %vm1405, 0.0, %v1996
    %2008 = vrot.lane.b32.xlu0 %v1988, 32
    %v2009 = vpop.permute.xlu0 %2008
    %2010 = vrot.lane.b32.xlu0 %v1989, 32
    %v2011 = vpop.permute.xlu0 %2010
    %2012 = vrot.lane.b32.xlu0 %v1990, 32
    %v2013 = vpop.permute.xlu0 %2012
    %2014 = vrot.lane.b32.xlu0 %v1991, 32
    %v2015 = vpop.permute.xlu0 %2014
    %v2020 = vsel %vm690, %v2007, %v2009
    %v2021 = vsel %vm690, %v1998, %v2011
    %v2022 = vsel %vm690, %v2000, %v2013
    %v2023 = vsel %vm690, %v2002, %v2015
    %v2024 = vld [vmem:[#allocation2 + $0x68] sm:$0xff]
    %v2025 = vld [vmem:[#allocation2 + $0x70] sm:$0xff]
    %v2026 = vld [vmem:[#allocation2 + $0x78] sm:$0xff]
    %v2027 = vld [vmem:[#allocation2 + $0x80] sm:$0xff]
    %v2028 = vld [vmem:[#allocation2 + $0x88] sm:$0xff]
    %v2029 = vld [vmem:[#allocation2 + $0x90] sm:$0xff]
    %v2030 = vld [vmem:[#allocation2 + $0x98] sm:$0xff]
    %v2031 = vld [vmem:[#allocation2 + $0xa0] sm:$0xff]
    %v2032 = vld [vmem:[#allocation2 + $0xa8] sm:$0x1]
    %v2033 = vlaneseq
    %v2034 = vshrl.u32 %v2033, 7
    %v2035 = vsub.s32 0, %v2034
    %v2036 = vrot.slane %v2032, %v2035
    %v2038 = vsel %vm708, %v2020, 0
    %v2041 = vsel %vm708, %v2021, 0
    %v2044 = vsel %vm708, %v2022, 0
    %v2047 = vsel %vm708, %v2023, 0
    %2049 = vmatprep.subr.mxu0 0.0
    %v2050 = vand.u32 %v2024, 4294901760
    %2051 = vmatpush1.msra.mxu0 %v2050
    %2052 = vmatprep.subr.mxu0 0.0
    %v2053 = vand.u32 %v2025, 4294901760
    %2054 = vmatpush1.msra.mxu0 %v2053
    %2055 = vmatprep.subr.mxu0 0.0
    %v2056 = vand.u32 %v2026, 4294901760
    %2057 = vmatpush1.msra.mxu0 %v2056
    %2058 = vmatprep.subr.mxu0 0.0
    %v2059 = vand.u32 %v2027, 4294901760
    %2060 = vmatpush1.msra.mxu0 %v2059
    %2061 = vmatprep.subr.mxu0 0.0
    %v2062 = vand.u32 %v2028, 4294901760
    %2063 = vmatpush1.msra.mxu0 %v2062
    %2064 = vmatprep.subr.mxu0 0.0
    %v2065 = vand.u32 %v2029, 4294901760
    %2066 = vmatpush1.msra.mxu0 %v2065
    %2067 = vmatprep.subr.mxu0 0.0
    %v2068 = vand.u32 %v2030, 4294901760
    %2069 = vmatpush1.msra.mxu0 %v2068
    %2070 = vmatprep.subr.mxu0 0.0
    %v2071 = vand.u32 %v2031, 4294901760
    %2072 = vmatpush1.msra.mxu0 %v2071
    %2073 = vmatprep.subr.mxu0 0.0
    %2074 = vmatpush1.msra.mxu0 0.0
    %2075 = vmatprep.subr.mxu0 0.0
    %2076 = vmatpush1.msra.mxu0 0.0
    %2077 = vmatprep.subr.mxu0 0.0
    %2078 = vmatpush1.msra.mxu0 0.0
    %2079 = vmatprep.subr.mxu0 0.0
    %2080 = vmatpush1.msra.mxu0 0.0
    %2081 = vmatprep.subr.mxu0 0.0
    %2082 = vmatpush1.msra.mxu0 0.0
    %2083 = vmatprep.subr.mxu0 0.0
    %2084 = vmatpush1.msra.mxu0 0.0
    %2085 = vmatprep.subr.mxu0 0.0
    %2086 = vmatpush1.msra.mxu0 0.0
    %2087 = vmatprep.subr.mxu0 0.0
    %2088 = vmatpush1.msra.mxu0 0.0
    %2089 = vmatprep.subr.mxu0 0.0
    %2090 = vmatpush1.msra.mxu0 0.0
    %2091 = vmatprep.subr.mxu0 0.0
    %2092 = vmatpush1.msra.mxu0 0.0
    %2093 = vmatprep.subr.mxu0 0.0
    %2094 = vmatpush1.msra.mxu0 0.0
    %2095 = vmatprep.subr.mxu0 0.0
    %2096 = vmatpush1.msra.mxu0 0.0
    %2097 = vmatprep.subr.mxu0 0.0
    %2098 = vmatpush1.msra.mxu0 0.0
    %2099 = vmatprep.subr.mxu0 0.0
    %2100 = vmatpush1.msra.mxu0 0.0
    %2101 = vmatprep.subr.mxu0 0.0
    %2102 = vmatpush1.msra.mxu0 0.0
    %2103 = vmatprep.subr.mxu0 0.0
    %2104 = vmatpush1.msra.mxu0 0.0
    %2105 = vmatprep.subr.mxu0 0.0
    %2106 = vmatpush1.msra.mxu0 0.0
    %2107 = vmatprep.subr.mxu0 0.0
    %2108 = vmatpush1.msra.mxu0 0.0
    %2109 = vmatprep.subr.mxu0 0.0
    %2110 = vmatpush1.msra.mxu0 0.0
    %2111 = vmatprep.subr.mxu0 0.0
    %2112 = vmatpush1.msra.mxu0 0.0
    %2113 = vmatprep.subr.mxu0 0.0
    %2114 = vmatpush1.msra.mxu0 0.0
    %2115 = vmatprep.subr.mxu0 0.0
    %2116 = vmatpush1.msra.mxu0 0.0
    %2117 = vmatprep.subr.mxu0 0.0
    %2118 = vmatpush1.msra.mxu0 0.0
    %2119 = vmatprep.subr.mxu0 0.0
    %2120 = vmatpush1.msra.mxu0 0.0
    %2121 = vmatprep.mubr.f32.mxu0 0.0
    %v2122 = vand.u32 %v2038, 4294901760
    %v2123 = vsub.f32 %v2038, %v2122
    %v2124 = vand.u32 %v2123, 4294901760
    %v2125 = vsub.f32 %v2123, %v2124
    %v2126 = vand.u32 %v2125, 4294901760
    %2127 = vmatmul.mubr.f32.gmra.mrb[0].mxu0 %v2126
    %v2128 = vpop.f32.mrb[0].mxu0
    %v2129 = vadd.f32 %v2036, %v2128
    %v2130 = vpop.f32.mrb[0].mxu0
    %2131 = vmatprep.mubr.f32.mxu0 0.0
    %v2132 = vand.u32 %v2041, 4294901760
    %v2133 = vsub.f32 %v2041, %v2132
    %v2134 = vand.u32 %v2133, 4294901760
    %v2135 = vsub.f32 %v2133, %v2134
    %v2136 = vand.u32 %v2135, 4294901760
    %2137 = vmatmul.mubr.f32.gmra.mrb[0].mxu0 %v2136
    %v2138 = vpop.f32.mrb[0].mxu0
    %v2139 = vadd.f32 %v2036, %v2138
    %v2140 = vpop.f32.mrb[0].mxu0
    %2141 = vmatprep.mubr.f32.mxu0 0.0
    %v2142 = vand.u32 %v2044, 4294901760
    %v2143 = vsub.f32 %v2044, %v2142
    %v2144 = vand.u32 %v2143, 4294901760
    %v2145 = vsub.f32 %v2143, %v2144
    %v2146 = vand.u32 %v2145, 4294901760
    %2147 = vmatmul.mubr.f32.gmra.mrb[0].mxu0 %v2146
    %v2148 = vpop.f32.mrb[0].mxu0
    %v2149 = vadd.f32 %v2036, %v2148
    %v2150 = vpop.f32.mrb[0].mxu0
    %2151 = vmatprep.mubr.f32.mxu0 0.0
    %v2152 = vand.u32 %v2047, 4294901760
    %v2153 = vsub.f32 %v2047, %v2152
    %v2154 = vand.u32 %v2153, 4294901760
    %v2155 = vsub.f32 %v2153, %v2154
    %v2156 = vand.u32 %v2155, 4294901760
    %2157 = vmatmul.mubr.f32.gmra.mrb[0].mxu0 %v2156
    %v2158 = vpop.f32.mrb[0].mxu0
    %v2159 = vadd.f32 %v2036, %v2158
    %v2160 = vpop.f32.mrb[0].mxu0
    %2161 = vdwg.mxu0
    %2162 = vmatprep.subr.mxu0 0.0
    %v2163 = vand.u32 %v2024, 4294901760
    %v2164 = vsub.f32 %v2024, %v2163
    %v2165 = vand.u32 %v2164, 4294901760
    %v2166 = vsub.f32 %v2164, %v2165
    %v2167 = vand.u32 %v2166, 4294901760
    %2168 = vmatpush1.msra.mxu0 %v2167
    %2169 = vmatprep.subr.mxu0 0.0
    %v2170 = vand.u32 %v2025, 4294901760
    %v2171 = vsub.f32 %v2025, %v2170
    %v2172 = vand.u32 %v2171, 4294901760
    %v2173 = vsub.f32 %v2171, %v2172
    %v2174 = vand.u32 %v2173, 4294901760
    %2175 = vmatpush1.msra.mxu0 %v2174
    %2176 = vmatprep.subr.mxu0 0.0
    %v2177 = vand.u32 %v2026, 4294901760
    %v2178 = vsub.f32 %v2026, %v2177
    %v2179 = vand.u32 %v2178, 4294901760
    %v2180 = vsub.f32 %v2178, %v2179
    %v2181 = vand.u32 %v2180, 4294901760
    %2182 = vmatpush1.msra.mxu0 %v2181
    %2183 = vmatprep.subr.mxu0 0.0
    %v2184 = vand.u32 %v2027, 4294901760
    %v2185 = vsub.f32 %v2027, %v2184
    %v2186 = vand.u32 %v2185, 4294901760
    %v2187 = vsub.f32 %v2185, %v2186
    %v2188 = vand.u32 %v2187, 4294901760
    %2189 = vmatpush1.msra.mxu0 %v2188
    %2190 = vmatprep.subr.mxu0 0.0
    %v2191 = vand.u32 %v2028, 4294901760
    %v2192 = vsub.f32 %v2028, %v2191
    %v2193 = vand.u32 %v2192, 4294901760
    %v2194 = vsub.f32 %v2192, %v2193
    %v2195 = vand.u32 %v2194, 4294901760
    %2196 = vmatpush1.msra.mxu0 %v2195
    %2197 = vmatprep.subr.mxu0 0.0
    %v2198 = vand.u32 %v2029, 4294901760
    %v2199 = vsub.f32 %v2029, %v2198
    %v2200 = vand.u32 %v2199, 4294901760
    %v2201 = vsub.f32 %v2199, %v2200
    %v2202 = vand.u32 %v2201, 4294901760
    %2203 = vmatpush1.msra.mxu0 %v2202
    %2204 = vmatprep.subr.mxu0 0.0
    %v2205 = vand.u32 %v2030, 4294901760
    %v2206 = vsub.f32 %v2030, %v2205
    %v2207 = vand.u32 %v2206, 4294901760
    %v2208 = vsub.f32 %v2206, %v2207
    %v2209 = vand.u32 %v2208, 4294901760
    %2210 = vmatpush1.msra.mxu0 %v2209
    %2211 = vmatprep.subr.mxu0 0.0
    %v2212 = vand.u32 %v2031, 4294901760
    %v2213 = vsub.f32 %v2031, %v2212
    %v2214 = vand.u32 %v2213, 4294901760
    %v2215 = vsub.f32 %v2213, %v2214
    %v2216 = vand.u32 %v2215, 4294901760
    %2217 = vmatpush1.msra.mxu0 %v2216
    %2218 = vmatprep.subr.mxu0 0.0
    %2219 = vmatpush1.msra.mxu0 0.0
    %2220 = vmatprep.subr.mxu0 0.0
    %2221 = vmatpush1.msra.mxu0 0.0
    %2222 = vmatprep.subr.mxu0 0.0
    %2223 = vmatpush1.msra.mxu0 0.0
    %2224 = vmatprep.subr.mxu0 0.0
    %2225 = vmatpush1.msra.mxu0 0.0
    %2226 = vmatprep.subr.mxu0 0.0
    %2227 = vmatpush1.msra.mxu0 0.0
    %2228 = vmatprep.subr.mxu0 0.0
    %2229 = vmatpush1.msra.mxu0 0.0
    %2230 = vmatprep.subr.mxu0 0.0
    %2231 = vmatpush1.msra.mxu0 0.0
    %2232 = vmatprep.subr.mxu0 0.0
    %2233 = vmatpush1.msra.mxu0 0.0
    %2234 = vmatprep.subr.mxu0 0.0
    %2235 = vmatpush1.msra.mxu0 0.0
    %2236 = vmatprep.subr.mxu0 0.0
    %2237 = vmatpush1.msra.mxu0 0.0
    %2238 = vmatprep.subr.mxu0 0.0
    %2239 = vmatpush1.msra.mxu0 0.0
    %2240 = vmatprep.subr.mxu0 0.0
    %2241 = vmatpush1.msra.mxu0 0.0
    %2242 = vmatprep.subr.mxu0 0.0
    %2243 = vmatpush1.msra.mxu0 0.0
    %2244 = vmatprep.subr.mxu0 0.0
    %2245 = vmatpush1.msra.mxu0 0.0
    %2246 = vmatprep.subr.mxu0 0.0
    %2247 = vmatpush1.msra.mxu0 0.0
    %2248 = vmatprep.subr.mxu0 0.0
    %2249 = vmatpush1.msra.mxu0 0.0
    %2250 = vmatprep.subr.mxu0 0.0
    %2251 = vmatpush1.msra.mxu0 0.0
    %2252 = vmatprep.subr.mxu0 0.0
    %2253 = vmatpush1.msra.mxu0 0.0
    %2254 = vmatprep.subr.mxu0 0.0
    %2255 = vmatpush1.msra.mxu0 0.0
    %2256 = vmatprep.subr.mxu0 0.0
    %2257 = vmatpush1.msra.mxu0 0.0
    %2258 = vmatprep.subr.mxu0 0.0
    %2259 = vmatpush1.msra.mxu0 0.0
    %2260 = vmatprep.subr.mxu0 0.0
    %2261 = vmatpush1.msra.mxu0 0.0
    %2262 = vmatprep.subr.mxu0 0.0
    %2263 = vmatpush1.msra.mxu0 0.0
    %2264 = vmatprep.subr.mxu0 0.0
    %2265 = vmatpush1.msra.mxu0 0.0
    %2266 = vmatprep.mubr.f32.mxu0 0.0
    %v2267 = vand.u32 %v2038, 4294901760
    %2268 = vmatmul.mubr.f32.gmra.mrb[0].mxu0 %v2267
    %v2269 = vpop.f32.mrb[0].mxu0
    %v2270 = vadd.f32 %v2129, %v2269
    %v2271 = vpop.f32.mrb[0].mxu0
    %2272 = vmatprep.mubr.f32.mxu0 0.0
    %v2273 = vand.u32 %v2041, 4294901760
    %2274 = vmatmul.mubr.f32.gmra.mrb[0].mxu0 %v2273
    %v2275 = vpop.f32.mrb[0].mxu0
    %v2276 = vadd.f32 %v2139, %v2275
    %v2277 = vpop.f32.mrb[0].mxu0
    %2278 = vmatprep.mubr.f32.mxu0 0.0
    %v2279 = vand.u32 %v2044, 4294901760
    %2280 = vmatmul.mubr.f32.gmra.mrb[0].mxu0 %v2279
    %v2281 = vpop.f32.mrb[0].mxu0
    %v2282 = vadd.f32 %v2149, %v2281
    %v2283 = vpop.f32.mrb[0].mxu0
    %2284 = vmatprep.mubr.f32.mxu0 0.0
    %v2285 = vand.u32 %v2047, 4294901760
    %2286 = vmatmul.mubr.f32.gmra.mrb[0].mxu0 %v2285
    %v2287 = vpop.f32.mrb[0].mxu0
    %v2288 = vadd.f32 %v2159, %v2287
    %v2289 = vpop.f32.mrb[0].mxu0
    %2290 = vdwg.mxu0
    %2291 = vmatprep.subr.mxu0 0.0
    %v2292 = vand.u32 %v2024, 4294901760
    %v2293 = vsub.f32 %v2024, %v2292
    %2294 = vmatpush1.msra.mxu0 %v2293
    %2295 = vmatprep.subr.mxu0 0.0
    %v2296 = vand.u32 %v2025, 4294901760
    %v2297 = vsub.f32 %v2025, %v2296
    %2298 = vmatpush1.msra.mxu0 %v2297
    %2299 = vmatprep.subr.mxu0 0.0
    %v2300 = vand.u32 %v2026, 4294901760
    %v2301 = vsub.f32 %v2026, %v2300
    %2302 = vmatpush1.msra.mxu0 %v2301
    %2303 = vmatprep.subr.mxu0 0.0
    %v2304 = vand.u32 %v2027, 4294901760
    %v2305 = vsub.f32 %v2027, %v2304
    %2306 = vmatpush1.msra.mxu0 %v2305
    %2307 = vmatprep.subr.mxu0 0.0
    %v2308 = vand.u32 %v2028, 4294901760
    %v2309 = vsub.f32 %v2028, %v2308
    %2310 = vmatpush1.msra.mxu0 %v2309
    %2311 = vmatprep.subr.mxu0 0.0
    %v2312 = vand.u32 %v2029, 4294901760
    %v2313 = vsub.f32 %v2029, %v2312
    %2314 = vmatpush1.msra.mxu0 %v2313
    %2315 = vmatprep.subr.mxu0 0.0
    %v2316 = vand.u32 %v2030, 4294901760
    %v2317 = vsub.f32 %v2030, %v2316
    %2318 = vmatpush1.msra.mxu0 %v2317
    %2319 = vmatprep.subr.mxu0 0.0
    %v2320 = vand.u32 %v2031, 4294901760
    %v2321 = vsub.f32 %v2031, %v2320
    %2322 = vmatpush1.msra.mxu0 %v2321
    %2323 = vmatprep.subr.mxu0 0.0
    %2324 = vmatpush1.msra.mxu0 0.0
    %2325 = vmatprep.subr.mxu0 0.0
    %2326 = vmatpush1.msra.mxu0 0.0
    %2327 = vmatprep.subr.mxu0 0.0
    %2328 = vmatpush1.msra.mxu0 0.0
    %2329 = vmatprep.subr.mxu0 0.0
    %2330 = vmatpush1.msra.mxu0 0.0
    %2331 = vmatprep.subr.mxu0 0.0
    %2332 = vmatpush1.msra.mxu0 0.0
    %2333 = vmatprep.subr.mxu0 0.0
    %2334 = vmatpush1.msra.mxu0 0.0
    %2335 = vmatprep.subr.mxu0 0.0
    %2336 = vmatpush1.msra.mxu0 0.0
    %2337 = vmatprep.subr.mxu0 0.0
    %2338 = vmatpush1.msra.mxu0 0.0
    %2339 = vmatprep.subr.mxu0 0.0
    %2340 = vmatpush1.msra.mxu0 0.0
    %2341 = vmatprep.subr.mxu0 0.0
    %2342 = vmatpush1.msra.mxu0 0.0
    %2343 = vmatprep.subr.mxu0 0.0
    %2344 = vmatpush1.msra.mxu0 0.0
    %2345 = vmatprep.subr.mxu0 0.0
    %2346 = vmatpush1.msra.mxu0 0.0
    %2347 = vmatprep.subr.mxu0 0.0
    %2348 = vmatpush1.msra.mxu0 0.0
    %2349 = vmatprep.subr.mxu0 0.0
    %2350 = vmatpush1.msra.mxu0 0.0
    %2351 = vmatprep.subr.mxu0 0.0
    %2352 = vmatpush1.msra.mxu0 0.0
    %2353 = vmatprep.subr.mxu0 0.0
    %2354 = vmatpush1.msra.mxu0 0.0
    %2355 = vmatprep.subr.mxu0 0.0
    %2356 = vmatpush1.msra.mxu0 0.0
    %2357 = vmatprep.subr.mxu0 0.0
    %2358 = vmatpush1.msra.mxu0 0.0
    %2359 = vmatprep.subr.mxu0 0.0
    %2360 = vmatpush1.msra.mxu0 0.0
    %2361 = vmatprep.subr.mxu0 0.0
    %2362 = vmatpush1.msra.mxu0 0.0
    %2363 = vmatprep.subr.mxu0 0.0
    %2364 = vmatpush1.msra.mxu0 0.0
    %2365 = vmatprep.subr.mxu0 0.0
    %2366 = vmatpush1.msra.mxu0 0.0
    %2367 = vmatprep.subr.mxu0 0.0
    %2368 = vmatpush1.msra.mxu0 0.0
    %2369 = vmatprep.subr.mxu0 0.0
    %2370 = vmatpush1.msra.mxu0 0.0
    %2371 = vmatprep.mubr.f32.mxu0 0.0
    %v2372 = vand.u32 %v2038, 4294901760
    %v2373 = vsub.f32 %v2038, %v2372
    %2374 = vmatmul.mubr.f32.gmra.mrb[0].mxu0 %v2373
    %v2375 = vpop.f32.mrb[0].mxu0
    %v2376 = vadd.f32 %v2270, %v2375
    %v2377 = vpop.f32.mrb[0].mxu0
    %2378 = vmatprep.mubr.f32.mxu0 0.0
    %v2379 = vand.u32 %v2041, 4294901760
    %v2380 = vsub.f32 %v2041, %v2379
    %2381 = vmatmul.mubr.f32.gmra.mrb[0].mxu0 %v2380
    %v2382 = vpop.f32.mrb[0].mxu0
    %v2383 = vadd.f32 %v2276, %v2382
    %v2384 = vpop.f32.mrb[0].mxu0
    %2385 = vmatprep.mubr.f32.mxu0 0.0
    %v2386 = vand.u32 %v2044, 4294901760
    %v2387 = vsub.f32 %v2044, %v2386
    %2388 = vmatmul.mubr.f32.gmra.mrb[0].mxu0 %v2387
    %v2389 = vpop.f32.mrb[0].mxu0
    %v2390 = vadd.f32 %v2282, %v2389
    %v2391 = vpop.f32.mrb[0].mxu0
    %2392 = vmatprep.mubr.f32.mxu0 0.0
    %v2393 = vand.u32 %v2047, 4294901760
    %v2394 = vsub.f32 %v2047, %v2393
    %2395 = vmatmul.mubr.f32.gmra.mrb[0].mxu0 %v2394
    %v2396 = vpop.f32.mrb[0].mxu0
    %v2397 = vadd.f32 %v2288, %v2396
    %v2398 = vpop.f32.mrb[0].mxu0
    %2399 = vdwg.mxu0
    %2400 = vmatprep.subr.mxu0 0.0
    %v2401 = vand.u32 %v2024, 4294901760
    %2402 = vmatpush1.msra.mxu0 %v2401
    %2403 = vmatprep.subr.mxu0 0.0
    %v2404 = vand.u32 %v2025, 4294901760
    %2405 = vmatpush1.msra.mxu0 %v2404
    %2406 = vmatprep.subr.mxu0 0.0
    %v2407 = vand.u32 %v2026, 4294901760
    %2408 = vmatpush1.msra.mxu0 %v2407
    %2409 = vmatprep.subr.mxu0 0.0
    %v2410 = vand.u32 %v2027, 4294901760
    %2411 = vmatpush1.msra.mxu0 %v2410
    %2412 = vmatprep.subr.mxu0 0.0
    %v2413 = vand.u32 %v2028, 4294901760
    %2414 = vmatpush1.msra.mxu0 %v2413
    %2415 = vmatprep.subr.mxu0 0.0
    %v2416 = vand.u32 %v2029, 4294901760
    %2417 = vmatpush1.msra.mxu0 %v2416
    %2418 = vmatprep.subr.mxu0 0.0
    %v2419 = vand.u32 %v2030, 4294901760
    %2420 = vmatpush1.msra.mxu0 %v2419
    %2421 = vmatprep.subr.mxu0 0.0
    %v2422 = vand.u32 %v2031, 4294901760
    %2423 = vmatpush1.msra.mxu0 %v2422
    %2424 = vmatprep.subr.mxu0 0.0
    %2425 = vmatpush1.msra.mxu0 0.0
    %2426 = vmatprep.subr.mxu0 0.0
    %2427 = vmatpush1.msra.mxu0 0.0
    %2428 = vmatprep.subr.mxu0 0.0
    %2429 = vmatpush1.msra.mxu0 0.0
    %2430 = vmatprep.subr.mxu0 0.0
    %2431 = vmatpush1.msra.mxu0 0.0
    %2432 = vmatprep.subr.mxu0 0.0
    %2433 = vmatpush1.msra.mxu0 0.0
    %2434 = vmatprep.subr.mxu0 0.0
    %2435 = vmatpush1.msra.mxu0 0.0
    %2436 = vmatprep.subr.mxu0 0.0
    %2437 = vmatpush1.msra.mxu0 0.0
    %2438 = vmatprep.subr.mxu0 0.0
    %2439 = vmatpush1.msra.mxu0 0.0
    %2440 = vmatprep.subr.mxu0 0.0
    %2441 = vmatpush1.msra.mxu0 0.0
    %2442 = vmatprep.subr.mxu0 0.0
    %2443 = vmatpush1.msra.mxu0 0.0
    %2444 = vmatprep.subr.mxu0 0.0
    %2445 = vmatpush1.msra.mxu0 0.0
    %2446 = vmatprep.subr.mxu0 0.0
    %2447 = vmatpush1.msra.mxu0 0.0
    %2448 = vmatprep.subr.mxu0 0.0
    %2449 = vmatpush1.msra.mxu0 0.0
    %2450 = vmatprep.subr.mxu0 0.0
    %2451 = vmatpush1.msra.mxu0 0.0
    %2452 = vmatprep.subr.mxu0 0.0
    %2453 = vmatpush1.msra.mxu0 0.0
    %2454 = vmatprep.subr.mxu0 0.0
    %2455 = vmatpush1.msra.mxu0 0.0
    %2456 = vmatprep.subr.mxu0 0.0
    %2457 = vmatpush1.msra.mxu0 0.0
    %2458 = vmatprep.subr.mxu0 0.0
    %2459 = vmatpush1.msra.mxu0 0.0
    %2460 = vmatprep.subr.mxu0 0.0
    %2461 = vmatpush1.msra.mxu0 0.0
    %2462 = vmatprep.subr.mxu0 0.0
    %2463 = vmatpush1.msra.mxu0 0.0
    %2464 = vmatprep.subr.mxu0 0.0
    %2465 = vmatpush1.msra.mxu0 0.0
    %2466 = vmatprep.subr.mxu0 0.0
    %2467 = vmatpush1.msra.mxu0 0.0
    %2468 = vmatprep.subr.mxu0 0.0
    %2469 = vmatpush1.msra.mxu0 0.0
    %2470 = vmatprep.subr.mxu0 0.0
    %2471 = vmatpush1.msra.mxu0 0.0
    %2472 = vmatprep.mubr.f32.mxu0 0.0
    %v2473 = vand.u32 %v2038, 4294901760
    %v2474 = vsub.f32 %v2038, %v2473
    %v2475 = vand.u32 %v2474, 4294901760
    %2476 = vmatmul.mubr.f32.gmra.mrb[0].mxu0 %v2475
    %v2477 = vpop.f32.mrb[0].mxu0
    %v2478 = vadd.f32 %v2376, %v2477
    %v2479 = vpop.f32.mrb[0].mxu0
    %2480 = vmatprep.mubr.f32.mxu0 0.0
    %v2481 = vand.u32 %v2041, 4294901760
    %v2482 = vsub.f32 %v2041, %v2481
    %v2483 = vand.u32 %v2482, 4294901760
    %2484 = vmatmul.mubr.f32.gmra.mrb[0].mxu0 %v2483
    %v2485 = vpop.f32.mrb[0].mxu0
    %v2486 = vadd.f32 %v2383, %v2485
    %v2487 = vpop.f32.mrb[0].mxu0
    %2488 = vmatprep.mubr.f32.mxu0 0.0
    %v2489 = vand.u32 %v2044, 4294901760
    %v2490 = vsub.f32 %v2044, %v2489
    %v2491 = vand.u32 %v2490, 4294901760
    %2492 = vmatmul.mubr.f32.gmra.mrb[0].mxu0 %v2491
    %v2493 = vpop.f32.mrb[0].mxu0
    %v2494 = vadd.f32 %v2390, %v2493
    %v2495 = vpop.f32.mrb[0].mxu0
    %2496 = vmatprep.mubr.f32.mxu0 0.0
    %v2497 = vand.u32 %v2047, 4294901760
    %v2498 = vsub.f32 %v2047, %v2497
    %v2499 = vand.u32 %v2498, 4294901760
    %2500 = vmatmul.mubr.f32.gmra.mrb[0].mxu0 %v2499
    %v2501 = vpop.f32.mrb[0].mxu0
    %v2502 = vadd.f32 %v2397, %v2501
    %v2503 = vpop.f32.mrb[0].mxu0
    %2504 = vdwg.mxu0
    %2505 = vmatprep.subr.mxu0 0.0
    %v2506 = vand.u32 %v2024, 4294901760
    %v2507 = vsub.f32 %v2024, %v2506
    %v2508 = vand.u32 %v2507, 4294901760
    %2509 = vmatpush1.msra.mxu0 %v2508
    %2510 = vmatprep.subr.mxu0 0.0
    %v2511 = vand.u32 %v2025, 4294901760
    %v2512 = vsub.f32 %v2025, %v2511
    %v2513 = vand.u32 %v2512, 4294901760
    %2514 = vmatpush1.msra.mxu0 %v2513
    %2515 = vmatprep.subr.mxu0 0.0
    %v2516 = vand.u32 %v2026, 4294901760
    %v2517 = vsub.f32 %v2026, %v2516
    %v2518 = vand.u32 %v2517, 4294901760
    %2519 = vmatpush1.msra.mxu0 %v2518
    %2520 = vmatprep.subr.mxu0 0.0
    %v2521 = vand.u32 %v2027, 4294901760
    %v2522 = vsub.f32 %v2027, %v2521
    %v2523 = vand.u32 %v2522, 4294901760
    %2524 = vmatpush1.msra.mxu0 %v2523
    %2525 = vmatprep.subr.mxu0 0.0
    %v2526 = vand.u32 %v2028, 4294901760
    %v2527 = vsub.f32 %v2028, %v2526
    %v2528 = vand.u32 %v2527, 4294901760
    %2529 = vmatpush1.msra.mxu0 %v2528
    %2530 = vmatprep.subr.mxu0 0.0
    %v2531 = vand.u32 %v2029, 4294901760
    %v2532 = vsub.f32 %v2029, %v2531
    %v2533 = vand.u32 %v2532, 4294901760
    %2534 = vmatpush1.msra.mxu0 %v2533
    %2535 = vmatprep.subr.mxu0 0.0
    %v2536 = vand.u32 %v2030, 4294901760
    %v2537 = vsub.f32 %v2030, %v2536
    %v2538 = vand.u32 %v2537, 4294901760
    %2539 = vmatpush1.msra.mxu0 %v2538
    %2540 = vmatprep.subr.mxu0 0.0
    %v2541 = vand.u32 %v2031, 4294901760
    %v2542 = vsub.f32 %v2031, %v2541
    %v2543 = vand.u32 %v2542, 4294901760
    %2544 = vmatpush1.msra.mxu0 %v2543
    %2545 = vmatprep.subr.mxu0 0.0
    %2546 = vmatpush1.msra.mxu0 0.0
    %2547 = vmatprep.subr.mxu0 0.0
    %2548 = vmatpush1.msra.mxu0 0.0
    %2549 = vmatprep.subr.mxu0 0.0
    %2550 = vmatpush1.msra.mxu0 0.0
    %2551 = vmatprep.subr.mxu0 0.0
    %2552 = vmatpush1.msra.mxu0 0.0
    %2553 = vmatprep.subr.mxu0 0.0
    %2554 = vmatpush1.msra.mxu0 0.0
    %2555 = vmatprep.subr.mxu0 0.0
    %2556 = vmatpush1.msra.mxu0 0.0
    %2557 = vmatprep.subr.mxu0 0.0
    %2558 = vmatpush1.msra.mxu0 0.0
    %2559 = vmatprep.subr.mxu0 0.0
    %2560 = vmatpush1.msra.mxu0 0.0
    %2561 = vmatprep.subr.mxu0 0.0
    %2562 = vmatpush1.msra.mxu0 0.0
    %2563 = vmatprep.subr.mxu0 0.0
    %2564 = vmatpush1.msra.mxu0 0.0
    %2565 = vmatprep.subr.mxu0 0.0
    %2566 = vmatpush1.msra.mxu0 0.0
    %2567 = vmatprep.subr.mxu0 0.0
    %2568 = vmatpush1.msra.mxu0 0.0
    %2569 = vmatprep.subr.mxu0 0.0
    %2570 = vmatpush1.msra.mxu0 0.0
    %2571 = vmatprep.subr.mxu0 0.0
    %2572 = vmatpush1.msra.mxu0 0.0
    %2573 = vmatprep.subr.mxu0 0.0
    %2574 = vmatpush1.msra.mxu0 0.0
    %2575 = vmatprep.subr.mxu0 0.0
    %2576 = vmatpush1.msra.mxu0 0.0
    %2577 = vmatprep.subr.mxu0 0.0
    %2578 = vmatpush1.msra.mxu0 0.0
    %2579 = vmatprep.subr.mxu0 0.0
    %2580 = vmatpush1.msra.mxu0 0.0
    %2581 = vmatprep.subr.mxu0 0.0
    %2582 = vmatpush1.msra.mxu0 0.0
    %2583 = vmatprep.subr.mxu0 0.0
    %2584 = vmatpush1.msra.mxu0 0.0
    %2585 = vmatprep.subr.mxu0 0.0
    %2586 = vmatpush1.msra.mxu0 0.0
    %2587 = vmatprep.subr.mxu0 0.0
    %2588 = vmatpush1.msra.mxu0 0.0
    %2589 = vmatprep.subr.mxu0 0.0
    %2590 = vmatpush1.msra.mxu0 0.0
    %2591 = vmatprep.subr.mxu0 0.0
    %2592 = vmatpush1.msra.mxu0 0.0
    %2593 = vmatprep.mubr.f32.mxu0 0.0
    %v2594 = vand.u32 %v2038, 4294901760
    %2595 = vmatmul.mubr.f32.gmra.mrb[0].mxu0 %v2594
    %v2596 = vpop.f32.mrb[0].mxu0
    %v2597 = vadd.f32 %v2478, %v2596
    %v2598 = vpop.f32.mrb[0].mxu0
    %2599 = vmatprep.mubr.f32.mxu0 0.0
    %v2600 = vand.u32 %v2041, 4294901760
    %2601 = vmatmul.mubr.f32.gmra.mrb[0].mxu0 %v2600
    %v2602 = vpop.f32.mrb[0].mxu0
    %v2603 = vadd.f32 %v2486, %v2602
    %v2604 = vpop.f32.mrb[0].mxu0
    %2605 = vmatprep.mubr.f32.mxu0 0.0
    %v2606 = vand.u32 %v2044, 4294901760
    %2607 = vmatmul.mubr.f32.gmra.mrb[0].mxu0 %v2606
    %v2608 = vpop.f32.mrb[0].mxu0
    %v2609 = vadd.f32 %v2494, %v2608
    %v2610 = vpop.f32.mrb[0].mxu0
    %2611 = vmatprep.mubr.f32.mxu0 0.0
    %v2612 = vand.u32 %v2047, 4294901760
    %2613 = vmatmul.mubr.f32.gmra.mrb[0].mxu0 %v2612
    %v2614 = vpop.f32.mrb[0].mxu0
    %v2615 = vadd.f32 %v2502, %v2614
    %v2616 = vpop.f32.mrb[0].mxu0
    %2617 = vdwg.mxu0
    %2618 = vmatprep.subr.mxu0 0.0
    %v2619 = vand.u32 %v2024, 4294901760
    %2620 = vmatpush1.msra.mxu0 %v2619
    %2621 = vmatprep.subr.mxu0 0.0
    %v2622 = vand.u32 %v2025, 4294901760
    %2623 = vmatpush1.msra.mxu0 %v2622
    %2624 = vmatprep.subr.mxu0 0.0
    %v2625 = vand.u32 %v2026, 4294901760
    %2626 = vmatpush1.msra.mxu0 %v2625
    %2627 = vmatprep.subr.mxu0 0.0
    %v2628 = vand.u32 %v2027, 4294901760
    %2629 = vmatpush1.msra.mxu0 %v2628
    %2630 = vmatprep.subr.mxu0 0.0
    %v2631 = vand.u32 %v2028, 4294901760
    %2632 = vmatpush1.msra.mxu0 %v2631
    %2633 = vmatprep.subr.mxu0 0.0
    %v2634 = vand.u32 %v2029, 4294901760
    %2635 = vmatpush1.msra.mxu0 %v2634
    %2636 = vmatprep.subr.mxu0 0.0
    %v2637 = vand.u32 %v2030, 4294901760
    %2638 = vmatpush1.msra.mxu0 %v2637
    %2639 = vmatprep.subr.mxu0 0.0
    %v2640 = vand.u32 %v2031, 4294901760
    %2641 = vmatpush1.msra.mxu0 %v2640
    %2642 = vmatprep.subr.mxu0 0.0
    %2643 = vmatpush1.msra.mxu0 0.0
    %2644 = vmatprep.subr.mxu0 0.0
    %2645 = vmatpush1.msra.mxu0 0.0
    %2646 = vmatprep.subr.mxu0 0.0
    %2647 = vmatpush1.msra.mxu0 0.0
    %2648 = vmatprep.subr.mxu0 0.0
    %2649 = vmatpush1.msra.mxu0 0.0
    %2650 = vmatprep.subr.mxu0 0.0
    %2651 = vmatpush1.msra.mxu0 0.0
    %2652 = vmatprep.subr.mxu0 0.0
    %2653 = vmatpush1.msra.mxu0 0.0
    %2654 = vmatprep.subr.mxu0 0.0
    %2655 = vmatpush1.msra.mxu0 0.0
    %2656 = vmatprep.subr.mxu0 0.0
    %2657 = vmatpush1.msra.mxu0 0.0
    %2658 = vmatprep.subr.mxu0 0.0
    %2659 = vmatpush1.msra.mxu0 0.0
    %2660 = vmatprep.subr.mxu0 0.0
    %2661 = vmatpush1.msra.mxu0 0.0
    %2662 = vmatprep.subr.mxu0 0.0
    %2663 = vmatpush1.msra.mxu0 0.0
    %2664 = vmatprep.subr.mxu0 0.0
    %2665 = vmatpush1.msra.mxu0 0.0
    %2666 = vmatprep.subr.mxu0 0.0
    %2667 = vmatpush1.msra.mxu0 0.0
    %2668 = vmatprep.subr.mxu0 0.0
    %2669 = vmatpush1.msra.mxu0 0.0
    %2670 = vmatprep.subr.mxu0 0.0
    %2671 = vmatpush1.msra.mxu0 0.0
    %2672 = vmatprep.subr.mxu0 0.0
    %2673 = vmatpush1.msra.mxu0 0.0
    %2674 = vmatprep.subr.mxu0 0.0
    %2675 = vmatpush1.msra.mxu0 0.0
    %2676 = vmatprep.subr.mxu0 0.0
    %2677 = vmatpush1.msra.mxu0 0.0
    %2678 = vmatprep.subr.mxu0 0.0
    %2679 = vmatpush1.msra.mxu0 0.0
    %2680 = vmatprep.subr.mxu0 0.0
    %2681 = vmatpush1.msra.mxu0 0.0
    %2682 = vmatprep.subr.mxu0 0.0
    %2683 = vmatpush1.msra.mxu0 0.0
    %2684 = vmatprep.subr.mxu0 0.0
    %2685 = vmatpush1.msra.mxu0 0.0
    %2686 = vmatprep.subr.mxu0 0.0
    %2687 = vmatpush1.msra.mxu0 0.0
    %2688 = vmatprep.subr.mxu0 0.0
    %2689 = vmatpush1.msra.mxu0 0.0
    %2690 = vmatprep.mubr.f32.mxu0 0.0
    %v2691 = vand.u32 %v2038, 4294901760
    %2692 = vmatmul.mubr.f32.gmra.mrb[0].mxu0 %v2691
    %v2693 = vpop.f32.mrb[0].mxu0
    %v2694 = vadd.f32 %v2597, %v2693
    %v2695 = vpop.f32.mrb[0].mxu0
    %2696 = vmatprep.mubr.f32.mxu0 0.0
    %v2697 = vand.u32 %v2041, 4294901760
    %2698 = vmatmul.mubr.f32.gmra.mrb[0].mxu0 %v2697
    %v2699 = vpop.f32.mrb[0].mxu0
    %v2700 = vadd.f32 %v2603, %v2699
    %v2701 = vpop.f32.mrb[0].mxu0
    %2702 = vmatprep.mubr.f32.mxu0 0.0
    %v2703 = vand.u32 %v2044, 4294901760
    %2704 = vmatmul.mubr.f32.gmra.mrb[0].mxu0 %v2703
    %v2705 = vpop.f32.mrb[0].mxu0
    %v2706 = vadd.f32 %v2609, %v2705
    %v2707 = vpop.f32.mrb[0].mxu0
    %2708 = vmatprep.mubr.f32.mxu0 0.0
    %v2709 = vand.u32 %v2047, 4294901760
    %2710 = vmatmul.mubr.f32.gmra.mrb[0].mxu0 %v2709
    %v2711 = vpop.f32.mrb[0].mxu0
    %v2712 = vadd.f32 %v2615, %v2711
    %v2713 = vpop.f32.mrb[0].mxu0
    %2714 = vdwg.mxu0
    %v2715 = vmax.f32 %v2694, 0.0
    %v2716 = vmax.f32 %v2700, 0.0
    %v2717 = vmax.f32 %v2706, 0.0
    %v2718 = vmax.f32 %v2712, 0.0
    %v2723 = vrot.slane %v2715, 4
    %v2724 = vrot.slane %v2716, 4
    %v2725 = vsel %vm1405, %v2723, %v2724
    %v2726 = vrot.slane %v2717, 4
    %v2727 = vsel %vm1405, %v2724, %v2726
    %v2728 = vrot.slane %v2718, 4
    %v2729 = vsel %vm1405, %v2726, %v2728
    %v2734 = vsel %vm1405, 0.0, %v2723
    %2735 = vrot.lane.b32.xlu0 %v2715, 32
    %v2736 = vpop.permute.xlu0 %2735
    %2737 = vrot.lane.b32.xlu0 %v2716, 32
    %v2738 = vpop.permute.xlu0 %2737
    %2739 = vrot.lane.b32.xlu0 %v2717, 32
    %v2740 = vpop.permute.xlu0 %2739
    %2741 = vrot.lane.b32.xlu0 %v2718, 32
    %v2742 = vpop.permute.xlu0 %2741
    %v2747 = vsel %vm690, %v2734, %v2736
    %v2748 = vsel %vm690, %v2725, %v2738
    %v2749 = vsel %vm690, %v2727, %v2740
    %v2750 = vsel %vm690, %v2729, %v2742
    %v2751 = vld [vmem:[#allocation2 + $0xb0] sm:$0xff]
    %v2752 = vld [vmem:[#allocation2 + $0xb8] sm:$0xff]
    %v2753 = vld [vmem:[#allocation2 + $0xc0] sm:$0xff]
    %v2754 = vld [vmem:[#allocation2 + $0xc8] sm:$0xff]
    %v2755 = vld [vmem:[#allocation2 + $0xd0] sm:$0xff]
    %v2756 = vld [vmem:[#allocation2 + $0xd8] sm:$0xff]
    %v2757 = vld [vmem:[#allocation2 + $0xe0] sm:$0xff]
    %v2758 = vld [vmem:[#allocation2 + $0xe8] sm:$0xff]
    %v2759 = vld [vmem:[#allocation2 + $0xf0] sm:$0x1]
    %v2760 = vlaneseq
    %v2761 = vshrl.u32 %v2760, 7
    %v2762 = vsub.s32 0, %v2761
    %v2763 = vrot.slane %v2759, %v2762
    %v2765 = vsel %vm708, %v2747, 0
    %v2768 = vsel %vm708, %v2748, 0
    %v2771 = vsel %vm708, %v2749, 0
    %v2774 = vsel %vm708, %v2750, 0
    %2776 = vmatprep.subr.mxu0 0.0
    %v2777 = vand.u32 %v2751, 4294901760
    %2778 = vmatpush1.msra.mxu0 %v2777
    %2779 = vmatprep.subr.mxu0 0.0
    %v2780 = vand.u32 %v2752, 4294901760
    %2781 = vmatpush1.msra.mxu0 %v2780
    %2782 = vmatprep.subr.mxu0 0.0
    %v2783 = vand.u32 %v2753, 4294901760
    %2784 = vmatpush1.msra.mxu0 %v2783
    %2785 = vmatprep.subr.mxu0 0.0
    %v2786 = vand.u32 %v2754, 4294901760
    %2787 = vmatpush1.msra.mxu0 %v2786
    %2788 = vmatprep.subr.mxu0 0.0
    %v2789 = vand.u32 %v2755, 4294901760
    %2790 = vmatpush1.msra.mxu0 %v2789
    %2791 = vmatprep.subr.mxu0 0.0
    %v2792 = vand.u32 %v2756, 4294901760
    %2793 = vmatpush1.msra.mxu0 %v2792
    %2794 = vmatprep.subr.mxu0 0.0
    %v2795 = vand.u32 %v2757, 4294901760
    %2796 = vmatpush1.msra.mxu0 %v2795
    %2797 = vmatprep.subr.mxu0 0.0
    %v2798 = vand.u32 %v2758, 4294901760
    %2799 = vmatpush1.msra.mxu0 %v2798
    %2800 = vmatprep.subr.mxu0 0.0
    %2801 = vmatpush1.msra.mxu0 0.0
    %2802 = vmatprep.subr.mxu0 0.0
    %2803 = vmatpush1.msra.mxu0 0.0
    %2804 = vmatprep.subr.mxu0 0.0
    %2805 = vmatpush1.msra.mxu0 0.0
    %2806 = vmatprep.subr.mxu0 0.0
    %2807 = vmatpush1.msra.mxu0 0.0
    %2808 = vmatprep.subr.mxu0 0.0
    %2809 = vmatpush1.msra.mxu0 0.0
    %2810 = vmatprep.subr.mxu0 0.0
    %2811 = vmatpush1.msra.mxu0 0.0
    %2812 = vmatprep.subr.mxu0 0.0
    %2813 = vmatpush1.msra.mxu0 0.0
    %2814 = vmatprep.subr.mxu0 0.0
    %2815 = vmatpush1.msra.mxu0 0.0
    %2816 = vmatprep.subr.mxu0 0.0
    %2817 = vmatpush1.msra.mxu0 0.0
    %2818 = vmatprep.subr.mxu0 0.0
    %2819 = vmatpush1.msra.mxu0 0.0
    %2820 = vmatprep.subr.mxu0 0.0
    %2821 = vmatpush1.msra.mxu0 0.0
    %2822 = vmatprep.subr.mxu0 0.0
    %2823 = vmatpush1.msra.mxu0 0.0
    %2824 = vmatprep.subr.mxu0 0.0
    %2825 = vmatpush1.msra.mxu0 0.0
    %2826 = vmatprep.subr.mxu0 0.0
    %2827 = vmatpush1.msra.mxu0 0.0
    %2828 = vmatprep.subr.mxu0 0.0
    %2829 = vmatpush1.msra.mxu0 0.0
    %2830 = vmatprep.subr.mxu0 0.0
    %2831 = vmatpush1.msra.mxu0 0.0
    %2832 = vmatprep.subr.mxu0 0.0
    %2833 = vmatpush1.msra.mxu0 0.0
    %2834 = vmatprep.subr.mxu0 0.0
    %2835 = vmatpush1.msra.mxu0 0.0
    %2836 = vmatprep.subr.mxu0 0.0
    %2837 = vmatpush1.msra.mxu0 0.0
    %2838 = vmatprep.subr.mxu0 0.0
    %2839 = vmatpush1.msra.mxu0 0.0
    %2840 = vmatprep.subr.mxu0 0.0
    %2841 = vmatpush1.msra.mxu0 0.0
    %2842 = vmatprep.subr.mxu0 0.0
    %2843 = vmatpush1.msra.mxu0 0.0
    %2844 = vmatprep.subr.mxu0 0.0
    %2845 = vmatpush1.msra.mxu0 0.0
    %2846 = vmatprep.subr.mxu0 0.0
    %2847 = vmatpush1.msra.mxu0 0.0
    %2848 = vmatprep.mubr.f32.mxu0 0.0
    %v2849 = vand.u32 %v2765, 4294901760
    %v2850 = vsub.f32 %v2765, %v2849
    %v2851 = vand.u32 %v2850, 4294901760
    %v2852 = vsub.f32 %v2850, %v2851
    %v2853 = vand.u32 %v2852, 4294901760
    %2854 = vmatmul.mubr.f32.gmra.mrb[0].mxu0 %v2853
    %v2855 = vpop.f32.mrb[0].mxu0
    %v2856 = vpop.f32.mrb[0].mxu0
    %2857 = vmatprep.mubr.f32.mxu0 0.0
    %v2858 = vand.u32 %v2768, 4294901760
    %v2859 = vsub.f32 %v2768, %v2858
    %v2860 = vand.u32 %v2859, 4294901760
    %v2861 = vsub.f32 %v2859, %v2860
    %v2862 = vand.u32 %v2861, 4294901760
    %2863 = vmatmul.mubr.f32.gmra.mrb[0].mxu0 %v2862
    %v2864 = vpop.f32.mrb[0].mxu0
    %v2865 = vpop.f32.mrb[0].mxu0
    %2866 = vmatprep.mubr.f32.mxu0 0.0
    %v2867 = vand.u32 %v2771, 4294901760
    %v2868 = vsub.f32 %v2771, %v2867
    %v2869 = vand.u32 %v2868, 4294901760
    %v2870 = vsub.f32 %v2868, %v2869
    %v2871 = vand.u32 %v2870, 4294901760
    %2872 = vmatmul.mubr.f32.gmra.mrb[0].mxu0 %v2871
    %v2873 = vpop.f32.mrb[0].mxu0
    %v2874 = vpop.f32.mrb[0].mxu0
    %2875 = vmatprep.mubr.f32.mxu0 0.0
    %v2876 = vand.u32 %v2774, 4294901760
    %v2877 = vsub.f32 %v2774, %v2876
    %v2878 = vand.u32 %v2877, 4294901760
    %v2879 = vsub.f32 %v2877, %v2878
    %v2880 = vand.u32 %v2879, 4294901760
    %2881 = vmatmul.mubr.f32.gmra.mrb[0].mxu0 %v2880
    %v2882 = vpop.f32.mrb[0].mxu0
    %v2883 = vadd.f32 %v2763, %v2882
    %v2884 = vpop.f32.mrb[0].mxu0
    %2885 = vdwg.mxu0
    %2886 = vmatprep.subr.mxu0 0.0
    %v2887 = vand.u32 %v2751, 4294901760
    %v2888 = vsub.f32 %v2751, %v2887
    %v2889 = vand.u32 %v2888, 4294901760
    %v2890 = vsub.f32 %v2888, %v2889
    %v2891 = vand.u32 %v2890, 4294901760
    %2892 = vmatpush1.msra.mxu0 %v2891
    %2893 = vmatprep.subr.mxu0 0.0
    %v2894 = vand.u32 %v2752, 4294901760
    %v2895 = vsub.f32 %v2752, %v2894
    %v2896 = vand.u32 %v2895, 4294901760
    %v2897 = vsub.f32 %v2895, %v2896
    %v2898 = vand.u32 %v2897, 4294901760
    %2899 = vmatpush1.msra.mxu0 %v2898
    %2900 = vmatprep.subr.mxu0 0.0
    %v2901 = vand.u32 %v2753, 4294901760
    %v2902 = vsub.f32 %v2753, %v2901
    %v2903 = vand.u32 %v2902, 4294901760
    %v2904 = vsub.f32 %v2902, %v2903
    %v2905 = vand.u32 %v2904, 4294901760
    %2906 = vmatpush1.msra.mxu0 %v2905
    %2907 = vmatprep.subr.mxu0 0.0
    %v2908 = vand.u32 %v2754, 4294901760
    %v2909 = vsub.f32 %v2754, %v2908
    %v2910 = vand.u32 %v2909, 4294901760
    %v2911 = vsub.f32 %v2909, %v2910
    %v2912 = vand.u32 %v2911, 4294901760
    %2913 = vmatpush1.msra.mxu0 %v2912
    %2914 = vmatprep.subr.mxu0 0.0
    %v2915 = vand.u32 %v2755, 4294901760
    %v2916 = vsub.f32 %v2755, %v2915
    %v2917 = vand.u32 %v2916, 4294901760
    %v2918 = vsub.f32 %v2916, %v2917
    %v2919 = vand.u32 %v2918, 4294901760
    %2920 = vmatpush1.msra.mxu0 %v2919
    %2921 = vmatprep.subr.mxu0 0.0
    %v2922 = vand.u32 %v2756, 4294901760
    %v2923 = vsub.f32 %v2756, %v2922
    %v2924 = vand.u32 %v2923, 4294901760
    %v2925 = vsub.f32 %v2923, %v2924
    %v2926 = vand.u32 %v2925, 4294901760
    %2927 = vmatpush1.msra.mxu0 %v2926
    %2928 = vmatprep.subr.mxu0 0.0
    %v2929 = vand.u32 %v2757, 4294901760
    %v2930 = vsub.f32 %v2757, %v2929
    %v2931 = vand.u32 %v2930, 4294901760
    %v2932 = vsub.f32 %v2930, %v2931
    %v2933 = vand.u32 %v2932, 4294901760
    %2934 = vmatpush1.msra.mxu0 %v2933
    %2935 = vmatprep.subr.mxu0 0.0
    %v2936 = vand.u32 %v2758, 4294901760
    %v2937 = vsub.f32 %v2758, %v2936
    %v2938 = vand.u32 %v2937, 4294901760
    %v2939 = vsub.f32 %v2937, %v2938
    %v2940 = vand.u32 %v2939, 4294901760
    %2941 = vmatpush1.msra.mxu0 %v2940
    %2942 = vmatprep.subr.mxu0 0.0
    %2943 = vmatpush1.msra.mxu0 0.0
    %2944 = vmatprep.subr.mxu0 0.0
    %2945 = vmatpush1.msra.mxu0 0.0
    %2946 = vmatprep.subr.mxu0 0.0
    %2947 = vmatpush1.msra.mxu0 0.0
    %2948 = vmatprep.subr.mxu0 0.0
    %2949 = vmatpush1.msra.mxu0 0.0
    %2950 = vmatprep.subr.mxu0 0.0
    %2951 = vmatpush1.msra.mxu0 0.0
    %2952 = vmatprep.subr.mxu0 0.0
    %2953 = vmatpush1.msra.mxu0 0.0
    %2954 = vmatprep.subr.mxu0 0.0
    %2955 = vmatpush1.msra.mxu0 0.0
    %2956 = vmatprep.subr.mxu0 0.0
    %2957 = vmatpush1.msra.mxu0 0.0
    %2958 = vmatprep.subr.mxu0 0.0
    %2959 = vmatpush1.msra.mxu0 0.0
    %2960 = vmatprep.subr.mxu0 0.0
    %2961 = vmatpush1.msra.mxu0 0.0
    %2962 = vmatprep.subr.mxu0 0.0
    %2963 = vmatpush1.msra.mxu0 0.0
    %2964 = vmatprep.subr.mxu0 0.0
    %2965 = vmatpush1.msra.mxu0 0.0
    %2966 = vmatprep.subr.mxu0 0.0
    %2967 = vmatpush1.msra.mxu0 0.0
    %2968 = vmatprep.subr.mxu0 0.0
    %2969 = vmatpush1.msra.mxu0 0.0
    %2970 = vmatprep.subr.mxu0 0.0
    %2971 = vmatpush1.msra.mxu0 0.0
    %2972 = vmatprep.subr.mxu0 0.0
    %2973 = vmatpush1.msra.mxu0 0.0
    %2974 = vmatprep.subr.mxu0 0.0
    %2975 = vmatpush1.msra.mxu0 0.0
    %2976 = vmatprep.subr.mxu0 0.0
    %2977 = vmatpush1.msra.mxu0 0.0
    %2978 = vmatprep.subr.mxu0 0.0
    %2979 = vmatpush1.msra.mxu0 0.0
    %2980 = vmatprep.subr.mxu0 0.0
    %2981 = vmatpush1.msra.mxu0 0.0
    %2982 = vmatprep.subr.mxu0 0.0
    %2983 = vmatpush1.msra.mxu0 0.0
    %2984 = vmatprep.subr.mxu0 0.0
    %2985 = vmatpush1.msra.mxu0 0.0
    %2986 = vmatprep.subr.mxu0 0.0
    %2987 = vmatpush1.msra.mxu0 0.0
    %2988 = vmatprep.subr.mxu0 0.0
    %2989 = vmatpush1.msra.mxu0 0.0
    %2990 = vmatprep.mubr.f32.mxu0 0.0
    %v2991 = vand.u32 %v2765, 4294901760
    %2992 = vmatmul.mubr.f32.gmra.mrb[0].mxu0 %v2991
    %v2993 = vpop.f32.mrb[0].mxu0
    %v2994 = vpop.f32.mrb[0].mxu0
    %2995 = vmatprep.mubr.f32.mxu0 0.0
    %v2996 = vand.u32 %v2768, 4294901760
    %2997 = vmatmul.mubr.f32.gmra.mrb[0].mxu0 %v2996
    %v2998 = vpop.f32.mrb[0].mxu0
    %v2999 = vpop.f32.mrb[0].mxu0
    %3000 = vmatprep.mubr.f32.mxu0 0.0
    %v3001 = vand.u32 %v2771, 4294901760
    %3002 = vmatmul.mubr.f32.gmra.mrb[0].mxu0 %v3001
    %v3003 = vpop.f32.mrb[0].mxu0
    %v3004 = vpop.f32.mrb[0].mxu0
    %3005 = vmatprep.mubr.f32.mxu0 0.0
    %v3006 = vand.u32 %v2774, 4294901760
    %3007 = vmatmul.mubr.f32.gmra.mrb[0].mxu0 %v3006
    %v3008 = vpop.f32.mrb[0].mxu0
    %v3009 = vadd.f32 %v2883, %v3008
    %v3010 = vpop.f32.mrb[0].mxu0
    %3011 = vdwg.mxu0
    %3012 = vmatprep.subr.mxu0 0.0
    %v3013 = vand.u32 %v2751, 4294901760
    %v3014 = vsub.f32 %v2751, %v3013
    %3015 = vmatpush1.msra.mxu0 %v3014
    %3016 = vmatprep.subr.mxu0 0.0
    %v3017 = vand.u32 %v2752, 4294901760
    %v3018 = vsub.f32 %v2752, %v3017
    %3019 = vmatpush1.msra.mxu0 %v3018
    %3020 = vmatprep.subr.mxu0 0.0
    %v3021 = vand.u32 %v2753, 4294901760
    %v3022 = vsub.f32 %v2753, %v3021
    %3023 = vmatpush1.msra.mxu0 %v3022
    %3024 = vmatprep.subr.mxu0 0.0
    %v3025 = vand.u32 %v2754, 4294901760
    %v3026 = vsub.f32 %v2754, %v3025
    %3027 = vmatpush1.msra.mxu0 %v3026
    %3028 = vmatprep.subr.mxu0 0.0
    %v3029 = vand.u32 %v2755, 4294901760
    %v3030 = vsub.f32 %v2755, %v3029
    %3031 = vmatpush1.msra.mxu0 %v3030
    %3032 = vmatprep.subr.mxu0 0.0
    %v3033 = vand.u32 %v2756, 4294901760
    %v3034 = vsub.f32 %v2756, %v3033
    %3035 = vmatpush1.msra.mxu0 %v3034
    %3036 = vmatprep.subr.mxu0 0.0
    %v3037 = vand.u32 %v2757, 4294901760
    %v3038 = vsub.f32 %v2757, %v3037
    %3039 = vmatpush1.msra.mxu0 %v3038
    %3040 = vmatprep.subr.mxu0 0.0
    %v3041 = vand.u32 %v2758, 4294901760
    %v3042 = vsub.f32 %v2758, %v3041
    %3043 = vmatpush1.msra.mxu0 %v3042
    %3044 = vmatprep.subr.mxu0 0.0
    %3045 = vmatpush1.msra.mxu0 0.0
    %3046 = vmatprep.subr.mxu0 0.0
    %3047 = vmatpush1.msra.mxu0 0.0
    %3048 = vmatprep.subr.mxu0 0.0
    %3049 = vmatpush1.msra.mxu0 0.0
    %3050 = vmatprep.subr.mxu0 0.0
    %3051 = vmatpush1.msra.mxu0 0.0
    %3052 = vmatprep.subr.mxu0 0.0
    %3053 = vmatpush1.msra.mxu0 0.0
    %3054 = vmatprep.subr.mxu0 0.0
    %3055 = vmatpush1.msra.mxu0 0.0
    %3056 = vmatprep.subr.mxu0 0.0
    %3057 = vmatpush1.msra.mxu0 0.0
    %3058 = vmatprep.subr.mxu0 0.0
    %3059 = vmatpush1.msra.mxu0 0.0
    %3060 = vmatprep.subr.mxu0 0.0
    %3061 = vmatpush1.msra.mxu0 0.0
    %3062 = vmatprep.subr.mxu0 0.0
    %3063 = vmatpush1.msra.mxu0 0.0
    %3064 = vmatprep.subr.mxu0 0.0
    %3065 = vmatpush1.msra.mxu0 0.0
    %3066 = vmatprep.subr.mxu0 0.0
    %3067 = vmatpush1.msra.mxu0 0.0
    %3068 = vmatprep.subr.mxu0 0.0
    %3069 = vmatpush1.msra.mxu0 0.0
    %3070 = vmatprep.subr.mxu0 0.0
    %3071 = vmatpush1.msra.mxu0 0.0
    %3072 = vmatprep.subr.mxu0 0.0
    %3073 = vmatpush1.msra.mxu0 0.0
    %3074 = vmatprep.subr.mxu0 0.0
    %3075 = vmatpush1.msra.mxu0 0.0
    %3076 = vmatprep.subr.mxu0 0.0
    %3077 = vmatpush1.msra.mxu0 0.0
    %3078 = vmatprep.subr.mxu0 0.0
    %3079 = vmatpush1.msra.mxu0 0.0
    %3080 = vmatprep.subr.mxu0 0.0
    %3081 = vmatpush1.msra.mxu0 0.0
    %3082 = vmatprep.subr.mxu0 0.0
    %3083 = vmatpush1.msra.mxu0 0.0
    %3084 = vmatprep.subr.mxu0 0.0
    %3085 = vmatpush1.msra.mxu0 0.0
    %3086 = vmatprep.subr.mxu0 0.0
    %3087 = vmatpush1.msra.mxu0 0.0
    %3088 = vmatprep.subr.mxu0 0.0
    %3089 = vmatpush1.msra.mxu0 0.0
    %3090 = vmatprep.subr.mxu0 0.0
    %3091 = vmatpush1.msra.mxu0 0.0
    %3092 = vmatprep.mubr.f32.mxu0 0.0
    %v3093 = vand.u32 %v2765, 4294901760
    %v3094 = vsub.f32 %v2765, %v3093
    %3095 = vmatmul.mubr.f32.gmra.mrb[0].mxu0 %v3094
    %v3096 = vpop.f32.mrb[0].mxu0
    %v3097 = vpop.f32.mrb[0].mxu0
    %3098 = vmatprep.mubr.f32.mxu0 0.0
    %v3099 = vand.u32 %v2768, 4294901760
    %v3100 = vsub.f32 %v2768, %v3099
    %3101 = vmatmul.mubr.f32.gmra.mrb[0].mxu0 %v3100
    %v3102 = vpop.f32.mrb[0].mxu0
    %v3103 = vpop.f32.mrb[0].mxu0
    %3104 = vmatprep.mubr.f32.mxu0 0.0
    %v3105 = vand.u32 %v2771, 4294901760
    %v3106 = vsub.f32 %v2771, %v3105
    %3107 = vmatmul.mubr.f32.gmra.mrb[0].mxu0 %v3106
    %v3108 = vpop.f32.mrb[0].mxu0
    %v3109 = vpop.f32.mrb[0].mxu0
    %3110 = vmatprep.mubr.f32.mxu0 0.0
    %v3111 = vand.u32 %v2774, 4294901760
    %v3112 = vsub.f32 %v2774, %v3111
    %3113 = vmatmul.mubr.f32.gmra.mrb[0].mxu0 %v3112
    %v3114 = vpop.f32.mrb[0].mxu0
    %v3115 = vadd.f32 %v3009, %v3114
    %v3116 = vpop.f32.mrb[0].mxu0
    %3117 = vdwg.mxu0
    %3118 = vmatprep.subr.mxu0 0.0
    %v3119 = vand.u32 %v2751, 4294901760
    %3120 = vmatpush1.msra.mxu0 %v3119
    %3121 = vmatprep.subr.mxu0 0.0
    %v3122 = vand.u32 %v2752, 4294901760
    %3123 = vmatpush1.msra.mxu0 %v3122
    %3124 = vmatprep.subr.mxu0 0.0
    %v3125 = vand.u32 %v2753, 4294901760
    %3126 = vmatpush1.msra.mxu0 %v3125
    %3127 = vmatprep.subr.mxu0 0.0
    %v3128 = vand.u32 %v2754, 4294901760
    %3129 = vmatpush1.msra.mxu0 %v3128
    %3130 = vmatprep.subr.mxu0 0.0
    %v3131 = vand.u32 %v2755, 4294901760
    %3132 = vmatpush1.msra.mxu0 %v3131
    %3133 = vmatprep.subr.mxu0 0.0
    %v3134 = vand.u32 %v2756, 4294901760
    %3135 = vmatpush1.msra.mxu0 %v3134
    %3136 = vmatprep.subr.mxu0 0.0
    %v3137 = vand.u32 %v2757, 4294901760
    %3138 = vmatpush1.msra.mxu0 %v3137
    %3139 = vmatprep.subr.mxu0 0.0
    %v3140 = vand.u32 %v2758, 4294901760
    %3141 = vmatpush1.msra.mxu0 %v3140
    %3142 = vmatprep.subr.mxu0 0.0
    %3143 = vmatpush1.msra.mxu0 0.0
    %3144 = vmatprep.subr.mxu0 0.0
    %3145 = vmatpush1.msra.mxu0 0.0
    %3146 = vmatprep.subr.mxu0 0.0
    %3147 = vmatpush1.msra.mxu0 0.0
    %3148 = vmatprep.subr.mxu0 0.0
    %3149 = vmatpush1.msra.mxu0 0.0
    %3150 = vmatprep.subr.mxu0 0.0
    %3151 = vmatpush1.msra.mxu0 0.0
    %3152 = vmatprep.subr.mxu0 0.0
    %3153 = vmatpush1.msra.mxu0 0.0
    %3154 = vmatprep.subr.mxu0 0.0
    %3155 = vmatpush1.msra.mxu0 0.0
    %3156 = vmatprep.subr.mxu0 0.0
    %3157 = vmatpush1.msra.mxu0 0.0
    %3158 = vmatprep.subr.mxu0 0.0
    %3159 = vmatpush1.msra.mxu0 0.0
    %3160 = vmatprep.subr.mxu0 0.0
    %3161 = vmatpush1.msra.mxu0 0.0
    %3162 = vmatprep.subr.mxu0 0.0
    %3163 = vmatpush1.msra.mxu0 0.0
    %3164 = vmatprep.subr.mxu0 0.0
    %3165 = vmatpush1.msra.mxu0 0.0
    %3166 = vmatprep.subr.mxu0 0.0
    %3167 = vmatpush1.msra.mxu0 0.0
    %3168 = vmatprep.subr.mxu0 0.0
    %3169 = vmatpush1.msra.mxu0 0.0
    %3170 = vmatprep.subr.mxu0 0.0
    %3171 = vmatpush1.msra.mxu0 0.0
    %3172 = vmatprep.subr.mxu0 0.0
    %3173 = vmatpush1.msra.mxu0 0.0
    %3174 = vmatprep.subr.mxu0 0.0
    %3175 = vmatpush1.msra.mxu0 0.0
    %3176 = vmatprep.subr.mxu0 0.0
    %3177 = vmatpush1.msra.mxu0 0.0
    %3178 = vmatprep.subr.mxu0 0.0
    %3179 = vmatpush1.msra.mxu0 0.0
    %3180 = vmatprep.subr.mxu0 0.0
    %3181 = vmatpush1.msra.mxu0 0.0
    %3182 = vmatprep.subr.mxu0 0.0
    %3183 = vmatpush1.msra.mxu0 0.0
    %3184 = vmatprep.subr.mxu0 0.0
    %3185 = vmatpush1.msra.mxu0 0.0
    %3186 = vmatprep.subr.mxu0 0.0
    %3187 = vmatpush1.msra.mxu0 0.0
    %3188 = vmatprep.subr.mxu0 0.0
    %3189 = vmatpush1.msra.mxu0 0.0
    %3190 = vmatprep.mubr.f32.mxu0 0.0
    %v3191 = vand.u32 %v2765, 4294901760
    %v3192 = vsub.f32 %v2765, %v3191
    %v3193 = vand.u32 %v3192, 4294901760
    %3194 = vmatmul.mubr.f32.gmra.mrb[0].mxu0 %v3193
    %v3195 = vpop.f32.mrb[0].mxu0
    %v3196 = vpop.f32.mrb[0].mxu0
    %3197 = vmatprep.mubr.f32.mxu0 0.0
    %v3198 = vand.u32 %v2768, 4294901760
    %v3199 = vsub.f32 %v2768, %v3198
    %v3200 = vand.u32 %v3199, 4294901760
    %3201 = vmatmul.mubr.f32.gmra.mrb[0].mxu0 %v3200
    %v3202 = vpop.f32.mrb[0].mxu0
    %v3203 = vpop.f32.mrb[0].mxu0
    %3204 = vmatprep.mubr.f32.mxu0 0.0
    %v3205 = vand.u32 %v2771, 4294901760
    %v3206 = vsub.f32 %v2771, %v3205
    %v3207 = vand.u32 %v3206, 4294901760
    %3208 = vmatmul.mubr.f32.gmra.mrb[0].mxu0 %v3207
    %v3209 = vpop.f32.mrb[0].mxu0
    %v3210 = vpop.f32.mrb[0].mxu0
    %3211 = vmatprep.mubr.f32.mxu0 0.0
    %v3212 = vand.u32 %v2774, 4294901760
    %v3213 = vsub.f32 %v2774, %v3212
    %v3214 = vand.u32 %v3213, 4294901760
    %3215 = vmatmul.mubr.f32.gmra.mrb[0].mxu0 %v3214
    %v3216 = vpop.f32.mrb[0].mxu0
    %v3217 = vadd.f32 %v3115, %v3216
    %v3218 = vpop.f32.mrb[0].mxu0
    %3219 = vdwg.mxu0
    %3220 = vmatprep.subr.mxu0 0.0
    %v3221 = vand.u32 %v2751, 4294901760
    %v3222 = vsub.f32 %v2751, %v3221
    %v3223 = vand.u32 %v3222, 4294901760
    %3224 = vmatpush1.msra.mxu0 %v3223
    %3225 = vmatprep.subr.mxu0 0.0
    %v3226 = vand.u32 %v2752, 4294901760
    %v3227 = vsub.f32 %v2752, %v3226
    %v3228 = vand.u32 %v3227, 4294901760
    %3229 = vmatpush1.msra.mxu0 %v3228
    %3230 = vmatprep.subr.mxu0 0.0
    %v3231 = vand.u32 %v2753, 4294901760
    %v3232 = vsub.f32 %v2753, %v3231
    %v3233 = vand.u32 %v3232, 4294901760
    %3234 = vmatpush1.msra.mxu0 %v3233
    %3235 = vmatprep.subr.mxu0 0.0
    %v3236 = vand.u32 %v2754, 4294901760
    %v3237 = vsub.f32 %v2754, %v3236
    %v3238 = vand.u32 %v3237, 4294901760
    %3239 = vmatpush1.msra.mxu0 %v3238
    %3240 = vmatprep.subr.mxu0 0.0
    %v3241 = vand.u32 %v2755, 4294901760
    %v3242 = vsub.f32 %v2755, %v3241
    %v3243 = vand.u32 %v3242, 4294901760
    %3244 = vmatpush1.msra.mxu0 %v3243
    %3245 = vmatprep.subr.mxu0 0.0
    %v3246 = vand.u32 %v2756, 4294901760
    %v3247 = vsub.f32 %v2756, %v3246
    %v3248 = vand.u32 %v3247, 4294901760
    %3249 = vmatpush1.msra.mxu0 %v3248
    %3250 = vmatprep.subr.mxu0 0.0
    %v3251 = vand.u32 %v2757, 4294901760
    %v3252 = vsub.f32 %v2757, %v3251
    %v3253 = vand.u32 %v3252, 4294901760
    %3254 = vmatpush1.msra.mxu0 %v3253
    %3255 = vmatprep.subr.mxu0 0.0
    %v3256 = vand.u32 %v2758, 4294901760
    %v3257 = vsub.f32 %v2758, %v3256
    %v3258 = vand.u32 %v3257, 4294901760
    %3259 = vmatpush1.msra.mxu0 %v3258
    %3260 = vmatprep.subr.mxu0 0.0
    %3261 = vmatpush1.msra.mxu0 0.0
    %3262 = vmatprep.subr.mxu0 0.0
    %3263 = vmatpush1.msra.mxu0 0.0
    %3264 = vmatprep.subr.mxu0 0.0
    %3265 = vmatpush1.msra.mxu0 0.0
    %3266 = vmatprep.subr.mxu0 0.0
    %3267 = vmatpush1.msra.mxu0 0.0
    %3268 = vmatprep.subr.mxu0 0.0
    %3269 = vmatpush1.msra.mxu0 0.0
    %3270 = vmatprep.subr.mxu0 0.0
    %3271 = vmatpush1.msra.mxu0 0.0
    %3272 = vmatprep.subr.mxu0 0.0
    %3273 = vmatpush1.msra.mxu0 0.0
    %3274 = vmatprep.subr.mxu0 0.0
    %3275 = vmatpush1.msra.mxu0 0.0
    %3276 = vmatprep.subr.mxu0 0.0
    %3277 = vmatpush1.msra.mxu0 0.0
    %3278 = vmatprep.subr.mxu0 0.0
    %3279 = vmatpush1.msra.mxu0 0.0
    %3280 = vmatprep.subr.mxu0 0.0
    %3281 = vmatpush1.msra.mxu0 0.0
    %3282 = vmatprep.subr.mxu0 0.0
    %3283 = vmatpush1.msra.mxu0 0.0
    %3284 = vmatprep.subr.mxu0 0.0
    %3285 = vmatpush1.msra.mxu0 0.0
    %3286 = vmatprep.subr.mxu0 0.0
    %3287 = vmatpush1.msra.mxu0 0.0
    %3288 = vmatprep.subr.mxu0 0.0
    %3289 = vmatpush1.msra.mxu0 0.0
    %3290 = vmatprep.subr.mxu0 0.0
    %3291 = vmatpush1.msra.mxu0 0.0
    %3292 = vmatprep.subr.mxu0 0.0
    %3293 = vmatpush1.msra.mxu0 0.0
    %3294 = vmatprep.subr.mxu0 0.0
    %3295 = vmatpush1.msra.mxu0 0.0
    %3296 = vmatprep.subr.mxu0 0.0
    %3297 = vmatpush1.msra.mxu0 0.0
    %3298 = vmatprep.subr.mxu0 0.0
    %3299 = vmatpush1.msra.mxu0 0.0
    %3300 = vmatprep.subr.mxu0 0.0
    %3301 = vmatpush1.msra.mxu0 0.0
    %3302 = vmatprep.subr.mxu0 0.0
    %3303 = vmatpush1.msra.mxu0 0.0
    %3304 = vmatprep.subr.mxu0 0.0
    %3305 = vmatpush1.msra.mxu0 0.0
    %3306 = vmatprep.subr.mxu0 0.0
    %3307 = vmatpush1.msra.mxu0 0.0
    %3308 = vmatprep.mubr.f32.mxu0 0.0
    %v3309 = vand.u32 %v2765, 4294901760
    %3310 = vmatmul.mubr.f32.gmra.mrb[0].mxu0 %v3309
    %v3311 = vpop.f32.mrb[0].mxu0
    %v3312 = vpop.f32.mrb[0].mxu0
    %3313 = vmatprep.mubr.f32.mxu0 0.0
    %v3314 = vand.u32 %v2768, 4294901760
    %3315 = vmatmul.mubr.f32.gmra.mrb[0].mxu0 %v3314
    %v3316 = vpop.f32.mrb[0].mxu0
    %v3317 = vpop.f32.mrb[0].mxu0
    %3318 = vmatprep.mubr.f32.mxu0 0.0
    %v3319 = vand.u32 %v2771, 4294901760
    %3320 = vmatmul.mubr.f32.gmra.mrb[0].mxu0 %v3319
    %v3321 = vpop.f32.mrb[0].mxu0
    %v3322 = vpop.f32.mrb[0].mxu0
    %3323 = vmatprep.mubr.f32.mxu0 0.0
    %v3324 = vand.u32 %v2774, 4294901760
    %3325 = vmatmul.mubr.f32.gmra.mrb[0].mxu0 %v3324
    %v3326 = vpop.f32.mrb[0].mxu0
    %v3327 = vadd.f32 %v3217, %v3326
    %v3328 = vpop.f32.mrb[0].mxu0
    %3329 = vdwg.mxu0
    %3330 = vmatprep.subr.mxu0 0.0
    %v3331 = vand.u32 %v2751, 4294901760
    %3332 = vmatpush1.msra.mxu0 %v3331
    %3333 = vmatprep.subr.mxu0 0.0
    %v3334 = vand.u32 %v2752, 4294901760
    %3335 = vmatpush1.msra.mxu0 %v3334
    %3336 = vmatprep.subr.mxu0 0.0
    %v3337 = vand.u32 %v2753, 4294901760
    %3338 = vmatpush1.msra.mxu0 %v3337
    %3339 = vmatprep.subr.mxu0 0.0
    %v3340 = vand.u32 %v2754, 4294901760
    %3341 = vmatpush1.msra.mxu0 %v3340
    %3342 = vmatprep.subr.mxu0 0.0
    %v3343 = vand.u32 %v2755, 4294901760
    %3344 = vmatpush1.msra.mxu0 %v3343
    %3345 = vmatprep.subr.mxu0 0.0
    %v3346 = vand.u32 %v2756, 4294901760
    %3347 = vmatpush1.msra.mxu0 %v3346
    %3348 = vmatprep.subr.mxu0 0.0
    %v3349 = vand.u32 %v2757, 4294901760
    %3350 = vmatpush1.msra.mxu0 %v3349
    %3351 = vmatprep.subr.mxu0 0.0
    %v3352 = vand.u32 %v2758, 4294901760
    %3353 = vmatpush1.msra.mxu0 %v3352
    %3354 = vmatprep.subr.mxu0 0.0
    %3355 = vmatpush1.msra.mxu0 0.0
    %3356 = vmatprep.subr.mxu0 0.0
    %3357 = vmatpush1.msra.mxu0 0.0
    %3358 = vmatprep.subr.mxu0 0.0
    %3359 = vmatpush1.msra.mxu0 0.0
    %3360 = vmatprep.subr.mxu0 0.0
    %3361 = vmatpush1.msra.mxu0 0.0
    %3362 = vmatprep.subr.mxu0 0.0
    %3363 = vmatpush1.msra.mxu0 0.0
    %3364 = vmatprep.subr.mxu0 0.0
    %3365 = vmatpush1.msra.mxu0 0.0
    %3366 = vmatprep.subr.mxu0 0.0
    %3367 = vmatpush1.msra.mxu0 0.0
    %3368 = vmatprep.subr.mxu0 0.0
    %3369 = vmatpush1.msra.mxu0 0.0
    %3370 = vmatprep.subr.mxu0 0.0
    %3371 = vmatpush1.msra.mxu0 0.0
    %3372 = vmatprep.subr.mxu0 0.0
    %3373 = vmatpush1.msra.mxu0 0.0
    %3374 = vmatprep.subr.mxu0 0.0
    %3375 = vmatpush1.msra.mxu0 0.0
    %3376 = vmatprep.subr.mxu0 0.0
    %3377 = vmatpush1.msra.mxu0 0.0
    %3378 = vmatprep.subr.mxu0 0.0
    %3379 = vmatpush1.msra.mxu0 0.0
    %3380 = vmatprep.subr.mxu0 0.0
    %3381 = vmatpush1.msra.mxu0 0.0
    %3382 = vmatprep.subr.mxu0 0.0
    %3383 = vmatpush1.msra.mxu0 0.0
    %3384 = vmatprep.subr.mxu0 0.0
    %3385 = vmatpush1.msra.mxu0 0.0
    %3386 = vmatprep.subr.mxu0 0.0
    %3387 = vmatpush1.msra.mxu0 0.0
    %3388 = vmatprep.subr.mxu0 0.0
    %3389 = vmatpush1.msra.mxu0 0.0
    %3390 = vmatprep.subr.mxu0 0.0
    %3391 = vmatpush1.msra.mxu0 0.0
    %3392 = vmatprep.subr.mxu0 0.0
    %3393 = vmatpush1.msra.mxu0 0.0
    %3394 = vmatprep.subr.mxu0 0.0
    %3395 = vmatpush1.msra.mxu0 0.0
    %3396 = vmatprep.subr.mxu0 0.0
    %3397 = vmatpush1.msra.mxu0 0.0
    %3398 = vmatprep.subr.mxu0 0.0
    %3399 = vmatpush1.msra.mxu0 0.0
    %3400 = vmatprep.subr.mxu0 0.0
    %3401 = vmatpush1.msra.mxu0 0.0
    %3402 = vmatprep.mubr.f32.mxu0 0.0
    %v3403 = vand.u32 %v2765, 4294901760
    %3404 = vmatmul.mubr.f32.gmra.mrb[0].mxu0 %v3403
    %v3405 = vpop.f32.mrb[0].mxu0
    %v3406 = vpop.f32.mrb[0].mxu0
    %3407 = vmatprep.mubr.f32.mxu0 0.0
    %v3408 = vand.u32 %v2768, 4294901760
    %3409 = vmatmul.mubr.f32.gmra.mrb[0].mxu0 %v3408
    %v3410 = vpop.f32.mrb[0].mxu0
    %v3411 = vpop.f32.mrb[0].mxu0
    %3412 = vmatprep.mubr.f32.mxu0 0.0
    %v3413 = vand.u32 %v2771, 4294901760
    %3414 = vmatmul.mubr.f32.gmra.mrb[0].mxu0 %v3413
    %v3415 = vpop.f32.mrb[0].mxu0
    %v3416 = vpop.f32.mrb[0].mxu0
    %3417 = vmatprep.mubr.f32.mxu0 0.0
    %v3418 = vand.u32 %v2774, 4294901760
    %3419 = vmatmul.mubr.f32.gmra.mrb[0].mxu0 %v3418
    %v3420 = vpop.f32.mrb[0].mxu0
    %v3421 = vadd.f32 %v3327, %v3420
    %v3422 = vpop.f32.mrb[0].mxu0
    %3423 = vdwg.mxu0
    %v3424 = vmax.f32 %v3421, 0.0
    %v3425 = vadd.f32 %v3424, %v1991
    %v3426 = vmax.f32 %v3425, 0.0
    %v3427 = vld [vmem:[#allocation2 + $0xf8] sm:$0xff]
    %v3428 = vld [vmem:[#allocation2 + $0x100] sm:$0xff]
    %v3429 = vld [vmem:[#allocation2 + $0x108] sm:$0xff]
    %v3430 = vld [vmem:[#allocation2 + $0x110] sm:$0xff]
    %v3431 = vld [vmem:[#allocation2 + $0x118] sm:$0x1]
    %v3432 = vlaneseq
    %v3433 = vshrl.u32 %v3432, 7
    %v3434 = vsub.s32 0, %v3433
    %v3435 = vrot.slane %v3431, %v3434
    %v3437 = vrot.slane %v3426, 6
    %v3438 = vsel %vm690, %v3437, 0
    %3440 = vmatprep.subr.mxu0 0.0
    %v3441 = vand.u32 %v3427, 4294901760
    %3442 = vmatpush1.msra.mxu0 %v3441
    %3443 = vmatprep.subr.mxu0 0.0
    %v3444 = vand.u32 %v3428, 4294901760
    %3445 = vmatpush1.msra.mxu0 %v3444
    %3446 = vmatprep.subr.mxu0 0.0
    %v3447 = vand.u32 %v3429, 4294901760
    %3448 = vmatpush1.msra.mxu0 %v3447
    %3449 = vmatprep.subr.mxu0 0.0
    %v3450 = vand.u32 %v3430, 4294901760
    %3451 = vmatpush1.msra.mxu0 %v3450
    %3452 = vmatprep.subr.mxu0 0.0
    %3453 = vmatpush1.msra.mxu0 0.0
    %3454 = vmatprep.subr.mxu0 0.0
    %3455 = vmatpush1.msra.mxu0 0.0
    %3456 = vmatprep.subr.mxu0 0.0
    %3457 = vmatpush1.msra.mxu0 0.0
    %3458 = vmatprep.subr.mxu0 0.0
    %3459 = vmatpush1.msra.mxu0 0.0
    %3460 = vmatprep.subr.mxu0 0.0
    %3461 = vmatpush1.msra.mxu0 0.0
    %3462 = vmatprep.subr.mxu0 0.0
    %3463 = vmatpush1.msra.mxu0 0.0
    %3464 = vmatprep.subr.mxu0 0.0
    %3465 = vmatpush1.msra.mxu0 0.0
    %3466 = vmatprep.subr.mxu0 0.0
    %3467 = vmatpush1.msra.mxu0 0.0
    %3468 = vmatprep.subr.mxu0 0.0
    %3469 = vmatpush1.msra.mxu0 0.0
    %3470 = vmatprep.subr.mxu0 0.0
    %3471 = vmatpush1.msra.mxu0 0.0
    %3472 = vmatprep.subr.mxu0 0.0
    %3473 = vmatpush1.msra.mxu0 0.0
    %3474 = vmatprep.subr.mxu0 0.0
    %3475 = vmatpush1.msra.mxu0 0.0
    %3476 = vmatprep.subr.mxu0 0.0
    %3477 = vmatpush1.msra.mxu0 0.0
    %3478 = vmatprep.subr.mxu0 0.0
    %3479 = vmatpush1.msra.mxu0 0.0
    %3480 = vmatprep.subr.mxu0 0.0
    %3481 = vmatpush1.msra.mxu0 0.0
    %3482 = vmatprep.subr.mxu0 0.0
    %3483 = vmatpush1.msra.mxu0 0.0
    %3484 = vmatprep.subr.mxu0 0.0
    %3485 = vmatpush1.msra.mxu0 0.0
    %3486 = vmatprep.subr.mxu0 0.0
    %3487 = vmatpush1.msra.mxu0 0.0
    %3488 = vmatprep.subr.mxu0 0.0
    %3489 = vmatpush1.msra.mxu0 0.0
    %3490 = vmatprep.subr.mxu0 0.0
    %3491 = vmatpush1.msra.mxu0 0.0
    %3492 = vmatprep.subr.mxu0 0.0
    %3493 = vmatpush1.msra.mxu0 0.0
    %3494 = vmatprep.subr.mxu0 0.0
    %3495 = vmatpush1.msra.mxu0 0.0
    %3496 = vmatprep.subr.mxu0 0.0
    %3497 = vmatpush1.msra.mxu0 0.0
    %3498 = vmatprep.subr.mxu0 0.0
    %3499 = vmatpush1.msra.mxu0 0.0
    %3500 = vmatprep.subr.mxu0 0.0
    %3501 = vmatpush1.msra.mxu0 0.0
    %3502 = vmatprep.subr.mxu0 0.0
    %3503 = vmatpush1.msra.mxu0 0.0
    %3504 = vmatprep.subr.mxu0 0.0
    %3505 = vmatpush1.msra.mxu0 0.0
    %3506 = vmatprep.subr.mxu0 0.0
    %3507 = vmatpush1.msra.mxu0 0.0
    %3508 = vmatprep.mubr.f32.mxu0 0.0
    %v3509 = vand.u32 %v3438, 4294901760
    %v3510 = vsub.f32 %v3438, %v3509
    %v3511 = vand.u32 %v3510, 4294901760
    %v3512 = vsub.f32 %v3510, %v3511
    %v3513 = vand.u32 %v3512, 4294901760
    %3514 = vmatmul.mubr.f32.gmra.mrb[0].mxu0 %v3513
    %v3515 = vpop.f32.mrb[0].mxu0
    %v3516 = vadd.f32 %v3435, %v3515
    %v3517 = vpop.f32.mrb[0].mxu0
    %3518 = vdwg.mxu0
    %3519 = vmatprep.subr.mxu0 0.0
    %v3520 = vand.u32 %v3427, 4294901760
    %v3521 = vsub.f32 %v3427, %v3520
    %v3522 = vand.u32 %v3521, 4294901760
    %v3523 = vsub.f32 %v3521, %v3522
    %v3524 = vand.u32 %v3523, 4294901760
    %3525 = vmatpush1.msra.mxu0 %v3524
    %3526 = vmatprep.subr.mxu0 0.0
    %v3527 = vand.u32 %v3428, 4294901760
    %v3528 = vsub.f32 %v3428, %v3527
    %v3529 = vand.u32 %v3528, 4294901760
    %v3530 = vsub.f32 %v3528, %v3529
    %v3531 = vand.u32 %v3530, 4294901760
    %3532 = vmatpush1.msra.mxu0 %v3531
    %3533 = vmatprep.subr.mxu0 0.0
    %v3534 = vand.u32 %v3429, 4294901760
    %v3535 = vsub.f32 %v3429, %v3534
    %v3536 = vand.u32 %v3535, 4294901760
    %v3537 = vsub.f32 %v3535, %v3536
    %v3538 = vand.u32 %v3537, 4294901760
    %3539 = vmatpush1.msra.mxu0 %v3538
    %3540 = vmatprep.subr.mxu0 0.0
    %v3541 = vand.u32 %v3430, 4294901760
    %v3542 = vsub.f32 %v3430, %v3541
    %v3543 = vand.u32 %v3542, 4294901760
    %v3544 = vsub.f32 %v3542, %v3543
    %v3545 = vand.u32 %v3544, 4294901760
    %3546 = vmatpush1.msra.mxu0 %v3545
    %3547 = vmatprep.subr.mxu0 0.0
    %3548 = vmatpush1.msra.mxu0 0.0
    %3549 = vmatprep.subr.mxu0 0.0
    %3550 = vmatpush1.msra.mxu0 0.0
    %3551 = vmatprep.subr.mxu0 0.0
    %3552 = vmatpush1.msra.mxu0 0.0
    %3553 = vmatprep.subr.mxu0 0.0
    %3554 = vmatpush1.msra.mxu0 0.0
    %3555 = vmatprep.subr.mxu0 0.0
    %3556 = vmatpush1.msra.mxu0 0.0
    %3557 = vmatprep.subr.mxu0 0.0
    %3558 = vmatpush1.msra.mxu0 0.0
    %3559 = vmatprep.subr.mxu0 0.0
    %3560 = vmatpush1.msra.mxu0 0.0
    %3561 = vmatprep.subr.mxu0 0.0
    %3562 = vmatpush1.msra.mxu0 0.0
    %3563 = vmatprep.subr.mxu0 0.0
    %3564 = vmatpush1.msra.mxu0 0.0
    %3565 = vmatprep.subr.mxu0 0.0
    %3566 = vmatpush1.msra.mxu0 0.0
    %3567 = vmatprep.subr.mxu0 0.0
    %3568 = vmatpush1.msra.mxu0 0.0
    %3569 = vmatprep.subr.mxu0 0.0
    %3570 = vmatpush1.msra.mxu0 0.0
    %3571 = vmatprep.subr.mxu0 0.0
    %3572 = vmatpush1.msra.mxu0 0.0
    %3573 = vmatprep.subr.mxu0 0.0
    %3574 = vmatpush1.msra.mxu0 0.0
    %3575 = vmatprep.subr.mxu0 0.0
    %3576 = vmatpush1.msra.mxu0 0.0
    %3577 = vmatprep.subr.mxu0 0.0
    %3578 = vmatpush1.msra.mxu0 0.0
    %3579 = vmatprep.subr.mxu0 0.0
    %3580 = vmatpush1.msra.mxu0 0.0
    %3581 = vmatprep.subr.mxu0 0.0
    %3582 = vmatpush1.msra.mxu0 0.0
    %3583 = vmatprep.subr.mxu0 0.0
    %3584 = vmatpush1.msra.mxu0 0.0
    %3585 = vmatprep.subr.mxu0 0.0
    %3586 = vmatpush1.msra.mxu0 0.0
    %3587 = vmatprep.subr.mxu0 0.0
    %3588 = vmatpush1.msra.mxu0 0.0
    %3589 = vmatprep.subr.mxu0 0.0
    %3590 = vmatpush1.msra.mxu0 0.0
    %3591 = vmatprep.subr.mxu0 0.0
    %3592 = vmatpush1.msra.mxu0 0.0
    %3593 = vmatprep.subr.mxu0 0.0
    %3594 = vmatpush1.msra.mxu0 0.0
    %3595 = vmatprep.subr.mxu0 0.0
    %3596 = vmatpush1.msra.mxu0 0.0
    %3597 = vmatprep.subr.mxu0 0.0
    %3598 = vmatpush1.msra.mxu0 0.0
    %3599 = vmatprep.subr.mxu0 0.0
    %3600 = vmatpush1.msra.mxu0 0.0
    %3601 = vmatprep.subr.mxu0 0.0
    %3602 = vmatpush1.msra.mxu0 0.0
    %3603 = vmatprep.mubr.f32.mxu0 0.0
    %v3604 = vand.u32 %v3438, 4294901760
    %3605 = vmatmul.mubr.f32.gmra.mrb[0].mxu0 %v3604
    %v3606 = vpop.f32.mrb[0].mxu0
    %v3607 = vadd.f32 %v3516, %v3606
    %v3608 = vpop.f32.mrb[0].mxu0
    %3609 = vdwg.mxu0
    %3610 = vmatprep.subr.mxu0 0.0
    %v3611 = vand.u32 %v3427, 4294901760
    %v3612 = vsub.f32 %v3427, %v3611
    %3613 = vmatpush1.msra.mxu0 %v3612
    %3614 = vmatprep.subr.mxu0 0.0
    %v3615 = vand.u32 %v3428, 4294901760
    %v3616 = vsub.f32 %v3428, %v3615
    %3617 = vmatpush1.msra.mxu0 %v3616
    %3618 = vmatprep.subr.mxu0 0.0
    %v3619 = vand.u32 %v3429, 4294901760
    %v3620 = vsub.f32 %v3429, %v3619
    %3621 = vmatpush1.msra.mxu0 %v3620
    %3622 = vmatprep.subr.mxu0 0.0
    %v3623 = vand.u32 %v3430, 4294901760
    %v3624 = vsub.f32 %v3430, %v3623
    %3625 = vmatpush1.msra.mxu0 %v3624
    %3626 = vmatprep.subr.mxu0 0.0
    %3627 = vmatpush1.msra.mxu0 0.0
    %3628 = vmatprep.subr.mxu0 0.0
    %3629 = vmatpush1.msra.mxu0 0.0
    %3630 = vmatprep.subr.mxu0 0.0
    %3631 = vmatpush1.msra.mxu0 0.0
    %3632 = vmatprep.subr.mxu0 0.0
    %3633 = vmatpush1.msra.mxu0 0.0
    %3634 = vmatprep.subr.mxu0 0.0
    %3635 = vmatpush1.msra.mxu0 0.0
    %3636 = vmatprep.subr.mxu0 0.0
    %3637 = vmatpush1.msra.mxu0 0.0
    %3638 = vmatprep.subr.mxu0 0.0
    %3639 = vmatpush1.msra.mxu0 0.0
    %3640 = vmatprep.subr.mxu0 0.0
    %3641 = vmatpush1.msra.mxu0 0.0
    %3642 = vmatprep.subr.mxu0 0.0
    %3643 = vmatpush1.msra.mxu0 0.0
    %3644 = vmatprep.subr.mxu0 0.0
    %3645 = vmatpush1.msra.mxu0 0.0
    %3646 = vmatprep.subr.mxu0 0.0
    %3647 = vmatpush1.msra.mxu0 0.0
    %3648 = vmatprep.subr.mxu0 0.0
    %3649 = vmatpush1.msra.mxu0 0.0
    %3650 = vmatprep.subr.mxu0 0.0
    %3651 = vmatpush1.msra.mxu0 0.0
    %3652 = vmatprep.subr.mxu0 0.0
    %3653 = vmatpush1.msra.mxu0 0.0
    %3654 = vmatprep.subr.mxu0 0.0
    %3655 = vmatpush1.msra.mxu0 0.0
    %3656 = vmatprep.subr.mxu0 0.0
    %3657 = vmatpush1.msra.mxu0 0.0
    %3658 = vmatprep.subr.mxu0 0.0
    %3659 = vmatpush1.msra.mxu0 0.0
    %3660 = vmatprep.subr.mxu0 0.0
    %3661 = vmatpush1.msra.mxu0 0.0
    %3662 = vmatprep.subr.mxu0 0.0
    %3663 = vmatpush1.msra.mxu0 0.0
    %3664 = vmatprep.subr.mxu0 0.0
    %3665 = vmatpush1.msra.mxu0 0.0
    %3666 = vmatprep.subr.mxu0 0.0
    %3667 = vmatpush1.msra.mxu0 0.0
    %3668 = vmatprep.subr.mxu0 0.0
    %3669 = vmatpush1.msra.mxu0 0.0
    %3670 = vmatprep.subr.mxu0 0.0
    %3671 = vmatpush1.msra.mxu0 0.0
    %3672 = vmatprep.subr.mxu0 0.0
    %3673 = vmatpush1.msra.mxu0 0.0
    %3674 = vmatprep.subr.mxu0 0.0
    %3675 = vmatpush1.msra.mxu0 0.0
    %3676 = vmatprep.subr.mxu0 0.0
    %3677 = vmatpush1.msra.mxu0 0.0
    %3678 = vmatprep.subr.mxu0 0.0
    %3679 = vmatpush1.msra.mxu0 0.0
    %3680 = vmatprep.subr.mxu0 0.0
    %3681 = vmatpush1.msra.mxu0 0.0
    %3682 = vmatprep.mubr.f32.mxu0 0.0
    %v3683 = vand.u32 %v3438, 4294901760
    %v3684 = vsub.f32 %v3438, %v3683
    %3685 = vmatmul.mubr.f32.gmra.mrb[0].mxu0 %v3684
    %v3686 = vpop.f32.mrb[0].mxu0
    %v3687 = vadd.f32 %v3607, %v3686
    %v3688 = vpop.f32.mrb[0].mxu0
    %3689 = vdwg.mxu0
    %3690 = vmatprep.subr.mxu0 0.0
    %v3691 = vand.u32 %v3427, 4294901760
    %3692 = vmatpush1.msra.mxu0 %v3691
    %3693 = vmatprep.subr.mxu0 0.0
    %v3694 = vand.u32 %v3428, 4294901760
    %3695 = vmatpush1.msra.mxu0 %v3694
    %3696 = vmatprep.subr.mxu0 0.0
    %v3697 = vand.u32 %v3429, 4294901760
    %3698 = vmatpush1.msra.mxu0 %v3697
    %3699 = vmatprep.subr.mxu0 0.0
    %v3700 = vand.u32 %v3430, 4294901760
    %3701 = vmatpush1.msra.mxu0 %v3700
    %3702 = vmatprep.subr.mxu0 0.0
    %3703 = vmatpush1.msra.mxu0 0.0
    %3704 = vmatprep.subr.mxu0 0.0
    %3705 = vmatpush1.msra.mxu0 0.0
    %3706 = vmatprep.subr.mxu0 0.0
    %3707 = vmatpush1.msra.mxu0 0.0
    %3708 = vmatprep.subr.mxu0 0.0
    %3709 = vmatpush1.msra.mxu0 0.0
    %3710 = vmatprep.subr.mxu0 0.0
    %3711 = vmatpush1.msra.mxu0 0.0
    %3712 = vmatprep.subr.mxu0 0.0
    %3713 = vmatpush1.msra.mxu0 0.0
    %3714 = vmatprep.subr.mxu0 0.0
    %3715 = vmatpush1.msra.mxu0 0.0
    %3716 = vmatprep.subr.mxu0 0.0
    %3717 = vmatpush1.msra.mxu0 0.0
    %3718 = vmatprep.subr.mxu0 0.0
    %3719 = vmatpush1.msra.mxu0 0.0
    %3720 = vmatprep.subr.mxu0 0.0
    %3721 = vmatpush1.msra.mxu0 0.0
    %3722 = vmatprep.subr.mxu0 0.0
    %3723 = vmatpush1.msra.mxu0 0.0
    %3724 = vmatprep.subr.mxu0 0.0
    %3725 = vmatpush1.msra.mxu0 0.0
    %3726 = vmatprep.subr.mxu0 0.0
    %3727 = vmatpush1.msra.mxu0 0.0
    %3728 = vmatprep.subr.mxu0 0.0
    %3729 = vmatpush1.msra.mxu0 0.0
    %3730 = vmatprep.subr.mxu0 0.0
    %3731 = vmatpush1.msra.mxu0 0.0
    %3732 = vmatprep.subr.mxu0 0.0
    %3733 = vmatpush1.msra.mxu0 0.0
    %3734 = vmatprep.subr.mxu0 0.0
    %3735 = vmatpush1.msra.mxu0 0.0
    %3736 = vmatprep.subr.mxu0 0.0
    %3737 = vmatpush1.msra.mxu0 0.0
    %3738 = vmatprep.subr.mxu0 0.0
    %3739 = vmatpush1.msra.mxu0 0.0
    %3740 = vmatprep.subr.mxu0 0.0
    %3741 = vmatpush1.msra.mxu0 0.0
    %3742 = vmatprep.subr.mxu0 0.0
    %3743 = vmatpush1.msra.mxu0 0.0
    %3744 = vmatprep.subr.mxu0 0.0
    %3745 = vmatpush1.msra.mxu0 0.0
    %3746 = vmatprep.subr.mxu0 0.0
    %3747 = vmatpush1.msra.mxu0 0.0
    %3748 = vmatprep.subr.mxu0 0.0
    %3749 = vmatpush1.msra.mxu0 0.0
    %3750 = vmatprep.subr.mxu0 0.0
    %3751 = vmatpush1.msra.mxu0 0.0
    %3752 = vmatprep.subr.mxu0 0.0
    %3753 = vmatpush1.msra.mxu0 0.0
    %3754 = vmatprep.subr.mxu0 0.0
    %3755 = vmatpush1.msra.mxu0 0.0
    %3756 = vmatprep.subr.mxu0 0.0
    %3757 = vmatpush1.msra.mxu0 0.0
    %3758 = vmatprep.mubr.f32.mxu0 0.0
    %v3759 = vand.u32 %v3438, 4294901760
    %v3760 = vsub.f32 %v3438, %v3759
    %v3761 = vand.u32 %v3760, 4294901760
    %3762 = vmatmul.mubr.f32.gmra.mrb[0].mxu0 %v3761
    %v3763 = vpop.f32.mrb[0].mxu0
    %v3764 = vadd.f32 %v3687, %v3763
    %v3765 = vpop.f32.mrb[0].mxu0
    %3766 = vdwg.mxu0
    %3767 = vmatprep.subr.mxu0 0.0
    %v3768 = vand.u32 %v3427, 4294901760
    %v3769 = vsub.f32 %v3427, %v3768
    %v3770 = vand.u32 %v3769, 4294901760
    %3771 = vmatpush1.msra.mxu0 %v3770
    %3772 = vmatprep.subr.mxu0 0.0
    %v3773 = vand.u32 %v3428, 4294901760
    %v3774 = vsub.f32 %v3428, %v3773
    %v3775 = vand.u32 %v3774, 4294901760
    %3776 = vmatpush1.msra.mxu0 %v3775
    %3777 = vmatprep.subr.mxu0 0.0
    %v3778 = vand.u32 %v3429, 4294901760
    %v3779 = vsub.f32 %v3429, %v3778
    %v3780 = vand.u32 %v3779, 4294901760
    %3781 = vmatpush1.msra.mxu0 %v3780
    %3782 = vmatprep.subr.mxu0 0.0
    %v3783 = vand.u32 %v3430, 4294901760
    %v3784 = vsub.f32 %v3430, %v3783
    %v3785 = vand.u32 %v3784, 4294901760
    %3786 = vmatpush1.msra.mxu0 %v3785
    %3787 = vmatprep.subr.mxu0 0.0
    %3788 = vmatpush1.msra.mxu0 0.0
    %3789 = vmatprep.subr.mxu0 0.0
    %3790 = vmatpush1.msra.mxu0 0.0
    %3791 = vmatprep.subr.mxu0 0.0
    %3792 = vmatpush1.msra.mxu0 0.0
    %3793 = vmatprep.subr.mxu0 0.0
    %3794 = vmatpush1.msra.mxu0 0.0
    %3795 = vmatprep.subr.mxu0 0.0
    %3796 = vmatpush1.msra.mxu0 0.0
    %3797 = vmatprep.subr.mxu0 0.0
    %3798 = vmatpush1.msra.mxu0 0.0
    %3799 = vmatprep.subr.mxu0 0.0
    %3800 = vmatpush1.msra.mxu0 0.0
    %3801 = vmatprep.subr.mxu0 0.0
    %3802 = vmatpush1.msra.mxu0 0.0
    %3803 = vmatprep.subr.mxu0 0.0
    %3804 = vmatpush1.msra.mxu0 0.0
    %3805 = vmatprep.subr.mxu0 0.0
    %3806 = vmatpush1.msra.mxu0 0.0
    %3807 = vmatprep.subr.mxu0 0.0
    %3808 = vmatpush1.msra.mxu0 0.0
    %3809 = vmatprep.subr.mxu0 0.0
    %3810 = vmatpush1.msra.mxu0 0.0
    %3811 = vmatprep.subr.mxu0 0.0
    %3812 = vmatpush1.msra.mxu0 0.0
    %3813 = vmatprep.subr.mxu0 0.0
    %3814 = vmatpush1.msra.mxu0 0.0
    %3815 = vmatprep.subr.mxu0 0.0
    %3816 = vmatpush1.msra.mxu0 0.0
    %3817 = vmatprep.subr.mxu0 0.0
    %3818 = vmatpush1.msra.mxu0 0.0
    %3819 = vmatprep.subr.mxu0 0.0
    %3820 = vmatpush1.msra.mxu0 0.0
    %3821 = vmatprep.subr.mxu0 0.0
    %3822 = vmatpush1.msra.mxu0 0.0
    %3823 = vmatprep.subr.mxu0 0.0
    %3824 = vmatpush1.msra.mxu0 0.0
    %3825 = vmatprep.subr.mxu0 0.0
    %3826 = vmatpush1.msra.mxu0 0.0
    %3827 = vmatprep.subr.mxu0 0.0
    %3828 = vmatpush1.msra.mxu0 0.0
    %3829 = vmatprep.subr.mxu0 0.0
    %3830 = vmatpush1.msra.mxu0 0.0
    %3831 = vmatprep.subr.mxu0 0.0
    %3832 = vmatpush1.msra.mxu0 0.0
    %3833 = vmatprep.subr.mxu0 0.0
    %3834 = vmatpush1.msra.mxu0 0.0
    %3835 = vmatprep.subr.mxu0 0.0
    %3836 = vmatpush1.msra.mxu0 0.0
    %3837 = vmatprep.subr.mxu0 0.0
    %3838 = vmatpush1.msra.mxu0 0.0
    %3839 = vmatprep.subr.mxu0 0.0
    %3840 = vmatpush1.msra.mxu0 0.0
    %3841 = vmatprep.subr.mxu0 0.0
    %3842 = vmatpush1.msra.mxu0 0.0
    %3843 = vmatprep.mubr.f32.mxu0 0.0
    %v3844 = vand.u32 %v3438, 4294901760
    %3845 = vmatmul.mubr.f32.gmra.mrb[0].mxu0 %v3844
    %v3846 = vpop.f32.mrb[0].mxu0
    %v3847 = vadd.f32 %v3764, %v3846
    %v3848 = vpop.f32.mrb[0].mxu0
    %3849 = vdwg.mxu0
    %3850 = vmatprep.subr.mxu0 0.0
    %v3851 = vand.u32 %v3427, 4294901760
    %3852 = vmatpush1.msra.mxu0 %v3851
    %3853 = vmatprep.subr.mxu0 0.0
    %v3854 = vand.u32 %v3428, 4294901760
    %3855 = vmatpush1.msra.mxu0 %v3854
    %3856 = vmatprep.subr.mxu0 0.0
    %v3857 = vand.u32 %v3429, 4294901760
    %3858 = vmatpush1.msra.mxu0 %v3857
    %3859 = vmatprep.subr.mxu0 0.0
    %v3860 = vand.u32 %v3430, 4294901760
    %3861 = vmatpush1.msra.mxu0 %v3860
    %3862 = vmatprep.subr.mxu0 0.0
    %3863 = vmatpush1.msra.mxu0 0.0
    %3864 = vmatprep.subr.mxu0 0.0
    %3865 = vmatpush1.msra.mxu0 0.0
    %3866 = vmatprep.subr.mxu0 0.0
    %3867 = vmatpush1.msra.mxu0 0.0
    %3868 = vmatprep.subr.mxu0 0.0
    %3869 = vmatpush1.msra.mxu0 0.0
    %3870 = vmatprep.subr.mxu0 0.0
    %3871 = vmatpush1.msra.mxu0 0.0
    %3872 = vmatprep.subr.mxu0 0.0
    %3873 = vmatpush1.msra.mxu0 0.0
    %3874 = vmatprep.subr.mxu0 0.0
    %3875 = vmatpush1.msra.mxu0 0.0
    %3876 = vmatprep.subr.mxu0 0.0
    %3877 = vmatpush1.msra.mxu0 0.0
    %3878 = vmatprep.subr.mxu0 0.0
    %3879 = vmatpush1.msra.mxu0 0.0
    %3880 = vmatprep.subr.mxu0 0.0
    %3881 = vmatpush1.msra.mxu0 0.0
    %3882 = vmatprep.subr.mxu0 0.0
    %3883 = vmatpush1.msra.mxu0 0.0
    %3884 = vmatprep.subr.mxu0 0.0
    %3885 = vmatpush1.msra.mxu0 0.0
    %3886 = vmatprep.subr.mxu0 0.0
    %3887 = vmatpush1.msra.mxu0 0.0
    %3888 = vmatprep.subr.mxu0 0.0
    %3889 = vmatpush1.msra.mxu0 0.0
    %3890 = vmatprep.subr.mxu0 0.0
    %3891 = vmatpush1.msra.mxu0 0.0
    %3892 = vmatprep.subr.mxu0 0.0
    %3893 = vmatpush1.msra.mxu0 0.0
    %3894 = vmatprep.subr.mxu0 0.0
    %3895 = vmatpush1.msra.mxu0 0.0
    %3896 = vmatprep.subr.mxu0 0.0
    %3897 = vmatpush1.msra.mxu0 0.0
    %3898 = vmatprep.subr.mxu0 0.0
    %3899 = vmatpush1.msra.mxu0 0.0
    %3900 = vmatprep.subr.mxu0 0.0
    %3901 = vmatpush1.msra.mxu0 0.0
    %3902 = vmatprep.subr.mxu0 0.0
    %3903 = vmatpush1.msra.mxu0 0.0
    %3904 = vmatprep.subr.mxu0 0.0
    %3905 = vmatpush1.msra.mxu0 0.0
    %3906 = vmatprep.subr.mxu0 0.0
    %3907 = vmatpush1.msra.mxu0 0.0
    %3908 = vmatprep.subr.mxu0 0.0
    %3909 = vmatpush1.msra.mxu0 0.0
    %3910 = vmatprep.subr.mxu0 0.0
    %3911 = vmatpush1.msra.mxu0 0.0
    %3912 = vmatprep.subr.mxu0 0.0
    %3913 = vmatpush1.msra.mxu0 0.0
    %3914 = vmatprep.subr.mxu0 0.0
    %3915 = vmatpush1.msra.mxu0 0.0
    %3916 = vmatprep.subr.mxu0 0.0
    %3917 = vmatpush1.msra.mxu0 0.0
    %3918 = vmatprep.mubr.f32.mxu0 0.0
    %v3919 = vand.u32 %v3438, 4294901760
    %3920 = vmatmul.mubr.f32.gmra.mrb[0].mxu0 %v3919
    %v3921 = vpop.f32.mrb[0].mxu0
    %v3922 = vadd.f32 %v3847, %v3921
    %v3923 = vpop.f32.mrb[0].mxu0
    %3924 = vdwg.mxu0
    %v3925 = vsel %vm34, %v3922, -inf
    %3926 = vmax.xlane.f32.xlu0 %v3925
    %v3927 = vpop.xlane.xlu0 %3926
    %v3928 = vsub.f32 %v3922, %v3927
    %v3929 = vmul.f32 %v3928, 1.442695
    %v3930 = vpow.pop %v3929
    %v3931 = vsel %vm34, %v3930, 0.0
    %3932 = vadd.xlane.f32.xlu0 %v3931
    %v3933 = vpop.xlane.xlu0 %3932
    %v3934 = vrcp.pop %v3933
    %v3935 = vmul.f32 %v3933, %v3934
    %v3936 = vsub.f32 2.0, %v3935
    %v3937 = vmul.f32 %v3934, %v3936
    %v3938 = vmul.f32 %v3930, %v3937
    %3939 = vst [vmem:[#allocation5] sm:$0x3] %v3938
    // Predicated region
    $region14: #{tpu_custom_call.1} parent=1 // pred_check
      _
    $region15: #{tpu_custom_call.1} parent=1 // pred_check_branch
      %3941 = sbr.rel (0) target = $region17
    $region16: #{tpu_custom_call.1} parent=1 // pred_region
      %s3943 = ssub.s32 32, 32
      %3944 = vsyncadd [#allocation4], %s3943
      %s3946 = sshll.u32 [#allocation5], 4
      %s3947 = int_to_ptr.vmem [resolvable:$true] %s3946
      %3949 = dma.vmem_to_hbm [thread:$0]  %s3947, 32, %s2, [#allocation4]
    $region17: #{tpu_custom_call.1} parent=1 // pred_fallthru
      _
    // Predicated region
    $region18: #{tpu_custom_call.1} parent=1 // pred_check
      _
    $region19: #{tpu_custom_call.1} parent=1 // pred_check_branch
      %3951 = sbr.rel (0) target = $region21
    $region20: #{tpu_custom_call.1} parent=1 // pred_region
      %3952 = dma.done [#allocation4], 32
    $region21: #{tpu_custom_call.1} parent=1 // pred_fallthru
      _
    %3953 = vsyncpa [#allocation3], 1
    %3954 = vsyncpa [#allocation4], 1

</llo_original>
